<compile_context>
chip_gen: v5e
topology: v5e:2x2
jax: 0.10.0
libtpu: 0.0.40
codegen_flags: <defaults>
</compile_context>

<pallas_src>
import math

import jax
import jax.numpy as jnp
from jax.experimental import pallas as pl
from jax.experimental.pallas import tpu as pltpu


def _round_up(v, m):
    return (v + m - 1) // m * m


def _make_basic_block_kernel(H, W, Wp, C, M, Mh, Lh, B):
    """Fused BasicBlock kernel, one batch element per grid step.

    x_ref   : (1, (H+3)*Wp, C) bf16  zero-padded flat input frame (valid data
                                     at frame rows [1,H+1), cols [1,W+1))
    w1_ref  : (3, C, 3C)       bf16  conv1 weights, w1_ref[kx][cin, ky*C+cout]
    w2_ref  : (3, C, 3C)       bf16  conv2 weights, same layout
    sb1_ref : (2, C)           f32   folded BN1 [scale; bias]
    sb2_ref : (2, C)           f32   folded BN2 [scale; bias]
    mask_ref: (M, 1)           f32   1.0 on valid columns (col < W), else 0.0
    o_ref   : (1, H, W, C)     bf16  output (valid columns only)
    hs_ref  : (Lh, C)          bf16  VMEM scratch: conv1 output staged with
                                     zero halo rows (conv2's padded input)
    """
    C3 = 3 * C

    def kernel(x_ref, w1_ref, w2_ref, sb1_ref, sb2_ref, mask_ref, o_ref, hs_ref):
        f32 = jnp.float32

        # ----------------- conv1 (3x3, pad 1, stride 1) -----------------
        # Three matmuls, one per kx tap (row offsets 0/1/2 of the flat frame);
        # RHS is wide over ky (N = 3C) to fill the 256-wide MXU on v6e/v7x.
        q = jnp.dot(x_ref[0, pl.ds(0, Mh), :], w1_ref[0],
                    preferred_element_type=f32)
        q += jnp.dot(x_ref[0, pl.ds(1, Mh), :], w1_ref[1],
                     preferred_element_type=f32)
        q += jnp.dot(x_ref[0, pl.ds(2, Mh), :], w1_ref[2],
                     preferred_element_type=f32)
        # Combine the ky taps with sublane-ALIGNED row shifts (Wp % 8 == 0).
        acc1 = (q[0:M, 0:C]
                + q[Wp:Wp + M, C:2 * C]
                + q[2 * Wp:2 * Wp + M, 2 * C:C3])

        # Folded BN1 + ReLU; the column mask zeroes the padded columns so the
        # flat wrap-around acts as conv2's left/right zero padding.
        h = jnp.maximum(acc1 * sb1_ref[0:1, :] + sb1_ref[1:2, :], 0.0)
        hb = (h * mask_ref[...]).astype(jnp.bfloat16)

        # --------- stage conv1 output for conv2 (single aligned store) ------
        zhalo = jnp.zeros((B, C), jnp.bfloat16)
        hs_ref[pl.ds(0, B), :] = zhalo                 # top zero halo rows
        hs_ref[pl.ds(B + M, Lh - B - M), :] = zhalo    # bottom zero halo rows
        hs_ref[pl.ds(B, M), :] = hb                    # aligned, lane-dense

        # ----------------- conv2 (3x3, pad 1, stride 1) -----------------
        q2 = jnp.dot(hs_ref[pl.ds(B - Wp - 1, Mh), :], w2_ref[0],
                     preferred_element_type=f32)
        q2 += jnp.dot(hs_ref[pl.ds(B - Wp, Mh), :], w2_ref[1],
                      preferred_element_type=f32)
        q2 += jnp.dot(hs_ref[pl.ds(B - Wp + 1, Mh), :], w2_ref[2],
                      preferred_element_type=f32)
        acc2 = (q2[0:M, 0:C]
                + q2[Wp:Wp + M, C:2 * C]
                + q2[2 * Wp:2 * Wp + M, 2 * C:C3])

        # Folded BN2 + residual + ReLU.  The residual is the centre of the
        # already-resident padded input (one frame row down, one column right).
        res = x_ref[0, pl.ds(Wp + 1, M), :].astype(f32)
        y = jnp.maximum(acc2 * sb2_ref[0:1, :] + sb2_ref[1:2, :] + res, 0.0)

        # Store only the valid W columns, in bf16 (lane-dense, unmasked).
        o_ref[0] = y.reshape(H, Wp, C)[:, :W, :].astype(o_ref.dtype)

    return kernel


def basic_block(x, w1, w2, sb1, sb2):
    """Fused BasicBlock forward (stride=1, downsample=None).

    x   : (N, H, W, C) f32, NHWC
    w1  : (3, 3, C, C) conv1 weight (HWIO, no bias)
    w2  : (3, 3, C, C) conv2 weight (HWIO, no bias)
    sb1 : (2, C) folded BN1 [scale; bias]
    sb2 : (2, C) folded BN2 [scale; bias]
    """
    N, H, W, C = x.shape
    assert C % 128 == 0, "demo keeps channels lane-dense (multiple of 128)"
    assert W % 8 == 0, "demo stores valid columns unmasked (W % 8 == 0)"

    Wp = _round_up(W + 2, 8)       # padded frame width -> aligned ky shifts
    Hp = H + 3                     # 1 top + 2 bottom zero frame rows
    L = Hp * Wp                    # flat rows of the padded input frame
    M = H * Wp                     # flat rows of the output frame
    Mh = M + 2 * Wp                # rows needed to cover all ky taps
    B = Wp + 8                     # aligned data offset inside the h staging
    Lh = M + 2 * Wp + 16           # staging scratch rows (covers all reads)

    # bf16 activations (f32 accumulation happens on the MXU in-kernel).
    xb = x.astype(jnp.bfloat16)
    # Single C-wide zero pad: valid data at frame rows [1, H+1), cols [1, W+1).
    xq = jnp.pad(xb, ((0, 0), (1, 2), (1, Wp - 1 - W), (0, 0)))
    x_flat = xq.reshape(N, L, C)

    # weights: (ky, kx, cin, cout) -> w_t[kx][cin, ky*C + cout]
    w1_t = w1.astype(jnp.bfloat16).transpose(1, 2, 0, 3).reshape(3, C, 3 * C)
    w2_t = w2.astype(jnp.bfloat16).transpose(1, 2, 0, 3).reshape(3, C, 3 * C)
    sb1 = sb1.astype(jnp.float32)
    sb2 = sb2.astype(jnp.float32)

    # Tiny precomputed valid-column mask (period Wp along the flat row axis).
    col = jnp.arange(M, dtype=jnp.int32) % Wp
    mask = (col < W).astype(jnp.float32)[:, None]          # (M, 1)

    kernel = _make_basic_block_kernel(H, W, Wp, C, M, Mh, Lh, B)

    flops = 2 * N * 2 * 3 * Mh * C * (3 * C)               # 2 convs, 3 taps each
    bytes_accessed = (N * L * C * 2                         # input (bf16)
                      + 2 * (3 * C * 3 * C * 2)             # weights (bf16)
                      + 2 * (2 * C * 4) + M * 4             # BN + mask
                      + N * H * W * C * 2)                  # output (bf16)

    out = pl.pallas_call(
        kernel,
        grid=(N,),
        in_specs=[
            pl.BlockSpec((1, L, C), lambda n: (n, 0, 0)),
            pl.BlockSpec((3, C, 3 * C), lambda n: (0, 0, 0)),
            pl.BlockSpec((3, C, 3 * C), lambda n: (0, 0, 0)),
            pl.BlockSpec((2, C), lambda n: (0, 0)),
            pl.BlockSpec((2, C), lambda n: (0, 0)),
            pl.BlockSpec((M, 1), lambda n: (0, 0)),
        ],
        out_specs=pl.BlockSpec((1, H, W, C), lambda n: (n, 0, 0, 0)),
        out_shape=jax.ShapeDtypeStruct((N, H, W, C), jnp.bfloat16),
        scratch_shapes=[pltpu.VMEM((Lh, C), jnp.bfloat16)],
        compiler_params=pltpu.CompilerParams(
            dimension_semantics=("parallel",),   # batch axis -> 2 TCs on v7x
        ),
        cost_estimate=pl.CostEstimate(
            flops=flops, transcendentals=0, bytes_accessed=bytes_accessed),
    )(x_flat, w1_t, w2_t, sb1, sb2, mask)

    return out


# ------------------------- pure-XLA reference ------------------------------
def reference_basic_block(x, w1, w2, sb1, sb2):
    f32 = jnp.float32
    xr = x.astype(jnp.bfloat16).astype(f32)          # match kernel's bf16 inputs
    w1r = w1.astype(jnp.bfloat16).astype(f32)
    w2r = w2.astype(jnp.bfloat16).astype(f32)

    def conv(a, w):
        return jax.lax.conv_general_dilated(
            a, w, window_strides=(1, 1), padding=((1, 1), (1, 1)),
            dimension_numbers=("NHWC", "HWIO", "NHWC"),
            precision=jax.lax.Precision.HIGHEST)

    h = jnp.maximum(conv(xr, w1r) * sb1[0] + sb1[1], 0.0)
    h = h.astype(jnp.bfloat16).astype(f32)           # kernel casts intermediate
    y = conv(h, w2r) * sb2[0] + sb2[1] + xr
    return jnp.maximum(y, 0.0)


def _bn_fold(kg, kb, km, kv, C, eps=1e-5):
    gamma = 1.0 + 0.1 * jax.random.normal(kg, (C,), jnp.float32)
    beta = 0.1 * jax.random.normal(kb, (C,), jnp.float32)
    mean = 0.1 * jax.random.normal(km, (C,), jnp.float32)
    var = 1.0 + 0.1 * jax.random.uniform(kv, (C,), jnp.float32)
    scale = gamma * jax.lax.rsqrt(var + eps)
    bias = beta - mean * scale
    return jnp.stack([scale, bias], axis=0)          # (2, C)


# ----------------------------------------------------------------------------
if __name__ == "__main__":
    key = jax.random.PRNGKey(0)
    (k_x, k_w1, k_w2,
     kg1, kb1, km1, kv1,
     kg2, kb2, km2, kv2) = jax.random.split(key, 11)

    # BasicBlock(inplanes=128, planes=128, stride=1), NHWC demo input.
    N, H, W, C = 2, 16, 16, 128
    x = jax.random.normal(k_x, (N, H, W, C), jnp.float32)

    std = math.sqrt(2.0 / (3 * 3 * C))               # module's He init
    w1 = std * jax.random.normal(k_w1, (3, 3, C, C), jnp.float32)
    w2 = std * jax.random.normal(k_w2, (3, 3, C, C), jnp.float32)
    sb1 = _bn_fold(kg1, kb1, km1, kv1, C)
    sb2 = _bn_fold(kg2, kb2, km2, kv2, C)

    fwd = jax.jit(basic_block)
    out = fwd(x, w1, w2, sb1, sb2)
    jax.block_until_ready(out)

    ref = reference_basic_block(x, w1, w2, sb1, sb2)
    out_f = out.astype(jnp.float32)

    assert out.shape == (N, H, W, C), out.shape
    assert bool(jnp.all(jnp.isfinite(out_f)))
    # bf16 output + bf16/f32-accumulate skew: atol + rtol tolerance.
    abs_err = jnp.abs(out_f - ref)
    ok = bool(jnp.all(abs_err <= 2e-2 + 1.5e-2 * jnp.abs(ref)))
    assert ok, float(jnp.max(abs_err))
    print("KERNEL_OK")
</pallas_src>

<mosaic_0001>
module attributes {stable_mosaic.version = 11 : i64} {
  func.func @kernel(%arg0: i32, %arg1: memref<1x456x128xbf16, #tpu.memory_space<vmem>>, %arg2: memref<3x128x384xbf16, #tpu.memory_space<vmem>>, %arg3: memref<3x128x384xbf16, #tpu.memory_space<vmem>>, %arg4: memref<2x128xf32, #tpu.memory_space<vmem>>, %arg5: memref<2x128xf32, #tpu.memory_space<vmem>>, %arg6: memref<384x1xf32, #tpu.memory_space<vmem>>, %arg7: memref<1x16x16x128xbf16, #tpu.memory_space<vmem>>, %arg8: memref<448x128xbf16, #tpu.memory_space<vmem>>) attributes {dimension_semantics = [#tpu.dimension_semantics<parallel>], iteration_bounds = array<i64: 2>, scalar_prefetch = 0 : i64, scratch_operands = 1 : i64, tpu.core_type = #tpu.core_type<tc>, window_params = [{transform_indices = @transform_0, window_bounds = array<i64: 1, 456, 128>}, {pipeline_mode = #tpu.pipeline_mode<synchronous>, transform_indices = @transform_1, window_bounds = array<i64: 3, 128, 384>}, {pipeline_mode = #tpu.pipeline_mode<synchronous>, transform_indices = @transform_2, window_bounds = array<i64: 3, 128, 384>}, {pipeline_mode = #tpu.pipeline_mode<synchronous>, transform_indices = @transform_3, window_bounds = array<i64: 2, 128>}, {pipeline_mode = #tpu.pipeline_mode<synchronous>, transform_indices = @transform_4, window_bounds = array<i64: 2, 128>}, {pipeline_mode = #tpu.pipeline_mode<synchronous>, transform_indices = @transform_5, window_bounds = array<i64: 384, 1>}, {transform_indices = @transform_6, window_bounds = array<i64: 1, 16, 16, 128>}]} {
    %c0 = arith.constant 0 : index
    %c0_0 = arith.constant 0 : index
    %c0_1 = arith.constant 0 : index
    %0 = vector.load %arg1[%c0, %c0_0, %c0_1] : memref<1x456x128xbf16, #tpu.memory_space<vmem>>, vector<1x432x128xbf16>
    %1 = vector.shape_cast %0 : vector<1x432x128xbf16> to vector<432x128xbf16>
    %c0_2 = arith.constant 0 : index
    %c0_3 = arith.constant 0 : index
    %c0_4 = arith.constant 0 : index
    %2 = vector.load %arg2[%c0_2, %c0_3, %c0_4] : memref<3x128x384xbf16, #tpu.memory_space<vmem>>, vector<1x128x384xbf16>
    %3 = vector.shape_cast %2 : vector<1x128x384xbf16> to vector<128x384xbf16>
    %cst = arith.constant dense<0.000000e+00> : vector<432x384xf32>
    %4 = tpu.matmul %1, %3, %cst {dimension_numbers = #tpu.dot_dimension_numbers<[1], [0], [0], [1], [0, 0, 1, 1], [], []>} : vector<432x128xbf16>, vector<128x384xbf16>, vector<432x384xf32> -> vector<432x384xf32>
    %c0_5 = arith.constant 0 : index
    %c1 = arith.constant 1 : index
    %c0_6 = arith.constant 0 : index
    %5 = vector.load %arg1[%c0_5, %c1, %c0_6] : memref<1x456x128xbf16, #tpu.memory_space<vmem>>, vector<1x432x128xbf16>
    %6 = vector.shape_cast %5 : vector<1x432x128xbf16> to vector<432x128xbf16>
    %c1_7 = arith.constant 1 : index
    %c0_8 = arith.constant 0 : index
    %c0_9 = arith.constant 0 : index
    %7 = vector.load %arg2[%c1_7, %c0_8, %c0_9] : memref<3x128x384xbf16, #tpu.memory_space<vmem>>, vector<1x128x384xbf16>
    %8 = vector.shape_cast %7 : vector<1x128x384xbf16> to vector<128x384xbf16>
    %cst_10 = arith.constant dense<0.000000e+00> : vector<432x384xf32>
    %9 = tpu.matmul %6, %8, %cst_10 {dimension_numbers = #tpu.dot_dimension_numbers<[1], [0], [0], [1], [0, 0, 1, 1], [], []>} : vector<432x128xbf16>, vector<128x384xbf16>, vector<432x384xf32> -> vector<432x384xf32>
    %10 = arith.addf %4, %9 : vector<432x384xf32>
    %c0_11 = arith.constant 0 : index
    %c2 = arith.constant 2 : index
    %c0_12 = arith.constant 0 : index
    %11 = vector.load %arg1[%c0_11, %c2, %c0_12] : memref<1x456x128xbf16, #tpu.memory_space<vmem>>, vector<1x432x128xbf16>
    %12 = vector.shape_cast %11 : vector<1x432x128xbf16> to vector<432x128xbf16>
    %c2_13 = arith.constant 2 : index
    %c0_14 = arith.constant 0 : index
    %c0_15 = arith.constant 0 : index
    %13 = vector.load %arg2[%c2_13, %c0_14, %c0_15] : memref<3x128x384xbf16, #tpu.memory_space<vmem>>, vector<1x128x384xbf16>
    %14 = vector.shape_cast %13 : vector<1x128x384xbf16> to vector<128x384xbf16>
    %cst_16 = arith.constant dense<0.000000e+00> : vector<432x384xf32>
    %15 = tpu.matmul %12, %14, %cst_16 {dimension_numbers = #tpu.dot_dimension_numbers<[1], [0], [0], [1], [0, 0, 1, 1], [], []>} : vector<432x128xbf16>, vector<128x384xbf16>, vector<432x384xf32> -> vector<432x384xf32>
    %16 = arith.addf %10, %15 : vector<432x384xf32>
    %17 = vector.extract_strided_slice %16 {offsets = [0, 0], sizes = [384, 128], strides = [1, 1]} : vector<432x384xf32> to vector<384x128xf32>
    %18 = vector.extract_strided_slice %16 {offsets = [24, 128], sizes = [384, 128], strides = [1, 1]} : vector<432x384xf32> to vector<384x128xf32>
    %19 = arith.addf %17, %18 : vector<384x128xf32>
    %20 = vector.extract_strided_slice %16 {offsets = [48, 256], sizes = [384, 128], strides = [1, 1]} : vector<432x384xf32> to vector<384x128xf32>
    %21 = arith.addf %19, %20 : vector<384x128xf32>
    %c0_17 = arith.constant 0 : index
    %c0_18 = arith.constant 0 : index
    %22 = vector.load %arg4[%c0_17, %c0_18] : memref<2x128xf32, #tpu.memory_space<vmem>>, vector<1x128xf32>
    %23 = vector.broadcast %22 : vector<1x128xf32> to vector<384x128xf32>
    %24 = arith.mulf %21, %23 : vector<384x128xf32>
    %c1_19 = arith.constant 1 : index
    %c0_20 = arith.constant 0 : index
    %25 = vector.load %arg4[%c1_19, %c0_20] : memref<2x128xf32, #tpu.memory_space<vmem>>, vector<1x128xf32>
    %26 = vector.broadcast %25 : vector<1x128xf32> to vector<384x128xf32>
    %27 = arith.addf %24, %26 : vector<384x128xf32>
    %cst_21 = arith.constant 0.000000e+00 : f32
    %28 = vector.broadcast %cst_21 : f32 to vector<384x128xf32>
    %29 = arith.maximumf %27, %28 : vector<384x128xf32>
    %c0_22 = arith.constant 0 : index
    %c0_23 = arith.constant 0 : index
    %30 = vector.load %arg6[%c0_22, %c0_23] : memref<384x1xf32, #tpu.memory_space<vmem>>, vector<384x1xf32>
    %31 = vector.broadcast %30 : vector<384x1xf32> to vector<384x128xf32>
    %32 = arith.mulf %29, %31 : vector<384x128xf32>
    %33 = arith.truncf %32 : vector<384x128xf32> to vector<384x128xbf16>
    %cst_24 = arith.constant 0.000000e+00 : bf16
    %34 = vector.broadcast %cst_24 : bf16 to vector<32x128xbf16>
    %c0_25 = arith.constant 0 : index
    %c0_26 = arith.constant 0 : index
    %35 = vector.load %arg8[%c0_25, %c0_26] : memref<448x128xbf16, #tpu.memory_space<vmem>>, vector<32x128xbf16>
    tpu.vector_store %arg8[%c0_25, %c0_26], %34 {strides = array<i32>} : memref<448x128xbf16, #tpu.memory_space<vmem>>, vector<32x128xbf16>,
    %c416 = arith.constant 416 : index
    %c0_27 = arith.constant 0 : index
    %36 = vector.load %arg8[%c416, %c0_27] : memref<448x128xbf16, #tpu.memory_space<vmem>>, vector<32x128xbf16>
    tpu.vector_store %arg8[%c416, %c0_27], %34 {strides = array<i32>} : memref<448x128xbf16, #tpu.memory_space<vmem>>, vector<32x128xbf16>,
    %c32 = arith.constant 32 : index
    %c0_28 = arith.constant 0 : index
    %37 = vector.load %arg8[%c32, %c0_28] : memref<448x128xbf16, #tpu.memory_space<vmem>>, vector<384x128xbf16>
    tpu.vector_store %arg8[%c32, %c0_28], %33 {strides = array<i32>} : memref<448x128xbf16, #tpu.memory_space<vmem>>, vector<384x128xbf16>,
    %c7 = arith.constant 7 : index
    %c0_29 = arith.constant 0 : index
    %38 = vector.load %arg8[%c7, %c0_29] : memref<448x128xbf16, #tpu.memory_space<vmem>>, vector<432x128xbf16>
    %c0_30 = arith.constant 0 : index
    %c0_31 = arith.constant 0 : index
    %c0_32 = arith.constant 0 : index
    %39 = vector.load %arg3[%c0_30, %c0_31, %c0_32] : memref<3x128x384xbf16, #tpu.memory_space<vmem>>, vector<1x128x384xbf16>
    %40 = vector.shape_cast %39 : vector<1x128x384xbf16> to vector<128x384xbf16>
    %cst_33 = arith.constant dense<0.000000e+00> : vector<432x384xf32>
    %41 = tpu.matmul %38, %40, %cst_33 {dimension_numbers = #tpu.dot_dimension_numbers<[1], [0], [0], [1], [0, 0, 1, 1], [], []>} : vector<432x128xbf16>, vector<128x384xbf16>, vector<432x384xf32> -> vector<432x384xf32>
    %c8 = arith.constant 8 : index
    %c0_34 = arith.constant 0 : index
    %42 = vector.load %arg8[%c8, %c0_34] : memref<448x128xbf16, #tpu.memory_space<vmem>>, vector<432x128xbf16>
    %c1_35 = arith.constant 1 : index
    %c0_36 = arith.constant 0 : index
    %c0_37 = arith.constant 0 : index
    %43 = vector.load %arg3[%c1_35, %c0_36, %c0_37] : memref<3x128x384xbf16, #tpu.memory_space<vmem>>, vector<1x128x384xbf16>
    %44 = vector.shape_cast %43 : vector<1x128x384xbf16> to vector<128x384xbf16>
    %cst_38 = arith.constant dense<0.000000e+00> : vector<432x384xf32>
    %45 = tpu.matmul %42, %44, %cst_38 {dimension_numbers = #tpu.dot_dimension_numbers<[1], [0], [0], [1], [0, 0, 1, 1], [], []>} : vector<432x128xbf16>, vector<128x384xbf16>, vector<432x384xf32> -> vector<432x384xf32>
    %46 = arith.addf %41, %45 : vector<432x384xf32>
    %c9 = arith.constant 9 : index
    %c0_39 = arith.constant 0 : index
    %47 = vector.load %arg8[%c9, %c0_39] : memref<448x128xbf16, #tpu.memory_space<vmem>>, vector<432x128xbf16>
    %c2_40 = arith.constant 2 : index
    %c0_41 = arith.constant 0 : index
    %c0_42 = arith.constant 0 : index
    %48 = vector.load %arg3[%c2_40, %c0_41, %c0_42] : memref<3x128x384xbf16, #tpu.memory_space<vmem>>, vector<1x128x384xbf16>
    %49 = vector.shape_cast %48 : vector<1x128x384xbf16> to vector<128x384xbf16>
    %cst_43 = arith.constant dense<0.000000e+00> : vector<432x384xf32>
    %50 = tpu.matmul %47, %49, %cst_43 {dimension_numbers = #tpu.dot_dimension_numbers<[1], [0], [0], [1], [0, 0, 1, 1], [], []>} : vector<432x128xbf16>, vector<128x384xbf16>, vector<432x384xf32> -> vector<432x384xf32>
    %51 = arith.addf %46, %50 : vector<432x384xf32>
    %52 = vector.extract_strided_slice %51 {offsets = [0, 0], sizes = [384, 128], strides = [1, 1]} : vector<432x384xf32> to vector<384x128xf32>
    %53 = vector.extract_strided_slice %51 {offsets = [24, 128], sizes = [384, 128], strides = [1, 1]} : vector<432x384xf32> to vector<384x128xf32>
    %54 = arith.addf %52, %53 : vector<384x128xf32>
    %55 = vector.extract_strided_slice %51 {offsets = [48, 256], sizes = [384, 128], strides = [1, 1]} : vector<432x384xf32> to vector<384x128xf32>
    %56 = arith.addf %54, %55 : vector<384x128xf32>
    %c0_44 = arith.constant 0 : index
    %c25 = arith.constant 25 : index
    %c0_45 = arith.constant 0 : index
    %57 = vector.load %arg1[%c0_44, %c25, %c0_45] : memref<1x456x128xbf16, #tpu.memory_space<vmem>>, vector<1x384x128xbf16>
    %58 = vector.shape_cast %57 : vector<1x384x128xbf16> to vector<384x128xbf16>
    %59 = arith.extf %58 : vector<384x128xbf16> to vector<384x128xf32>
    %c0_46 = arith.constant 0 : index
    %c0_47 = arith.constant 0 : index
    %60 = vector.load %arg5[%c0_46, %c0_47] : memref<2x128xf32, #tpu.memory_space<vmem>>, vector<1x128xf32>
    %61 = vector.broadcast %60 : vector<1x128xf32> to vector<384x128xf32>
    %62 = arith.mulf %56, %61 : vector<384x128xf32>
    %c1_48 = arith.constant 1 : index
    %c0_49 = arith.constant 0 : index
    %63 = vector.load %arg5[%c1_48, %c0_49] : memref<2x128xf32, #tpu.memory_space<vmem>>, vector<1x128xf32>
    %64 = vector.broadcast %63 : vector<1x128xf32> to vector<384x128xf32>
    %65 = arith.addf %62, %64 : vector<384x128xf32>
    %66 = arith.addf %65, %59 : vector<384x128xf32>
    %cst_50 = arith.constant 0.000000e+00 : f32
    %67 = vector.broadcast %cst_50 : f32 to vector<384x128xf32>
    %68 = arith.maximumf %66, %67 : vector<384x128xf32>
    %69 = vector.shape_cast %68 : vector<384x128xf32> to vector<16x24x128xf32>
    %70 = vector.extract_strided_slice %69 {offsets = [0, 0, 0], sizes = [16, 16, 128], strides = [1, 1, 1]} : vector<16x24x128xf32> to vector<16x16x128xf32>
    %71 = arith.truncf %70 : vector<16x16x128xf32> to vector<16x16x128xbf16>
    %c0_51 = arith.constant 0 : index
    %c0_52 = arith.constant 0 : index
    %c0_53 = arith.constant 0 : index
    %c0_54 = arith.constant 0 : index
    %72 = vector.load %arg7[%c0_51, %c0_52, %c0_53, %c0_54] : memref<1x16x16x128xbf16, #tpu.memory_space<vmem>>, vector<1x16x16x128xbf16>
    %73 = vector.shape_cast %72 : vector<1x16x16x128xbf16> to vector<16x16x128xbf16>
    %74 = vector.shape_cast %71 : vector<16x16x128xbf16> to vector<1x16x16x128xbf16>
    tpu.vector_store %arg7[%c0_51, %c0_52, %c0_53, %c0_54], %74 {strides = array<i32>} : memref<1x16x16x128xbf16, #tpu.memory_space<vmem>>, vector<1x16x16x128xbf16>,
    return
  }
  func.func @transform_0(%arg0: i32) -> (i32, i32, i32) {
    %c0_i32 = arith.constant 0 : i32
    %c0_i32_0 = arith.constant 0 : i32
    %c0_i32_1 = arith.constant 0 : i32
    return %arg0, %c0_i32, %c0_i32_0 : i32, i32, i32
  }
  func.func @transform_1(%arg0: i32) -> (i32, i32, i32) {
    %c0_i32 = arith.constant 0 : i32
    %c0_i32_0 = arith.constant 0 : i32
    %c0_i32_1 = arith.constant 0 : i32
    %c0_i32_2 = arith.constant 0 : i32
    return %c0_i32, %c0_i32_0, %c0_i32_1 : i32, i32, i32
  }
  func.func @transform_2(%arg0: i32) -> (i32, i32, i32) {
    %c0_i32 = arith.constant 0 : i32
    %c0_i32_0 = arith.constant 0 : i32
    %c0_i32_1 = arith.constant 0 : i32
    %c0_i32_2 = arith.constant 0 : i32
    return %c0_i32, %c0_i32_0, %c0_i32_1 : i32, i32, i32
  }
  func.func @transform_3(%arg0: i32) -> (i32, i32) {
    %c0_i32 = arith.constant 0 : i32
    %c0_i32_0 = arith.constant 0 : i32
    %c0_i32_1 = arith.constant 0 : i32
    return %c0_i32, %c0_i32_0 : i32, i32
  }
  func.func @transform_4(%arg0: i32) -> (i32, i32) {
    %c0_i32 = arith.constant 0 : i32
    %c0_i32_0 = arith.constant 0 : i32
    %c0_i32_1 = arith.constant 0 : i32
    return %c0_i32, %c0_i32_0 : i32, i32
  }
  func.func @transform_5(%arg0: i32) -> (i32, i32) {
    %c0_i32 = arith.constant 0 : i32
    %c0_i32_0 = arith.constant 0 : i32
    %c0_i32_1 = arith.constant 0 : i32
    return %c0_i32, %c0_i32_0 : i32, i32
  }
  func.func @transform_6(%arg0: i32) -> (i32, i32, i32, i32) {
    %c0_i32 = arith.constant 0 : i32
    %c0_i32_0 = arith.constant 0 : i32
    %c0_i32_1 = arith.constant 0 : i32
    %c0_i32_2 = arith.constant 0 : i32
    return %arg0, %c0_i32, %c0_i32_0, %c0_i32_1 : i32, i32, i32, i32
  }
}

</mosaic_0001>

<llo_original>
// kernel: basic_block.1
$region0: #{basic_block.1}
  #allocation0 [shape = 'u32[]', space=smem, size = 0x4, offset = 0x4, fixed_abs, tag = 'smem constant byte address 0x4 - core index']
  #allocation1 [shape = 'u32[72,128]{1,0:T(1,128)}', space=vmem, size = 0x9000, scoped, tag = 'internal scratch']
  #allocation2 [shape = 'bf16[448,128]{1,0:T(8,128)(2,1)}', space=vmem, size = 0x1c000, scoped, tag = 'scratch operand']
  %s0 = inlined_call_operand.vmem [shape: bf16[2,456,128], index: 0, kind: input, shape index: {}]
  %s1 = inlined_call_operand.vmem [shape: bf16[3,128,384], index: 1, kind: input, shape index: {}]
  %s2 = inlined_call_operand.vmem [shape: bf16[3,128,384], index: 2, kind: input, shape index: {}]
  %s3 = inlined_call_operand.vmem [shape: f32[2,128], index: 3, kind: input, shape index: {}]
  %s4 = inlined_call_operand.vmem [shape: f32[2,128], index: 4, kind: input, shape index: {}]
  %s5 = inlined_call_operand.vmem [shape: f32[384,1], index: 5, kind: input, shape index: {}]
  %s6 = inlined_call_operand.hbm [shape: bf16[2,16,16,128], index: 6, kind: output, shape index: {}]
  %s7 = sld [smem:[#allocation0]]
  $region57: #{basic_block.1} parent=0
    _
  %s9 = ssub.s32 1, %s7
  %s10 = scalar_select 0, %s9, %s7
  $region1: #{basic_block.1} parent=0
    #allocation3 [shape = 'u8[131072]{0}', space=vmem, size = 0x20000, scoped, tag = 'output window, operand 0']
    #allocation4 [shape = 's32[2]{0}', space=sflag, size = 0x8, scoped, tag = 'scoped memory for basic_block.1']
    %11 = vsyncpa [#allocation4], 0
    %s12 = scalar_lea.sflag [#allocation4], 1
    %13 = vsyncpa %s12, 0
    loop: start=0, step=1, limit=4
    $region2: #{basic_block.1} parent=1 // loop_pre_header
      _
    $region3: #{basic_block.1} parent=1 // loop_header
      %s15 = sphi 0, %s19
      %p16 = scmp.ge.s32.totalorder %s15, 4
      %s25 = sphi 0, %s27
      %s28 = sphi 0, %s25
      %s29 = sphi 0, %s28
      %s45 = sphi 0, %s29
      %s49 = sphi 0, %s49
      %s51 = sphi 0, %s49
      %s52 = sphi 0, %s51
      %s66 = sphi 0, %s52
      %s70 = sphi 0, %s70
      %s72 = sphi 0, %s70
      %s73 = sphi 0, %s72
      %s87 = sphi 0, %s73
      %s91 = sphi 0, %s91
      %s93 = sphi 0, %s91
      %s94 = sphi 0, %s93
      %s108 = sphi 0, %s94
      %s112 = sphi 0, %s112
      %s114 = sphi 0, %s112
      %s115 = sphi 0, %s114
      %s129 = sphi 0, %s115
      %s133 = sphi 0, %s133
      %s135 = sphi 0, %s133
      %s136 = sphi 0, %s135
      %s150 = sphi 0, %s136
      %s156 = sphi 0, %s158
      %s159 = sphi 0, %s156
      %s160 = sphi 0, %s159
      %s176 = sphi 0, %s160
    $region4: #{basic_block.1} parent=1 // loop_header_branch
      %18 = sbr.rel (%p16) target = $region8
    $region5: #{basic_block.1} parent=1 // loop_body
      %s20 = ssub.s32 %s15, 1
      %s21 = ssub.s32 %s15, 2
      %s22 = sadd.s32 %s15, 1
      %s23 = ssub.s32 %s15, %s22
      %p24 = scmp.eq.s32.totalorder %s23, 0
      %s26 = sadd.s32 %s25, 1
      %s27 = scalar_select %p24, %s25, %s26
      %p30 = pneg %p24
      %p31 = scmp.eq.s32.totalorder %s15, 1
      %p32 = por %p30, %p31
      %p33 = scmp.ne.s32.totalorder %s25, %s28
      %p34 = scmp.eq.s32.totalorder %s15, 0
      %p35 = por %p33, %p34
      %p36 = scmp.ne.s32.totalorder %s25, %s28
      %p37 = scmp.eq.s32.totalorder %s20, 1
      %p38 = por %p36, %p37
      %p39 = scmp.ne.s32.totalorder %s28, %s29
      %p40 = scmp.eq.s32.totalorder %s20, 0
      %p41 = por %p39, %p40
      %p42 = scmp.ne.s32.totalorder %s28, %s29
      %p43 = scmp.eq.s32.totalorder %s21, 1
      %p44 = por %p42, %p43
      %p46 = scmp.ne.s32.totalorder %s29, %s45
      %p47 = scmp.eq.s32.totalorder %s21, 0
      %p48 = por %p46, %p47
      %s50 = sadd.s32 %s49, 1
      %p53 = scmp.eq.s32.totalorder %s15, 1
      %p54 = scmp.ne.s32.totalorder %s49, %s51
      %p55 = scmp.eq.s32.totalorder %s15, 0
      %p56 = por %p54, %p55
      %p57 = scmp.ne.s32.totalorder %s49, %s51
      %p58 = scmp.eq.s32.totalorder %s20, 1
      %p59 = por %p57, %p58
      %p60 = scmp.ne.s32.totalorder %s51, %s52
      %p61 = scmp.eq.s32.totalorder %s20, 0
      %p62 = por %p60, %p61
      %p63 = scmp.ne.s32.totalorder %s51, %s52
      %p64 = scmp.eq.s32.totalorder %s21, 1
      %p65 = por %p63, %p64
      %p67 = scmp.ne.s32.totalorder %s52, %s66
      %p68 = scmp.eq.s32.totalorder %s21, 0
      %p69 = por %p67, %p68
      %s71 = sadd.s32 %s70, 1
      %p74 = scmp.eq.s32.totalorder %s15, 1
      %p75 = scmp.ne.s32.totalorder %s70, %s72
      %p76 = scmp.eq.s32.totalorder %s15, 0
      %p77 = por %p75, %p76
      %p78 = scmp.ne.s32.totalorder %s70, %s72
      %p79 = scmp.eq.s32.totalorder %s20, 1
      %p80 = por %p78, %p79
      %p81 = scmp.ne.s32.totalorder %s72, %s73
      %p82 = scmp.eq.s32.totalorder %s20, 0
      %p83 = por %p81, %p82
      %p84 = scmp.ne.s32.totalorder %s72, %s73
      %p85 = scmp.eq.s32.totalorder %s21, 1
      %p86 = por %p84, %p85
      %p88 = scmp.ne.s32.totalorder %s73, %s87
      %p89 = scmp.eq.s32.totalorder %s21, 0
      %p90 = por %p88, %p89
      %s92 = sadd.s32 %s91, 1
      %p95 = scmp.eq.s32.totalorder %s15, 1
      %p96 = scmp.ne.s32.totalorder %s91, %s93
      %p97 = scmp.eq.s32.totalorder %s15, 0
      %p98 = por %p96, %p97
      %p99 = scmp.ne.s32.totalorder %s91, %s93
      %p100 = scmp.eq.s32.totalorder %s20, 1
      %p101 = por %p99, %p100
      %p102 = scmp.ne.s32.totalorder %s93, %s94
      %p103 = scmp.eq.s32.totalorder %s20, 0
      %p104 = por %p102, %p103
      %p105 = scmp.ne.s32.totalorder %s93, %s94
      %p106 = scmp.eq.s32.totalorder %s21, 1
      %p107 = por %p105, %p106
      %p109 = scmp.ne.s32.totalorder %s94, %s108
      %p110 = scmp.eq.s32.totalorder %s21, 0
      %p111 = por %p109, %p110
      %s113 = sadd.s32 %s112, 1
      %p116 = scmp.eq.s32.totalorder %s15, 1
      %p117 = scmp.ne.s32.totalorder %s112, %s114
      %p118 = scmp.eq.s32.totalorder %s15, 0
      %p119 = por %p117, %p118
      %p120 = scmp.ne.s32.totalorder %s112, %s114
      %p121 = scmp.eq.s32.totalorder %s20, 1
      %p122 = por %p120, %p121
      %p123 = scmp.ne.s32.totalorder %s114, %s115
      %p124 = scmp.eq.s32.totalorder %s20, 0
      %p125 = por %p123, %p124
      %p126 = scmp.ne.s32.totalorder %s114, %s115
      %p127 = scmp.eq.s32.totalorder %s21, 1
      %p128 = por %p126, %p127
      %p130 = scmp.ne.s32.totalorder %s115, %s129
      %p131 = scmp.eq.s32.totalorder %s21, 0
      %p132 = por %p130, %p131
      %s134 = sadd.s32 %s133, 1
      %p137 = scmp.eq.s32.totalorder %s15, 1
      %p138 = scmp.ne.s32.totalorder %s133, %s135
      %p139 = scmp.eq.s32.totalorder %s15, 0
      %p140 = por %p138, %p139
      %p141 = scmp.ne.s32.totalorder %s133, %s135
      %p142 = scmp.eq.s32.totalorder %s20, 1
      %p143 = por %p141, %p142
      %p144 = scmp.ne.s32.totalorder %s135, %s136
      %p145 = scmp.eq.s32.totalorder %s20, 0
      %p146 = por %p144, %p145
      %p147 = scmp.ne.s32.totalorder %s135, %s136
      %p148 = scmp.eq.s32.totalorder %s21, 1
      %p149 = por %p147, %p148
      %p151 = scmp.ne.s32.totalorder %s136, %s150
      %p152 = scmp.eq.s32.totalorder %s21, 0
      %p153 = por %p151, %p152
      %s154 = ssub.s32 %s15, %s22
      %p155 = scmp.eq.s32.totalorder %s154, 0
      %s157 = sadd.s32 %s156, 1
      %s158 = scalar_select %p155, %s156, %s157
      %p161 = pneg %p155
      %p162 = scmp.eq.s32.totalorder %s15, 1
      %p163 = por %p161, %p162
      %p164 = scmp.ne.s32.totalorder %s156, %s159
      %p165 = scmp.eq.s32.totalorder %s15, 0
      %p166 = por %p164, %p165
      %p167 = scmp.ne.s32.totalorder %s156, %s159
      %p168 = scmp.eq.s32.totalorder %s20, 1
      %p169 = por %p167, %p168
      %p170 = scmp.ne.s32.totalorder %s159, %s160
      %p171 = scmp.eq.s32.totalorder %s20, 0
      %p172 = por %p170, %p171
      %p173 = scmp.ne.s32.totalorder %s159, %s160
      %p174 = scmp.eq.s32.totalorder %s21, 1
      %p175 = por %p173, %p174
      %p177 = scmp.ne.s32.totalorder %s160, %s176
      %p178 = scmp.eq.s32.totalorder %s21, 0
      %p179 = por %p177, %p178
      %p180 = scmp.le.s32.totalorder 1, %s15
      %p181 = scmp.lt.s32.totalorder %s15, 3
      %p182 = pnand %p180, %p181
      %p183 = pneg %p182
      // Predicated region
      $region9: #{basic_block.1} parent=5 // pred_check
        _
      $region10: #{basic_block.1} parent=5 // pred_check_branch
        %185 = sbr.rel (%p182) target = $region12
      $region11: #{basic_block.1} parent=5 // pred_region
        %s186 = ssub.s32 %s15, 1
        // Predicated region
        $region13: #{basic_block.1} parent=11 // pred_check
          %p187 = pneg %p62
        $region14: #{basic_block.1} parent=11 // pred_check_branch
          %189 = sbr.rel (%p187) target = $region16
        $region15: #{basic_block.1} parent=11 // pred_region
          _
        $region16: #{basic_block.1} parent=11 // pred_fallthru
          _
        // Predicated region
        $region17: #{basic_block.1} parent=11 // pred_check
          %p190 = pneg %p83
        $region18: #{basic_block.1} parent=11 // pred_check_branch
          %192 = sbr.rel (%p190) target = $region20
        $region19: #{basic_block.1} parent=11 // pred_region
          _
        $region20: #{basic_block.1} parent=11 // pred_fallthru
          _
        // Predicated region
        $region21: #{basic_block.1} parent=11 // pred_check
          %p193 = pneg %p104
        $region22: #{basic_block.1} parent=11 // pred_check_branch
          %195 = sbr.rel (%p193) target = $region24
        $region23: #{basic_block.1} parent=11 // pred_region
          _
        $region24: #{basic_block.1} parent=11 // pred_fallthru
          _
        // Predicated region
        $region25: #{basic_block.1} parent=11 // pred_check
          %p196 = pneg %p125
        $region26: #{basic_block.1} parent=11 // pred_check_branch
          %198 = sbr.rel (%p196) target = $region28
        $region27: #{basic_block.1} parent=11 // pred_region
          _
        $region28: #{basic_block.1} parent=11 // pred_fallthru
          _
        // Predicated region
        $region29: #{basic_block.1} parent=11 // pred_check
          %p199 = pneg %p146
        $region30: #{basic_block.1} parent=11 // pred_check_branch
          %201 = sbr.rel (%p199) target = $region32
        $region31: #{basic_block.1} parent=11 // pred_region
          _
        $region32: #{basic_block.1} parent=11 // pred_fallthru
          _
      $region12: #{basic_block.1} parent=5 // pred_fallthru
        _
      %p202 = scmp.lt.s32.totalorder %s15, 2
      // Predicated region
      $region33: #{basic_block.1} parent=5 // pred_check
        %p203 = pneg %p202
      $region34: #{basic_block.1} parent=5 // pred_check_branch
        %205 = sbr.rel (%p203) target = $region36
      $region35: #{basic_block.1} parent=5 // pred_region
        // Predicated region
        $region37: #{basic_block.1} parent=35 // pred_check
          %p206 = pneg %p35
        $region38: #{basic_block.1} parent=35 // pred_check_branch
          %208 = sbr.rel (%p206) target = $region40
        $region39: #{basic_block.1} parent=35 // pred_region
          %p209 = scmp.lt.s32.totalorder %s15, 1
          %s210 = scalar_select %p209, %s15, 1
          %s211 = smul.addr %s210, 57
          %s212 = smul.addr %s211, 4
          %s213 = scalar_lea.vmem %s0, %s212
        $region40: #{basic_block.1} parent=35 // pred_fallthru
          _
      $region36: #{basic_block.1} parent=5 // pred_fallthru
        _
      %p214 = scmp.le.s32.totalorder 1, %s15
      %p215 = scmp.lt.s32.totalorder %s15, 3
      %p216 = pnand %p214, %p215
      %p217 = pneg %p216
      // Predicated region
      $region41: #{basic_block.1} parent=5 // pred_check
        _
      $region42: #{basic_block.1} parent=5 // pred_check_branch
        %219 = sbr.rel (%p216) target = $region44
      $region43: #{basic_block.1} parent=5 // pred_region
        %s220 = ssub.s32 %s15, 1
        %p221 = scmp.lt.s32.totalorder %s20, 1
        %s222 = scalar_select %p221, %s20, 1
        %s223 = smul.addr %s222, 57
        %s224 = smul.addr %s223, 4
        %s225 = scalar_lea.vmem %s0, %s224
        %p226 = pneg %p41
        %p227 = pneg %p38
        %p228 = pneg %p62
        %p229 = pneg %p59
        %p230 = pneg %p83
        %p231 = pneg %p80
        %p232 = pneg %p104
        %p233 = pneg %p101
        %p234 = pneg %p125
        %p235 = pneg %p122
        %p236 = pneg %p146
        %p237 = pneg %p143
        %p238 = pneg %p172
        %p239 = pneg %p169
        %s240 = sand.u32 %s159, 1
        %s241 = scalar_lea.sflag [#allocation4], %s240
        %s242 = sand.u32 %s159, 1
        %s243 = smul.addr %s242, 128
        %s244 = scalar_lea.vmem [#allocation3], %s243
        %p245 = scmp.lt.s32.totalorder %s20, 1
        %s246 = scalar_select %p245, %s20, 1
        %s247 = smul.addr %s246, 57
        %s248 = smul.addr %s247, 4
        %s249 = scalar_lea.vmem %s0, %s248
        %v251 = vld [vmem:[%s249] sm:$0xf]
        %v252 = vld [vmem:[%s249 + $0x4] sm:$0xf]
        %v253 = vld [vmem:[%s249 + $0x8] sm:$0xf]
        %v254 = vld [vmem:[%s249 + $0xc] sm:$0xf]
        %v255 = vld [vmem:[%s249 + $0x10] sm:$0xf]
        %v256 = vld [vmem:[%s249 + $0x14] sm:$0xf]
        %v257 = vld [vmem:[%s249 + $0x18] sm:$0xf]
        %v258 = vld [vmem:[%s249 + $0x1c] sm:$0xf]
        %v259 = vld [vmem:[%s249 + $0x20] sm:$0xf]
        %v260 = vld [vmem:[%s249 + $0x24] sm:$0xf]
        %v261 = vld [vmem:[%s249 + $0x28] sm:$0xf]
        %v262 = vld [vmem:[%s249 + $0x2c] sm:$0xf]
        %v263 = vld [vmem:[%s249 + $0x30] sm:$0xf]
        %v264 = vld [vmem:[%s249 + $0x34] sm:$0xf]
        %v265 = vld [vmem:[%s249 + $0x38] sm:$0xf]
        %v266 = vld [vmem:[%s249 + $0x3c] sm:$0xf]
        %v267 = vld [vmem:[%s249 + $0x40] sm:$0xf]
        %v268 = vld [vmem:[%s249 + $0x44] sm:$0xf]
        %v269 = vld [vmem:[%s249 + $0x48] sm:$0xf]
        %v270 = vld [vmem:[%s249 + $0x4c] sm:$0xf]
        %v271 = vld [vmem:[%s249 + $0x50] sm:$0xf]
        %v272 = vld [vmem:[%s249 + $0x54] sm:$0xf]
        %v273 = vld [vmem:[%s249 + $0x58] sm:$0xf]
        %v274 = vld [vmem:[%s249 + $0x5c] sm:$0xf]
        %v275 = vld [vmem:[%s249 + $0x60] sm:$0xf]
        %v276 = vld [vmem:[%s249 + $0x64] sm:$0xf]
        %v277 = vld [vmem:[%s249 + $0x68] sm:$0xf]
        %v278 = vld [vmem:[%s249 + $0x6c] sm:$0xf]
        %v279 = vld [vmem:[%s249 + $0x70] sm:$0xf]
        %v280 = vld [vmem:[%s249 + $0x74] sm:$0xf]
        %v281 = vld [vmem:[%s249 + $0x78] sm:$0xf]
        %v282 = vld [vmem:[%s249 + $0x7c] sm:$0xf]
        %v283 = vld [vmem:[%s249 + $0x80] sm:$0xf]
        %v284 = vld [vmem:[%s249 + $0x84] sm:$0xf]
        %v285 = vld [vmem:[%s249 + $0x88] sm:$0xf]
        %v286 = vld [vmem:[%s249 + $0x8c] sm:$0xf]
        %v287 = vld [vmem:[%s249 + $0x90] sm:$0xf]
        %v288 = vld [vmem:[%s249 + $0x94] sm:$0xf]
        %v289 = vld [vmem:[%s249 + $0x98] sm:$0xf]
        %v290 = vld [vmem:[%s249 + $0x9c] sm:$0xf]
        %v291 = vld [vmem:[%s249 + $0xa0] sm:$0xf]
        %v292 = vld [vmem:[%s249 + $0xa4] sm:$0xf]
        %v293 = vld [vmem:[%s249 + $0xa8] sm:$0xf]
        %v294 = vld [vmem:[%s249 + $0xac] sm:$0xf]
        %v295 = vld [vmem:[%s249 + $0xb0] sm:$0xf]
        %v296 = vld [vmem:[%s249 + $0xb4] sm:$0xf]
        %v297 = vld [vmem:[%s249 + $0xb8] sm:$0xf]
        %v298 = vld [vmem:[%s249 + $0xbc] sm:$0xf]
        %v299 = vld [vmem:[%s249 + $0xc0] sm:$0xf]
        %v300 = vld [vmem:[%s249 + $0xc4] sm:$0xf]
        %v301 = vld [vmem:[%s249 + $0xc8] sm:$0xf]
        %v302 = vld [vmem:[%s249 + $0xcc] sm:$0xf]
        %v303 = vld [vmem:[%s249 + $0xd0] sm:$0xf]
        %v304 = vld [vmem:[%s249 + $0xd4] sm:$0xf]
        %v305 = vld [vmem:[%s1] sm:$0xff]
        %v306 = vld [vmem:[%s1 + $0x8] sm:$0xf]
        %v307 = vld [vmem:[%s1 + $0xc] sm:$0xff]
        %v308 = vld [vmem:[%s1 + $0x14] sm:$0xf]
        %v309 = vld [vmem:[%s1 + $0x18] sm:$0xff]
        %v310 = vld [vmem:[%s1 + $0x20] sm:$0xf]
        %v311 = vld [vmem:[%s1 + $0x24] sm:$0xff]
        %v312 = vld [vmem:[%s1 + $0x2c] sm:$0xf]
        %v313 = vld [vmem:[%s1 + $0x30] sm:$0xff]
        %v314 = vld [vmem:[%s1 + $0x38] sm:$0xf]
        %v315 = vld [vmem:[%s1 + $0x3c] sm:$0xff]
        %v316 = vld [vmem:[%s1 + $0x44] sm:$0xf]
        %v317 = vld [vmem:[%s1 + $0x48] sm:$0xff]
        %v318 = vld [vmem:[%s1 + $0x50] sm:$0xf]
        %v319 = vld [vmem:[%s1 + $0x54] sm:$0xff]
        %v320 = vld [vmem:[%s1 + $0x5c] sm:$0xf]
        %v321 = vld [vmem:[%s1 + $0x60] sm:$0xff]
        %v322 = vld [vmem:[%s1 + $0x68] sm:$0xf]
        %v323 = vld [vmem:[%s1 + $0x6c] sm:$0xff]
        %v324 = vld [vmem:[%s1 + $0x74] sm:$0xf]
        %v325 = vld [vmem:[%s1 + $0x78] sm:$0xff]
        %v326 = vld [vmem:[%s1 + $0x80] sm:$0xf]
        %v327 = vld [vmem:[%s1 + $0x84] sm:$0xff]
        %v328 = vld [vmem:[%s1 + $0x8c] sm:$0xf]
        %v329 = vld [vmem:[%s1 + $0x90] sm:$0xff]
        %v330 = vld [vmem:[%s1 + $0x98] sm:$0xf]
        %v331 = vld [vmem:[%s1 + $0x9c] sm:$0xff]
        %v332 = vld [vmem:[%s1 + $0xa4] sm:$0xf]
        %v333 = vld [vmem:[%s1 + $0xa8] sm:$0xff]
        %v334 = vld [vmem:[%s1 + $0xb0] sm:$0xf]
        %v335 = vld [vmem:[%s1 + $0xb4] sm:$0xff]
        %v336 = vld [vmem:[%s1 + $0xbc] sm:$0xf]
        %v337 = vld [vmem:[%s249 + $0xd8] sm:$0x1]
        %s338 = scalar_lea.vmem %s1, 192
        %v339 = vld [vmem:[%s338] sm:$0xff]
        %v340 = vld [vmem:[%s338 + $0x8] sm:$0xf]
        %v341 = vld [vmem:[%s338 + $0xc] sm:$0xff]
        %v342 = vld [vmem:[%s338 + $0x14] sm:$0xf]
        %v343 = vld [vmem:[%s338 + $0x18] sm:$0xff]
        %v344 = vld [vmem:[%s338 + $0x20] sm:$0xf]
        %v345 = vld [vmem:[%s338 + $0x24] sm:$0xff]
        %v346 = vld [vmem:[%s338 + $0x2c] sm:$0xf]
        %v347 = vld [vmem:[%s338 + $0x30] sm:$0xff]
        %v348 = vld [vmem:[%s338 + $0x38] sm:$0xf]
        %v349 = vld [vmem:[%s338 + $0x3c] sm:$0xff]
        %v350 = vld [vmem:[%s338 + $0x44] sm:$0xf]
        %v351 = vld [vmem:[%s338 + $0x48] sm:$0xff]
        %v352 = vld [vmem:[%s338 + $0x50] sm:$0xf]
        %v353 = vld [vmem:[%s338 + $0x54] sm:$0xff]
        %v354 = vld [vmem:[%s338 + $0x5c] sm:$0xf]
        %v355 = vld [vmem:[%s338 + $0x60] sm:$0xff]
        %v356 = vld [vmem:[%s338 + $0x68] sm:$0xf]
        %v357 = vld [vmem:[%s338 + $0x6c] sm:$0xff]
        %v358 = vld [vmem:[%s338 + $0x74] sm:$0xf]
        %v359 = vld [vmem:[%s338 + $0x78] sm:$0xff]
        %v360 = vld [vmem:[%s338 + $0x80] sm:$0xf]
        %v361 = vld [vmem:[%s338 + $0x84] sm:$0xff]
        %v362 = vld [vmem:[%s338 + $0x8c] sm:$0xf]
        %v363 = vld [vmem:[%s338 + $0x90] sm:$0xff]
        %v364 = vld [vmem:[%s338 + $0x98] sm:$0xf]
        %v365 = vld [vmem:[%s338 + $0x9c] sm:$0xff]
        %v366 = vld [vmem:[%s338 + $0xa4] sm:$0xf]
        %v367 = vld [vmem:[%s338 + $0xa8] sm:$0xff]
        %v368 = vld [vmem:[%s338 + $0xb0] sm:$0xf]
        %v369 = vld [vmem:[%s338 + $0xb4] sm:$0xff]
        %v370 = vld [vmem:[%s338 + $0xbc] sm:$0xf]
        %v426 = vunpack.c.l.b16 %v251
        %v427 = vunpack.c.l.b16 %v252
        %v428 = vunpack.c.l.b16 %v253
        %v429 = vunpack.c.l.b16 %v254
        %v430 = vunpack.c.l.b16 %v255
        %v431 = vunpack.c.l.b16 %v256
        %v432 = vunpack.c.l.b16 %v257
        %v433 = vunpack.c.l.b16 %v258
        %v434 = vunpack.c.l.b16 %v259
        %v435 = vunpack.c.l.b16 %v260
        %v436 = vunpack.c.l.b16 %v261
        %v437 = vunpack.c.l.b16 %v262
        %v438 = vunpack.c.l.b16 %v263
        %v439 = vunpack.c.l.b16 %v264
        %v440 = vunpack.c.l.b16 %v265
        %v441 = vunpack.c.l.b16 %v266
        %v442 = vunpack.c.l.b16 %v267
        %v443 = vunpack.c.l.b16 %v268
        %v444 = vunpack.c.l.b16 %v269
        %v445 = vunpack.c.l.b16 %v270
        %v446 = vunpack.c.l.b16 %v271
        %v447 = vunpack.c.l.b16 %v272
        %v448 = vunpack.c.l.b16 %v273
        %v449 = vunpack.c.l.b16 %v274
        %v450 = vunpack.c.l.b16 %v275
        %v451 = vunpack.c.l.b16 %v276
        %v452 = vunpack.c.l.b16 %v277
        %v453 = vunpack.c.l.b16 %v278
        %v454 = vunpack.c.l.b16 %v279
        %v455 = vunpack.c.l.b16 %v280
        %v456 = vunpack.c.l.b16 %v281
        %v457 = vunpack.c.l.b16 %v282
        %v458 = vunpack.c.l.b16 %v283
        %v459 = vunpack.c.l.b16 %v284
        %v460 = vunpack.c.l.b16 %v285
        %v461 = vunpack.c.l.b16 %v286
        %v462 = vunpack.c.l.b16 %v287
        %v463 = vunpack.c.l.b16 %v288
        %v464 = vunpack.c.l.b16 %v289
        %v465 = vunpack.c.l.b16 %v290
        %v466 = vunpack.c.l.b16 %v291
        %v467 = vunpack.c.l.b16 %v292
        %v468 = vunpack.c.l.b16 %v293
        %v469 = vunpack.c.l.b16 %v294
        %v470 = vunpack.c.l.b16 %v295
        %v471 = vunpack.c.l.b16 %v296
        %v472 = vunpack.c.l.b16 %v297
        %v473 = vunpack.c.l.b16 %v298
        %v474 = vunpack.c.l.b16 %v299
        %v475 = vunpack.c.l.b16 %v300
        %v476 = vunpack.c.l.b16 %v301
        %v477 = vunpack.c.l.b16 %v302
        %v478 = vunpack.c.l.b16 %v303
        %v479 = vunpack.c.l.b16 %v304
        %v480 = vunpack.c.l.b16 %v337
        %v481 = vpack.c.b16 %v427, %v426
        %v482 = vpack.c.b16 %v429, %v428
        %v483 = vpack.c.b16 %v431, %v430
        %v484 = vpack.c.b16 %v433, %v432
        %v485 = vpack.c.b16 %v435, %v434
        %v486 = vpack.c.b16 %v437, %v436
        %v487 = vpack.c.b16 %v439, %v438
        %v488 = vpack.c.b16 %v441, %v440
        %v489 = vpack.c.b16 %v443, %v442
        %v490 = vpack.c.b16 %v445, %v444
        %v491 = vpack.c.b16 %v447, %v446
        %v492 = vpack.c.b16 %v449, %v448
        %v493 = vpack.c.b16 %v451, %v450
        %v494 = vpack.c.b16 %v453, %v452
        %v495 = vpack.c.b16 %v455, %v454
        %v496 = vpack.c.b16 %v457, %v456
        %v497 = vpack.c.b16 %v459, %v458
        %v498 = vpack.c.b16 %v461, %v460
        %v499 = vpack.c.b16 %v463, %v462
        %v500 = vpack.c.b16 %v465, %v464
        %v501 = vpack.c.b16 %v467, %v466
        %v502 = vpack.c.b16 %v469, %v468
        %v503 = vpack.c.b16 %v471, %v470
        %v504 = vpack.c.b16 %v473, %v472
        %v505 = vpack.c.b16 %v475, %v474
        %v506 = vpack.c.b16 %v477, %v476
        %v507 = vpack.c.b16 %v479, %v478
        %v508 = vpack.c.b16 %v480, %v480
        %vm509 = vsmask.f32 7424
        %v511 = vshrl.u32 %v481, 16
        %v513 = vshll.u32 %v481, 16
        %v515 = vrot.slane %v513, 1
        %v516 = vor.u32 %v511, %v515
        %v518 = vshll.u32 %v482, 16
        %v520 = vrot.slane %v518, 1
        %v521 = vsel %vm509, %v516, %v520
        %v522 = vshrl.u32 %v482, 16
        %v524 = vor.u32 %v522, %v520
        %v526 = vshll.u32 %v483, 16
        %v528 = vrot.slane %v526, 1
        %v529 = vsel %vm509, %v524, %v528
        %v530 = vshrl.u32 %v483, 16
        %v532 = vor.u32 %v530, %v528
        %v534 = vshll.u32 %v484, 16
        %v536 = vrot.slane %v534, 1
        %v537 = vsel %vm509, %v532, %v536
        %v538 = vshrl.u32 %v484, 16
        %v540 = vor.u32 %v538, %v536
        %v542 = vshll.u32 %v485, 16
        %v544 = vrot.slane %v542, 1
        %v545 = vsel %vm509, %v540, %v544
        %v546 = vshrl.u32 %v485, 16
        %v548 = vor.u32 %v546, %v544
        %v550 = vshll.u32 %v486, 16
        %v552 = vrot.slane %v550, 1
        %v553 = vsel %vm509, %v548, %v552
        %v554 = vshrl.u32 %v486, 16
        %v556 = vor.u32 %v554, %v552
        %v558 = vshll.u32 %v487, 16
        %v560 = vrot.slane %v558, 1
        %v561 = vsel %vm509, %v556, %v560
        %v562 = vshrl.u32 %v487, 16
        %v564 = vor.u32 %v562, %v560
        %v566 = vshll.u32 %v488, 16
        %v568 = vrot.slane %v566, 1
        %v569 = vsel %vm509, %v564, %v568
        %v570 = vshrl.u32 %v488, 16
        %v572 = vor.u32 %v570, %v568
        %v574 = vshll.u32 %v489, 16
        %v576 = vrot.slane %v574, 1
        %v577 = vsel %vm509, %v572, %v576
        %v578 = vshrl.u32 %v489, 16
        %v580 = vor.u32 %v578, %v576
        %v582 = vshll.u32 %v490, 16
        %v584 = vrot.slane %v582, 1
        %v585 = vsel %vm509, %v580, %v584
        %v586 = vshrl.u32 %v490, 16
        %v588 = vor.u32 %v586, %v584
        %v590 = vshll.u32 %v491, 16
        %v592 = vrot.slane %v590, 1
        %v593 = vsel %vm509, %v588, %v592
        %v594 = vshrl.u32 %v491, 16
        %v596 = vor.u32 %v594, %v592
        %v598 = vshll.u32 %v492, 16
        %v600 = vrot.slane %v598, 1
        %v601 = vsel %vm509, %v596, %v600
        %v602 = vshrl.u32 %v492, 16
        %v604 = vor.u32 %v602, %v600
        %v606 = vshll.u32 %v493, 16
        %v608 = vrot.slane %v606, 1
        %v609 = vsel %vm509, %v604, %v608
        %v610 = vshrl.u32 %v493, 16
        %v612 = vor.u32 %v610, %v608
        %v614 = vshll.u32 %v494, 16
        %v616 = vrot.slane %v614, 1
        %v617 = vsel %vm509, %v612, %v616
        %v618 = vshrl.u32 %v494, 16
        %v620 = vor.u32 %v618, %v616
        %v622 = vshll.u32 %v495, 16
        %v624 = vrot.slane %v622, 1
        %v625 = vsel %vm509, %v620, %v624
        %v626 = vshrl.u32 %v495, 16
        %v628 = vor.u32 %v626, %v624
        %v630 = vshll.u32 %v496, 16
        %v632 = vrot.slane %v630, 1
        %v633 = vsel %vm509, %v628, %v632
        %v634 = vshrl.u32 %v496, 16
        %v636 = vor.u32 %v634, %v632
        %v638 = vshll.u32 %v497, 16
        %v640 = vrot.slane %v638, 1
        %v641 = vsel %vm509, %v636, %v640
        %v642 = vshrl.u32 %v497, 16
        %v644 = vor.u32 %v642, %v640
        %v646 = vshll.u32 %v498, 16
        %v648 = vrot.slane %v646, 1
        %v649 = vsel %vm509, %v644, %v648
        %v650 = vshrl.u32 %v498, 16
        %v652 = vor.u32 %v650, %v648
        %v654 = vshll.u32 %v499, 16
        %v656 = vrot.slane %v654, 1
        %v657 = vsel %vm509, %v652, %v656
        %v658 = vshrl.u32 %v499, 16
        %v660 = vor.u32 %v658, %v656
        %v662 = vshll.u32 %v500, 16
        %v664 = vrot.slane %v662, 1
        %v665 = vsel %vm509, %v660, %v664
        %v666 = vshrl.u32 %v500, 16
        %v668 = vor.u32 %v666, %v664
        %v670 = vshll.u32 %v501, 16
        %v672 = vrot.slane %v670, 1
        %v673 = vsel %vm509, %v668, %v672
        %v674 = vshrl.u32 %v501, 16
        %v676 = vor.u32 %v674, %v672
        %v678 = vshll.u32 %v502, 16
        %v680 = vrot.slane %v678, 1
        %v681 = vsel %vm509, %v676, %v680
        %v682 = vshrl.u32 %v502, 16
        %v684 = vor.u32 %v682, %v680
        %v686 = vshll.u32 %v503, 16
        %v688 = vrot.slane %v686, 1
        %v689 = vsel %vm509, %v684, %v688
        %v690 = vshrl.u32 %v503, 16
        %v692 = vor.u32 %v690, %v688
        %v694 = vshll.u32 %v504, 16
        %v696 = vrot.slane %v694, 1
        %v697 = vsel %vm509, %v692, %v696
        %v698 = vshrl.u32 %v504, 16
        %v700 = vor.u32 %v698, %v696
        %v702 = vshll.u32 %v505, 16
        %v704 = vrot.slane %v702, 1
        %v705 = vsel %vm509, %v700, %v704
        %v706 = vshrl.u32 %v505, 16
        %v708 = vor.u32 %v706, %v704
        %v710 = vshll.u32 %v506, 16
        %v712 = vrot.slane %v710, 1
        %v713 = vsel %vm509, %v708, %v712
        %v714 = vshrl.u32 %v506, 16
        %v716 = vor.u32 %v714, %v712
        %v718 = vshll.u32 %v507, 16
        %v720 = vrot.slane %v718, 1
        %v721 = vsel %vm509, %v716, %v720
        %v722 = vshrl.u32 %v507, 16
        %v724 = vor.u32 %v722, %v720
        %v726 = vshll.u32 %v508, 16
        %v728 = vrot.slane %v726, 1
        %v729 = vsel %vm509, %v724, %v728
        %v789 = vunpack.c.l.b16 %v339
        %v790 = vunpack.c.h.b16 %v339
        %v791 = vunpack.c.l.b16 %v340
        %v792 = vunpack.c.l.b16 %v341
        %v793 = vunpack.c.h.b16 %v341
        %v794 = vunpack.c.l.b16 %v342
        %v795 = vunpack.c.l.b16 %v343
        %v796 = vunpack.c.h.b16 %v343
        %v797 = vunpack.c.l.b16 %v344
        %v798 = vunpack.c.l.b16 %v345
        %v799 = vunpack.c.h.b16 %v345
        %v800 = vunpack.c.l.b16 %v346
        %v801 = vunpack.c.l.b16 %v347
        %v802 = vunpack.c.h.b16 %v347
        %v803 = vunpack.c.l.b16 %v348
        %v804 = vunpack.c.l.b16 %v349
        %v805 = vunpack.c.h.b16 %v349
        %v806 = vunpack.c.l.b16 %v350
        %v807 = vunpack.c.l.b16 %v351
        %v808 = vunpack.c.h.b16 %v351
        %v809 = vunpack.c.l.b16 %v352
        %v810 = vunpack.c.l.b16 %v353
        %v811 = vunpack.c.h.b16 %v353
        %v812 = vunpack.c.l.b16 %v354
        %v813 = vunpack.c.l.b16 %v355
        %v814 = vunpack.c.h.b16 %v355
        %v815 = vunpack.c.l.b16 %v356
        %v816 = vunpack.c.l.b16 %v357
        %v817 = vunpack.c.h.b16 %v357
        %v818 = vunpack.c.l.b16 %v358
        %v819 = vunpack.c.l.b16 %v359
        %v820 = vunpack.c.h.b16 %v359
        %v821 = vunpack.c.l.b16 %v360
        %v822 = vunpack.c.l.b16 %v361
        %v823 = vunpack.c.h.b16 %v361
        %v824 = vunpack.c.l.b16 %v362
        %v825 = vunpack.c.l.b16 %v363
        %v826 = vunpack.c.h.b16 %v363
        %v827 = vunpack.c.l.b16 %v364
        %v828 = vunpack.c.l.b16 %v365
        %v829 = vunpack.c.h.b16 %v365
        %v830 = vunpack.c.l.b16 %v366
        %v831 = vunpack.c.l.b16 %v367
        %v832 = vunpack.c.h.b16 %v367
        %v833 = vunpack.c.l.b16 %v368
        %v834 = vunpack.c.l.b16 %v369
        %v835 = vunpack.c.h.b16 %v369
        %v836 = vunpack.c.l.b16 %v370
        %v837 = vpack.c.b16 %v792, %v789
        %v838 = vpack.c.b16 %v793, %v790
        %v839 = vpack.c.b16 %v794, %v791
        %v840 = vpack.c.b16 %v798, %v795
        %v841 = vpack.c.b16 %v799, %v796
        %v842 = vpack.c.b16 %v800, %v797
        %v843 = vpack.c.b16 %v804, %v801
        %v844 = vpack.c.b16 %v805, %v802
        %v845 = vpack.c.b16 %v806, %v803
        %v846 = vpack.c.b16 %v810, %v807
        %v847 = vpack.c.b16 %v811, %v808
        %v848 = vpack.c.b16 %v812, %v809
        %v849 = vpack.c.b16 %v816, %v813
        %v850 = vpack.c.b16 %v817, %v814
        %v851 = vpack.c.b16 %v818, %v815
        %v852 = vpack.c.b16 %v822, %v819
        %v853 = vpack.c.b16 %v823, %v820
        %v854 = vpack.c.b16 %v824, %v821
        %v855 = vpack.c.b16 %v828, %v825
        %v856 = vpack.c.b16 %v829, %v826
        %v857 = vpack.c.b16 %v830, %v827
        %v858 = vpack.c.b16 %v834, %v831
        %v859 = vpack.c.b16 %v835, %v832
        %v860 = vpack.c.b16 %v836, %v833
        %885 = vmatpush.bf16.msra.mxu0 %v858
        %886 = vmatpush.bf16.msra.mxu0 %v855
        %887 = vmatpush.bf16.msra.mxu0 %v852
        %888 = vmatpush.bf16.msra.mxu0 %v849
        %889 = vmatpush.bf16.msra.mxu0 %v846
        %890 = vmatpush.bf16.msra.mxu0 %v843
        %891 = vmatpush.bf16.msra.mxu0 %v840
        %892 = vmatpush.bf16.msra.mxu0 %v837
        %893 = vmatmul.bf16.gmra.mxu0 %v521
        %v894 = vpop.f32.mrf.mxu0
        %v895 = vadd.f32 0.0, %v894
        %v896 = vpop.f32.mrf.mxu0
        %v897 = vadd.f32 0.0, %v896
        %898 = vmatmul.bf16.gmra.mxu0 %v529
        %v899 = vpop.f32.mrf.mxu0
        %v900 = vadd.f32 0.0, %v899
        %v901 = vpop.f32.mrf.mxu0
        %v902 = vadd.f32 0.0, %v901
        %903 = vmatmul.bf16.gmra.mxu0 %v537
        %v904 = vpop.f32.mrf.mxu0
        %v905 = vadd.f32 0.0, %v904
        %v906 = vpop.f32.mrf.mxu0
        %v907 = vadd.f32 0.0, %v906
        %908 = vmatmul.bf16.gmra.mxu0 %v545
        %v909 = vpop.f32.mrf.mxu0
        %v910 = vadd.f32 0.0, %v909
        %v911 = vpop.f32.mrf.mxu0
        %v912 = vadd.f32 0.0, %v911
        %913 = vmatmul.bf16.gmra.mxu0 %v553
        %v914 = vpop.f32.mrf.mxu0
        %v915 = vadd.f32 0.0, %v914
        %v916 = vpop.f32.mrf.mxu0
        %v917 = vadd.f32 0.0, %v916
        %918 = vmatmul.bf16.gmra.mxu0 %v561
        %v919 = vpop.f32.mrf.mxu0
        %v920 = vadd.f32 0.0, %v919
        %v921 = vpop.f32.mrf.mxu0
        %v922 = vadd.f32 0.0, %v921
        %923 = vmatmul.bf16.gmra.mxu0 %v569
        %v924 = vpop.f32.mrf.mxu0
        %v925 = vadd.f32 0.0, %v924
        %v926 = vpop.f32.mrf.mxu0
        %v927 = vadd.f32 0.0, %v926
        %928 = vmatmul.bf16.gmra.mxu0 %v577
        %v929 = vpop.f32.mrf.mxu0
        %v930 = vadd.f32 0.0, %v929
        %v931 = vpop.f32.mrf.mxu0
        %v932 = vadd.f32 0.0, %v931
        %933 = vmatmul.bf16.gmra.mxu0 %v585
        %v934 = vpop.f32.mrf.mxu0
        %v935 = vadd.f32 0.0, %v934
        %v936 = vpop.f32.mrf.mxu0
        %v937 = vadd.f32 0.0, %v936
        %938 = vmatmul.bf16.gmra.mxu0 %v593
        %v939 = vpop.f32.mrf.mxu0
        %v940 = vadd.f32 0.0, %v939
        %v941 = vpop.f32.mrf.mxu0
        %v942 = vadd.f32 0.0, %v941
        %943 = vmatmul.bf16.gmra.mxu0 %v601
        %v944 = vpop.f32.mrf.mxu0
        %v945 = vadd.f32 0.0, %v944
        %v946 = vpop.f32.mrf.mxu0
        %v947 = vadd.f32 0.0, %v946
        %948 = vmatmul.bf16.gmra.mxu0 %v609
        %v949 = vpop.f32.mrf.mxu0
        %v950 = vadd.f32 0.0, %v949
        %v951 = vpop.f32.mrf.mxu0
        %v952 = vadd.f32 0.0, %v951
        %953 = vmatmul.bf16.gmra.mxu0 %v617
        %v954 = vpop.f32.mrf.mxu0
        %v955 = vadd.f32 0.0, %v954
        %v956 = vpop.f32.mrf.mxu0
        %v957 = vadd.f32 0.0, %v956
        %958 = vmatmul.bf16.gmra.mxu0 %v625
        %v959 = vpop.f32.mrf.mxu0
        %v960 = vadd.f32 0.0, %v959
        %v961 = vpop.f32.mrf.mxu0
        %v962 = vadd.f32 0.0, %v961
        %963 = vmatmul.bf16.gmra.mxu0 %v633
        %v964 = vpop.f32.mrf.mxu0
        %v965 = vadd.f32 0.0, %v964
        %v966 = vpop.f32.mrf.mxu0
        %v967 = vadd.f32 0.0, %v966
        %968 = vmatmul.bf16.gmra.mxu0 %v641
        %v969 = vpop.f32.mrf.mxu0
        %v970 = vadd.f32 0.0, %v969
        %v971 = vpop.f32.mrf.mxu0
        %v972 = vadd.f32 0.0, %v971
        %973 = vmatmul.bf16.gmra.mxu0 %v649
        %v974 = vpop.f32.mrf.mxu0
        %v975 = vadd.f32 0.0, %v974
        %v976 = vpop.f32.mrf.mxu0
        %v977 = vadd.f32 0.0, %v976
        %978 = vmatmul.bf16.gmra.mxu0 %v657
        %v979 = vpop.f32.mrf.mxu0
        %v980 = vadd.f32 0.0, %v979
        %v981 = vpop.f32.mrf.mxu0
        %v982 = vadd.f32 0.0, %v981
        %983 = vmatmul.bf16.gmra.mxu0 %v665
        %v984 = vpop.f32.mrf.mxu0
        %v985 = vadd.f32 0.0, %v984
        %v986 = vpop.f32.mrf.mxu0
        %v987 = vadd.f32 0.0, %v986
        %988 = vmatmul.bf16.gmra.mxu0 %v673
        %v989 = vpop.f32.mrf.mxu0
        %v990 = vadd.f32 0.0, %v989
        %v991 = vpop.f32.mrf.mxu0
        %v992 = vadd.f32 0.0, %v991
        %993 = vmatmul.bf16.gmra.mxu0 %v681
        %v994 = vpop.f32.mrf.mxu0
        %v995 = vadd.f32 0.0, %v994
        %v996 = vpop.f32.mrf.mxu0
        %v997 = vadd.f32 0.0, %v996
        %998 = vmatmul.bf16.gmra.mxu0 %v689
        %v999 = vpop.f32.mrf.mxu0
        %v1000 = vadd.f32 0.0, %v999
        %v1001 = vpop.f32.mrf.mxu0
        %v1002 = vadd.f32 0.0, %v1001
        %1003 = vmatmul.bf16.gmra.mxu0 %v697
        %v1004 = vpop.f32.mrf.mxu0
        %v1005 = vadd.f32 0.0, %v1004
        %v1006 = vpop.f32.mrf.mxu0
        %v1007 = vadd.f32 0.0, %v1006
        %1008 = vmatmul.bf16.gmra.mxu0 %v705
        %v1009 = vpop.f32.mrf.mxu0
        %v1010 = vadd.f32 0.0, %v1009
        %v1011 = vpop.f32.mrf.mxu0
        %v1012 = vadd.f32 0.0, %v1011
        %1013 = vmatmul.bf16.gmra.mxu0 %v713
        %v1014 = vpop.f32.mrf.mxu0
        %v1015 = vpop.f32.mrf.mxu0
        %1016 = vmatmul.bf16.gmra.mxu0 %v721
        %v1017 = vpop.f32.mrf.mxu0
        %v1018 = vpop.f32.mrf.mxu0
        %1019 = vmatmul.bf16.gmra.mxu0 %v729
        %v1020 = vpop.f32.mrf.mxu0
        %v1021 = vpop.f32.mrf.mxu0
        %1022 = vdwg.mxu0
        %1023 = vmatpush.bf16.msra.mxu0 %v859
        %1024 = vmatpush.bf16.msra.mxu0 %v856
        %1025 = vmatpush.bf16.msra.mxu0 %v853
        %1026 = vmatpush.bf16.msra.mxu0 %v850
        %1027 = vmatpush.bf16.msra.mxu0 %v847
        %1028 = vmatpush.bf16.msra.mxu0 %v844
        %1029 = vmatpush.bf16.msra.mxu0 %v841
        %1030 = vmatpush.bf16.msra.mxu0 %v838
        %1031 = vmatmul.bf16.gmra.mxu0 %v521
        %v1032 = vpop.f32.mrf.mxu0
        %v1033 = vpop.f32.mrf.mxu0
        %1034 = vmatmul.bf16.gmra.mxu0 %v529
        %v1035 = vpop.f32.mrf.mxu0
        %v1036 = vpop.f32.mrf.mxu0
        %v1037 = vadd.f32 0.0, %v1036
        %1038 = vmatmul.bf16.gmra.mxu0 %v537
        %v1039 = vpop.f32.mrf.mxu0
        %v1040 = vadd.f32 0.0, %v1039
        %v1041 = vpop.f32.mrf.mxu0
        %v1042 = vadd.f32 0.0, %v1041
        %1043 = vmatmul.bf16.gmra.mxu0 %v545
        %v1044 = vpop.f32.mrf.mxu0
        %v1045 = vadd.f32 0.0, %v1044
        %v1046 = vpop.f32.mrf.mxu0
        %v1047 = vadd.f32 0.0, %v1046
        %1048 = vmatmul.bf16.gmra.mxu0 %v553
        %v1049 = vpop.f32.mrf.mxu0
        %v1050 = vadd.f32 0.0, %v1049
        %v1051 = vpop.f32.mrf.mxu0
        %v1052 = vadd.f32 0.0, %v1051
        %1053 = vmatmul.bf16.gmra.mxu0 %v561
        %v1054 = vpop.f32.mrf.mxu0
        %v1055 = vadd.f32 0.0, %v1054
        %v1056 = vpop.f32.mrf.mxu0
        %v1057 = vadd.f32 0.0, %v1056
        %1058 = vmatmul.bf16.gmra.mxu0 %v569
        %v1059 = vpop.f32.mrf.mxu0
        %v1060 = vadd.f32 0.0, %v1059
        %v1061 = vpop.f32.mrf.mxu0
        %v1062 = vadd.f32 0.0, %v1061
        %1063 = vmatmul.bf16.gmra.mxu0 %v577
        %v1064 = vpop.f32.mrf.mxu0
        %v1065 = vadd.f32 0.0, %v1064
        %v1066 = vpop.f32.mrf.mxu0
        %v1067 = vadd.f32 0.0, %v1066
        %1068 = vmatmul.bf16.gmra.mxu0 %v585
        %v1069 = vpop.f32.mrf.mxu0
        %v1070 = vadd.f32 0.0, %v1069
        %v1071 = vpop.f32.mrf.mxu0
        %v1072 = vadd.f32 0.0, %v1071
        %1073 = vmatmul.bf16.gmra.mxu0 %v593
        %v1074 = vpop.f32.mrf.mxu0
        %v1075 = vadd.f32 0.0, %v1074
        %v1076 = vpop.f32.mrf.mxu0
        %v1077 = vadd.f32 0.0, %v1076
        %1078 = vmatmul.bf16.gmra.mxu0 %v601
        %v1079 = vpop.f32.mrf.mxu0
        %v1080 = vadd.f32 0.0, %v1079
        %v1081 = vpop.f32.mrf.mxu0
        %v1082 = vadd.f32 0.0, %v1081
        %1083 = vmatmul.bf16.gmra.mxu0 %v609
        %v1084 = vpop.f32.mrf.mxu0
        %v1085 = vadd.f32 0.0, %v1084
        %v1086 = vpop.f32.mrf.mxu0
        %v1087 = vadd.f32 0.0, %v1086
        %1088 = vmatmul.bf16.gmra.mxu0 %v617
        %v1089 = vpop.f32.mrf.mxu0
        %v1090 = vadd.f32 0.0, %v1089
        %v1091 = vpop.f32.mrf.mxu0
        %v1092 = vadd.f32 0.0, %v1091
        %1093 = vmatmul.bf16.gmra.mxu0 %v625
        %v1094 = vpop.f32.mrf.mxu0
        %v1095 = vadd.f32 0.0, %v1094
        %v1096 = vpop.f32.mrf.mxu0
        %v1097 = vadd.f32 0.0, %v1096
        %1098 = vmatmul.bf16.gmra.mxu0 %v633
        %v1099 = vpop.f32.mrf.mxu0
        %v1100 = vadd.f32 0.0, %v1099
        %v1101 = vpop.f32.mrf.mxu0
        %v1102 = vadd.f32 0.0, %v1101
        %1103 = vmatmul.bf16.gmra.mxu0 %v641
        %v1104 = vpop.f32.mrf.mxu0
        %v1105 = vadd.f32 0.0, %v1104
        %v1106 = vpop.f32.mrf.mxu0
        %v1107 = vadd.f32 0.0, %v1106
        %1108 = vmatmul.bf16.gmra.mxu0 %v649
        %v1109 = vpop.f32.mrf.mxu0
        %v1110 = vadd.f32 0.0, %v1109
        %v1111 = vpop.f32.mrf.mxu0
        %v1112 = vadd.f32 0.0, %v1111
        %1113 = vmatmul.bf16.gmra.mxu0 %v657
        %v1114 = vpop.f32.mrf.mxu0
        %v1115 = vadd.f32 0.0, %v1114
        %v1116 = vpop.f32.mrf.mxu0
        %v1117 = vadd.f32 0.0, %v1116
        %1118 = vmatmul.bf16.gmra.mxu0 %v665
        %v1119 = vpop.f32.mrf.mxu0
        %v1120 = vadd.f32 0.0, %v1119
        %v1121 = vpop.f32.mrf.mxu0
        %v1122 = vadd.f32 0.0, %v1121
        %1123 = vmatmul.bf16.gmra.mxu0 %v673
        %v1124 = vpop.f32.mrf.mxu0
        %v1125 = vadd.f32 0.0, %v1124
        %v1126 = vpop.f32.mrf.mxu0
        %v1127 = vadd.f32 0.0, %v1126
        %1128 = vmatmul.bf16.gmra.mxu0 %v681
        %v1129 = vpop.f32.mrf.mxu0
        %v1130 = vadd.f32 0.0, %v1129
        %v1131 = vpop.f32.mrf.mxu0
        %v1132 = vadd.f32 0.0, %v1131
        %1133 = vmatmul.bf16.gmra.mxu0 %v689
        %v1134 = vpop.f32.mrf.mxu0
        %v1135 = vadd.f32 0.0, %v1134
        %v1136 = vpop.f32.mrf.mxu0
        %v1137 = vadd.f32 0.0, %v1136
        %1138 = vmatmul.bf16.gmra.mxu0 %v697
        %v1139 = vpop.f32.mrf.mxu0
        %v1140 = vadd.f32 0.0, %v1139
        %v1141 = vpop.f32.mrf.mxu0
        %v1142 = vadd.f32 0.0, %v1141
        %1143 = vmatmul.bf16.gmra.mxu0 %v705
        %v1144 = vpop.f32.mrf.mxu0
        %v1145 = vadd.f32 0.0, %v1144
        %v1146 = vpop.f32.mrf.mxu0
        %v1147 = vadd.f32 0.0, %v1146
        %1148 = vmatmul.bf16.gmra.mxu0 %v713
        %v1149 = vpop.f32.mrf.mxu0
        %v1150 = vadd.f32 0.0, %v1149
        %v1151 = vpop.f32.mrf.mxu0
        %v1152 = vadd.f32 0.0, %v1151
        %1153 = vmatmul.bf16.gmra.mxu0 %v721
        %v1154 = vpop.f32.mrf.mxu0
        %v1155 = vadd.f32 0.0, %v1154
        %v1156 = vpop.f32.mrf.mxu0
        %1157 = vmatmul.bf16.gmra.mxu0 %v729
        %v1158 = vpop.f32.mrf.mxu0
        %v1159 = vpop.f32.mrf.mxu0
        %1160 = vdwg.mxu0
        %1161 = vmatpush.bf16.msra.mxu0 %v860
        %1162 = vmatpush.bf16.msra.mxu0 %v857
        %1163 = vmatpush.bf16.msra.mxu0 %v854
        %1164 = vmatpush.bf16.msra.mxu0 %v851
        %1165 = vmatpush.bf16.msra.mxu0 %v848
        %1166 = vmatpush.bf16.msra.mxu0 %v845
        %1167 = vmatpush.bf16.msra.mxu0 %v842
        %1168 = vmatpush.bf16.msra.mxu0 %v839
        %1169 = vmatmul.bf16.gmra.mxu0 %v521
        %v1170 = vpop.f32.mrf.mxu0
        %v1171 = vpop.f32.mrf.mxu0
        %1172 = vmatmul.bf16.gmra.mxu0 %v529
        %v1173 = vpop.f32.mrf.mxu0
        %v1174 = vpop.f32.mrf.mxu0
        %1175 = vmatmul.bf16.gmra.mxu0 %v537
        %v1176 = vpop.f32.mrf.mxu0
        %v1177 = vpop.f32.mrf.mxu0
        %1178 = vmatmul.bf16.gmra.mxu0 %v545
        %v1179 = vpop.f32.mrf.mxu0
        %v1180 = vadd.f32 0.0, %v1179
        %v1181 = vpop.f32.mrf.mxu0
        %v1182 = vadd.f32 0.0, %v1181
        %1183 = vmatmul.bf16.gmra.mxu0 %v553
        %v1184 = vpop.f32.mrf.mxu0
        %v1185 = vadd.f32 0.0, %v1184
        %v1186 = vpop.f32.mrf.mxu0
        %v1187 = vadd.f32 0.0, %v1186
        %1188 = vmatmul.bf16.gmra.mxu0 %v561
        %v1189 = vpop.f32.mrf.mxu0
        %v1190 = vadd.f32 0.0, %v1189
        %v1191 = vpop.f32.mrf.mxu0
        %v1192 = vadd.f32 0.0, %v1191
        %1193 = vmatmul.bf16.gmra.mxu0 %v569
        %v1194 = vpop.f32.mrf.mxu0
        %v1195 = vadd.f32 0.0, %v1194
        %v1196 = vpop.f32.mrf.mxu0
        %v1197 = vadd.f32 0.0, %v1196
        %1198 = vmatmul.bf16.gmra.mxu0 %v577
        %v1199 = vpop.f32.mrf.mxu0
        %v1200 = vadd.f32 0.0, %v1199
        %v1201 = vpop.f32.mrf.mxu0
        %v1202 = vadd.f32 0.0, %v1201
        %1203 = vmatmul.bf16.gmra.mxu0 %v585
        %v1204 = vpop.f32.mrf.mxu0
        %v1205 = vadd.f32 0.0, %v1204
        %v1206 = vpop.f32.mrf.mxu0
        %v1207 = vadd.f32 0.0, %v1206
        %1208 = vmatmul.bf16.gmra.mxu0 %v593
        %v1209 = vpop.f32.mrf.mxu0
        %v1210 = vadd.f32 0.0, %v1209
        %v1211 = vpop.f32.mrf.mxu0
        %v1212 = vadd.f32 0.0, %v1211
        %1213 = vmatmul.bf16.gmra.mxu0 %v601
        %v1214 = vpop.f32.mrf.mxu0
        %v1215 = vadd.f32 0.0, %v1214
        %v1216 = vpop.f32.mrf.mxu0
        %v1217 = vadd.f32 0.0, %v1216
        %1218 = vmatmul.bf16.gmra.mxu0 %v609
        %v1219 = vpop.f32.mrf.mxu0
        %v1220 = vadd.f32 0.0, %v1219
        %v1221 = vpop.f32.mrf.mxu0
        %v1222 = vadd.f32 0.0, %v1221
        %1223 = vmatmul.bf16.gmra.mxu0 %v617
        %v1224 = vpop.f32.mrf.mxu0
        %v1225 = vadd.f32 0.0, %v1224
        %v1226 = vpop.f32.mrf.mxu0
        %v1227 = vadd.f32 0.0, %v1226
        %1228 = vmatmul.bf16.gmra.mxu0 %v625
        %v1229 = vpop.f32.mrf.mxu0
        %v1230 = vadd.f32 0.0, %v1229
        %v1231 = vpop.f32.mrf.mxu0
        %v1232 = vadd.f32 0.0, %v1231
        %1233 = vmatmul.bf16.gmra.mxu0 %v633
        %v1234 = vpop.f32.mrf.mxu0
        %v1235 = vadd.f32 0.0, %v1234
        %v1236 = vpop.f32.mrf.mxu0
        %v1237 = vadd.f32 0.0, %v1236
        %1238 = vmatmul.bf16.gmra.mxu0 %v641
        %v1239 = vpop.f32.mrf.mxu0
        %v1240 = vadd.f32 0.0, %v1239
        %v1241 = vpop.f32.mrf.mxu0
        %v1242 = vadd.f32 0.0, %v1241
        %1243 = vmatmul.bf16.gmra.mxu0 %v649
        %v1244 = vpop.f32.mrf.mxu0
        %v1245 = vadd.f32 0.0, %v1244
        %v1246 = vpop.f32.mrf.mxu0
        %v1247 = vadd.f32 0.0, %v1246
        %1248 = vmatmul.bf16.gmra.mxu0 %v657
        %v1249 = vpop.f32.mrf.mxu0
        %v1250 = vadd.f32 0.0, %v1249
        %v1251 = vpop.f32.mrf.mxu0
        %v1252 = vadd.f32 0.0, %v1251
        %1253 = vmatmul.bf16.gmra.mxu0 %v665
        %v1254 = vpop.f32.mrf.mxu0
        %v1255 = vadd.f32 0.0, %v1254
        %v1256 = vpop.f32.mrf.mxu0
        %v1257 = vadd.f32 0.0, %v1256
        %1258 = vmatmul.bf16.gmra.mxu0 %v673
        %v1259 = vpop.f32.mrf.mxu0
        %v1260 = vadd.f32 0.0, %v1259
        %v1261 = vpop.f32.mrf.mxu0
        %v1262 = vadd.f32 0.0, %v1261
        %1263 = vmatmul.bf16.gmra.mxu0 %v681
        %v1264 = vpop.f32.mrf.mxu0
        %v1265 = vadd.f32 0.0, %v1264
        %v1266 = vpop.f32.mrf.mxu0
        %v1267 = vadd.f32 0.0, %v1266
        %1268 = vmatmul.bf16.gmra.mxu0 %v689
        %v1269 = vpop.f32.mrf.mxu0
        %v1270 = vadd.f32 0.0, %v1269
        %v1271 = vpop.f32.mrf.mxu0
        %v1272 = vadd.f32 0.0, %v1271
        %1273 = vmatmul.bf16.gmra.mxu0 %v697
        %v1274 = vpop.f32.mrf.mxu0
        %v1275 = vadd.f32 0.0, %v1274
        %v1276 = vpop.f32.mrf.mxu0
        %v1277 = vadd.f32 0.0, %v1276
        %1278 = vmatmul.bf16.gmra.mxu0 %v705
        %v1279 = vpop.f32.mrf.mxu0
        %v1280 = vadd.f32 0.0, %v1279
        %v1281 = vpop.f32.mrf.mxu0
        %v1282 = vadd.f32 0.0, %v1281
        %1283 = vmatmul.bf16.gmra.mxu0 %v713
        %v1284 = vpop.f32.mrf.mxu0
        %v1285 = vadd.f32 0.0, %v1284
        %v1286 = vpop.f32.mrf.mxu0
        %v1287 = vadd.f32 0.0, %v1286
        %1288 = vmatmul.bf16.gmra.mxu0 %v721
        %v1289 = vpop.f32.mrf.mxu0
        %v1290 = vadd.f32 0.0, %v1289
        %v1291 = vpop.f32.mrf.mxu0
        %v1292 = vadd.f32 0.0, %v1291
        %1293 = vmatmul.bf16.gmra.mxu0 %v729
        %v1294 = vpop.f32.mrf.mxu0
        %v1295 = vadd.f32 0.0, %v1294
        %v1296 = vpop.f32.mrf.mxu0
        %v1297 = vadd.f32 0.0, %v1296
        %1298 = vdwg.mxu0
        %v1358 = vunpack.c.l.b16 %v305
        %v1359 = vunpack.c.h.b16 %v305
        %v1360 = vunpack.c.l.b16 %v306
        %v1361 = vunpack.c.l.b16 %v307
        %v1362 = vunpack.c.h.b16 %v307
        %v1363 = vunpack.c.l.b16 %v308
        %v1364 = vunpack.c.l.b16 %v309
        %v1365 = vunpack.c.h.b16 %v309
        %v1366 = vunpack.c.l.b16 %v310
        %v1367 = vunpack.c.l.b16 %v311
        %v1368 = vunpack.c.h.b16 %v311
        %v1369 = vunpack.c.l.b16 %v312
        %v1370 = vunpack.c.l.b16 %v313
        %v1371 = vunpack.c.h.b16 %v313
        %v1372 = vunpack.c.l.b16 %v314
        %v1373 = vunpack.c.l.b16 %v315
        %v1374 = vunpack.c.h.b16 %v315
        %v1375 = vunpack.c.l.b16 %v316
        %v1376 = vunpack.c.l.b16 %v317
        %v1377 = vunpack.c.h.b16 %v317
        %v1378 = vunpack.c.l.b16 %v318
        %v1379 = vunpack.c.l.b16 %v319
        %v1380 = vunpack.c.h.b16 %v319
        %v1381 = vunpack.c.l.b16 %v320
        %v1382 = vunpack.c.l.b16 %v321
        %v1383 = vunpack.c.h.b16 %v321
        %v1384 = vunpack.c.l.b16 %v322
        %v1385 = vunpack.c.l.b16 %v323
        %v1386 = vunpack.c.h.b16 %v323
        %v1387 = vunpack.c.l.b16 %v324
        %v1388 = vunpack.c.l.b16 %v325
        %v1389 = vunpack.c.h.b16 %v325
        %v1390 = vunpack.c.l.b16 %v326
        %v1391 = vunpack.c.l.b16 %v327
        %v1392 = vunpack.c.h.b16 %v327
        %v1393 = vunpack.c.l.b16 %v328
        %v1394 = vunpack.c.l.b16 %v329
        %v1395 = vunpack.c.h.b16 %v329
        %v1396 = vunpack.c.l.b16 %v330
        %v1397 = vunpack.c.l.b16 %v331
        %v1398 = vunpack.c.h.b16 %v331
        %v1399 = vunpack.c.l.b16 %v332
        %v1400 = vunpack.c.l.b16 %v333
        %v1401 = vunpack.c.h.b16 %v333
        %v1402 = vunpack.c.l.b16 %v334
        %v1403 = vunpack.c.l.b16 %v335
        %v1404 = vunpack.c.h.b16 %v335
        %v1405 = vunpack.c.l.b16 %v336
        %v1406 = vpack.c.b16 %v1361, %v1358
        %v1407 = vpack.c.b16 %v1362, %v1359
        %v1408 = vpack.c.b16 %v1363, %v1360
        %v1409 = vpack.c.b16 %v1367, %v1364
        %v1410 = vpack.c.b16 %v1368, %v1365
        %v1411 = vpack.c.b16 %v1369, %v1366
        %v1412 = vpack.c.b16 %v1373, %v1370
        %v1413 = vpack.c.b16 %v1374, %v1371
        %v1414 = vpack.c.b16 %v1375, %v1372
        %v1415 = vpack.c.b16 %v1379, %v1376
        %v1416 = vpack.c.b16 %v1380, %v1377
        %v1417 = vpack.c.b16 %v1381, %v1378
        %v1418 = vpack.c.b16 %v1385, %v1382
        %v1419 = vpack.c.b16 %v1386, %v1383
        %v1420 = vpack.c.b16 %v1387, %v1384
        %v1421 = vpack.c.b16 %v1391, %v1388
        %v1422 = vpack.c.b16 %v1392, %v1389
        %v1423 = vpack.c.b16 %v1393, %v1390
        %v1424 = vpack.c.b16 %v1397, %v1394
        %v1425 = vpack.c.b16 %v1398, %v1395
        %v1426 = vpack.c.b16 %v1399, %v1396
        %v1427 = vpack.c.b16 %v1403, %v1400
        %v1428 = vpack.c.b16 %v1404, %v1401
        %v1429 = vpack.c.b16 %v1405, %v1402
        %1454 = vmatpush.bf16.msra.mxu0 %v1427
        %1455 = vmatpush.bf16.msra.mxu0 %v1424
        %1456 = vmatpush.bf16.msra.mxu0 %v1421
        %1457 = vmatpush.bf16.msra.mxu0 %v1418
        %1458 = vmatpush.bf16.msra.mxu0 %v1415
        %1459 = vmatpush.bf16.msra.mxu0 %v1412
        %1460 = vmatpush.bf16.msra.mxu0 %v1409
        %1461 = vmatpush.bf16.msra.mxu0 %v1406
        %1462 = vmatmul.bf16.gmra.mxu0 %v481
        %v1463 = vpop.f32.mrf.mxu0
        %v1464 = vadd.f32 %v895, %v1463
        %v1465 = vpop.f32.mrf.mxu0
        %v1466 = vadd.f32 %v897, %v1465
        %1467 = vmatmul.bf16.gmra.mxu0 %v482
        %v1468 = vpop.f32.mrf.mxu0
        %v1469 = vadd.f32 %v900, %v1468
        %v1470 = vpop.f32.mrf.mxu0
        %v1471 = vadd.f32 %v902, %v1470
        %1472 = vmatmul.bf16.gmra.mxu0 %v483
        %v1473 = vpop.f32.mrf.mxu0
        %v1474 = vadd.f32 %v905, %v1473
        %v1475 = vpop.f32.mrf.mxu0
        %v1476 = vadd.f32 %v907, %v1475
        %1477 = vmatmul.bf16.gmra.mxu0 %v484
        %v1478 = vpop.f32.mrf.mxu0
        %v1479 = vadd.f32 %v910, %v1478
        %v1480 = vpop.f32.mrf.mxu0
        %v1481 = vadd.f32 %v912, %v1480
        %1482 = vmatmul.bf16.gmra.mxu0 %v485
        %v1483 = vpop.f32.mrf.mxu0
        %v1484 = vadd.f32 %v915, %v1483
        %v1485 = vpop.f32.mrf.mxu0
        %v1486 = vadd.f32 %v917, %v1485
        %1487 = vmatmul.bf16.gmra.mxu0 %v486
        %v1488 = vpop.f32.mrf.mxu0
        %v1489 = vadd.f32 %v920, %v1488
        %v1490 = vpop.f32.mrf.mxu0
        %v1491 = vadd.f32 %v922, %v1490
        %1492 = vmatmul.bf16.gmra.mxu0 %v487
        %v1493 = vpop.f32.mrf.mxu0
        %v1494 = vadd.f32 %v925, %v1493
        %v1495 = vpop.f32.mrf.mxu0
        %v1496 = vadd.f32 %v927, %v1495
        %1497 = vmatmul.bf16.gmra.mxu0 %v488
        %v1498 = vpop.f32.mrf.mxu0
        %v1499 = vadd.f32 %v930, %v1498
        %v1500 = vpop.f32.mrf.mxu0
        %v1501 = vadd.f32 %v932, %v1500
        %1502 = vmatmul.bf16.gmra.mxu0 %v489
        %v1503 = vpop.f32.mrf.mxu0
        %v1504 = vadd.f32 %v935, %v1503
        %v1505 = vpop.f32.mrf.mxu0
        %v1506 = vadd.f32 %v937, %v1505
        %1507 = vmatmul.bf16.gmra.mxu0 %v490
        %v1508 = vpop.f32.mrf.mxu0
        %v1509 = vadd.f32 %v940, %v1508
        %v1510 = vpop.f32.mrf.mxu0
        %v1511 = vadd.f32 %v942, %v1510
        %1512 = vmatmul.bf16.gmra.mxu0 %v491
        %v1513 = vpop.f32.mrf.mxu0
        %v1514 = vadd.f32 %v945, %v1513
        %v1515 = vpop.f32.mrf.mxu0
        %v1516 = vadd.f32 %v947, %v1515
        %1517 = vmatmul.bf16.gmra.mxu0 %v492
        %v1518 = vpop.f32.mrf.mxu0
        %v1519 = vadd.f32 %v950, %v1518
        %v1520 = vpop.f32.mrf.mxu0
        %v1521 = vadd.f32 %v952, %v1520
        %1522 = vmatmul.bf16.gmra.mxu0 %v493
        %v1523 = vpop.f32.mrf.mxu0
        %v1524 = vadd.f32 %v955, %v1523
        %v1525 = vpop.f32.mrf.mxu0
        %v1526 = vadd.f32 %v957, %v1525
        %1527 = vmatmul.bf16.gmra.mxu0 %v494
        %v1528 = vpop.f32.mrf.mxu0
        %v1529 = vadd.f32 %v960, %v1528
        %v1530 = vpop.f32.mrf.mxu0
        %v1531 = vadd.f32 %v962, %v1530
        %1532 = vmatmul.bf16.gmra.mxu0 %v495
        %v1533 = vpop.f32.mrf.mxu0
        %v1534 = vadd.f32 %v965, %v1533
        %v1535 = vpop.f32.mrf.mxu0
        %v1536 = vadd.f32 %v967, %v1535
        %1537 = vmatmul.bf16.gmra.mxu0 %v496
        %v1538 = vpop.f32.mrf.mxu0
        %v1539 = vadd.f32 %v970, %v1538
        %v1540 = vpop.f32.mrf.mxu0
        %v1541 = vadd.f32 %v972, %v1540
        %1542 = vmatmul.bf16.gmra.mxu0 %v497
        %v1543 = vpop.f32.mrf.mxu0
        %v1544 = vadd.f32 %v975, %v1543
        %v1545 = vpop.f32.mrf.mxu0
        %v1546 = vadd.f32 %v977, %v1545
        %1547 = vmatmul.bf16.gmra.mxu0 %v498
        %v1548 = vpop.f32.mrf.mxu0
        %v1549 = vadd.f32 %v980, %v1548
        %v1550 = vpop.f32.mrf.mxu0
        %v1551 = vadd.f32 %v982, %v1550
        %1552 = vmatmul.bf16.gmra.mxu0 %v499
        %v1553 = vpop.f32.mrf.mxu0
        %v1554 = vadd.f32 %v985, %v1553
        %v1555 = vpop.f32.mrf.mxu0
        %v1556 = vadd.f32 %v987, %v1555
        %1557 = vmatmul.bf16.gmra.mxu0 %v500
        %v1558 = vpop.f32.mrf.mxu0
        %v1559 = vadd.f32 %v990, %v1558
        %v1560 = vpop.f32.mrf.mxu0
        %v1561 = vadd.f32 %v992, %v1560
        %1562 = vmatmul.bf16.gmra.mxu0 %v501
        %v1563 = vpop.f32.mrf.mxu0
        %v1564 = vadd.f32 %v995, %v1563
        %v1565 = vpop.f32.mrf.mxu0
        %v1566 = vadd.f32 %v997, %v1565
        %1567 = vmatmul.bf16.gmra.mxu0 %v502
        %v1568 = vpop.f32.mrf.mxu0
        %v1569 = vadd.f32 %v1000, %v1568
        %v1570 = vpop.f32.mrf.mxu0
        %v1571 = vadd.f32 %v1002, %v1570
        %1572 = vmatmul.bf16.gmra.mxu0 %v503
        %v1573 = vpop.f32.mrf.mxu0
        %v1574 = vadd.f32 %v1005, %v1573
        %v1575 = vpop.f32.mrf.mxu0
        %v1576 = vadd.f32 %v1007, %v1575
        %1577 = vmatmul.bf16.gmra.mxu0 %v504
        %v1578 = vpop.f32.mrf.mxu0
        %v1579 = vadd.f32 %v1010, %v1578
        %v1580 = vpop.f32.mrf.mxu0
        %v1581 = vadd.f32 %v1012, %v1580
        %1582 = vmatmul.bf16.gmra.mxu0 %v505
        %v1583 = vpop.f32.mrf.mxu0
        %v1584 = vpop.f32.mrf.mxu0
        %1585 = vmatmul.bf16.gmra.mxu0 %v506
        %v1586 = vpop.f32.mrf.mxu0
        %v1587 = vpop.f32.mrf.mxu0
        %1588 = vmatmul.bf16.gmra.mxu0 %v507
        %v1589 = vpop.f32.mrf.mxu0
        %v1590 = vpop.f32.mrf.mxu0
        %1591 = vdwg.mxu0
        %1592 = vmatpush.bf16.msra.mxu0 %v1428
        %1593 = vmatpush.bf16.msra.mxu0 %v1425
        %1594 = vmatpush.bf16.msra.mxu0 %v1422
        %1595 = vmatpush.bf16.msra.mxu0 %v1419
        %1596 = vmatpush.bf16.msra.mxu0 %v1416
        %1597 = vmatpush.bf16.msra.mxu0 %v1413
        %1598 = vmatpush.bf16.msra.mxu0 %v1410
        %1599 = vmatpush.bf16.msra.mxu0 %v1407
        %1600 = vmatmul.bf16.gmra.mxu0 %v481
        %v1601 = vpop.f32.mrf.mxu0
        %v1602 = vpop.f32.mrf.mxu0
        %1603 = vmatmul.bf16.gmra.mxu0 %v482
        %v1604 = vpop.f32.mrf.mxu0
        %v1605 = vpop.f32.mrf.mxu0
        %v1606 = vadd.f32 %v1037, %v1605
        %1607 = vmatmul.bf16.gmra.mxu0 %v483
        %v1608 = vpop.f32.mrf.mxu0
        %v1609 = vadd.f32 %v1040, %v1608
        %v1610 = vpop.f32.mrf.mxu0
        %v1611 = vadd.f32 %v1042, %v1610
        %1612 = vmatmul.bf16.gmra.mxu0 %v484
        %v1613 = vpop.f32.mrf.mxu0
        %v1614 = vadd.f32 %v1045, %v1613
        %v1615 = vpop.f32.mrf.mxu0
        %v1616 = vadd.f32 %v1047, %v1615
        %1617 = vmatmul.bf16.gmra.mxu0 %v485
        %v1618 = vpop.f32.mrf.mxu0
        %v1619 = vadd.f32 %v1050, %v1618
        %v1620 = vpop.f32.mrf.mxu0
        %v1621 = vadd.f32 %v1052, %v1620
        %1622 = vmatmul.bf16.gmra.mxu0 %v486
        %v1623 = vpop.f32.mrf.mxu0
        %v1624 = vadd.f32 %v1055, %v1623
        %v1625 = vpop.f32.mrf.mxu0
        %v1626 = vadd.f32 %v1057, %v1625
        %1627 = vmatmul.bf16.gmra.mxu0 %v487
        %v1628 = vpop.f32.mrf.mxu0
        %v1629 = vadd.f32 %v1060, %v1628
        %v1630 = vpop.f32.mrf.mxu0
        %v1631 = vadd.f32 %v1062, %v1630
        %1632 = vmatmul.bf16.gmra.mxu0 %v488
        %v1633 = vpop.f32.mrf.mxu0
        %v1634 = vadd.f32 %v1065, %v1633
        %v1635 = vpop.f32.mrf.mxu0
        %v1636 = vadd.f32 %v1067, %v1635
        %1637 = vmatmul.bf16.gmra.mxu0 %v489
        %v1638 = vpop.f32.mrf.mxu0
        %v1639 = vadd.f32 %v1070, %v1638
        %v1640 = vpop.f32.mrf.mxu0
        %v1641 = vadd.f32 %v1072, %v1640
        %1642 = vmatmul.bf16.gmra.mxu0 %v490
        %v1643 = vpop.f32.mrf.mxu0
        %v1644 = vadd.f32 %v1075, %v1643
        %v1645 = vpop.f32.mrf.mxu0
        %v1646 = vadd.f32 %v1077, %v1645
        %1647 = vmatmul.bf16.gmra.mxu0 %v491
        %v1648 = vpop.f32.mrf.mxu0
        %v1649 = vadd.f32 %v1080, %v1648
        %v1650 = vpop.f32.mrf.mxu0
        %v1651 = vadd.f32 %v1082, %v1650
        %1652 = vmatmul.bf16.gmra.mxu0 %v492
        %v1653 = vpop.f32.mrf.mxu0
        %v1654 = vadd.f32 %v1085, %v1653
        %v1655 = vpop.f32.mrf.mxu0
        %v1656 = vadd.f32 %v1087, %v1655
        %1657 = vmatmul.bf16.gmra.mxu0 %v493
        %v1658 = vpop.f32.mrf.mxu0
        %v1659 = vadd.f32 %v1090, %v1658
        %v1660 = vpop.f32.mrf.mxu0
        %v1661 = vadd.f32 %v1092, %v1660
        %1662 = vmatmul.bf16.gmra.mxu0 %v494
        %v1663 = vpop.f32.mrf.mxu0
        %v1664 = vadd.f32 %v1095, %v1663
        %v1665 = vpop.f32.mrf.mxu0
        %v1666 = vadd.f32 %v1097, %v1665
        %1667 = vmatmul.bf16.gmra.mxu0 %v495
        %v1668 = vpop.f32.mrf.mxu0
        %v1669 = vadd.f32 %v1100, %v1668
        %v1670 = vpop.f32.mrf.mxu0
        %v1671 = vadd.f32 %v1102, %v1670
        %1672 = vmatmul.bf16.gmra.mxu0 %v496
        %v1673 = vpop.f32.mrf.mxu0
        %v1674 = vadd.f32 %v1105, %v1673
        %v1675 = vpop.f32.mrf.mxu0
        %v1676 = vadd.f32 %v1107, %v1675
        %1677 = vmatmul.bf16.gmra.mxu0 %v497
        %v1678 = vpop.f32.mrf.mxu0
        %v1679 = vadd.f32 %v1110, %v1678
        %v1680 = vpop.f32.mrf.mxu0
        %v1681 = vadd.f32 %v1112, %v1680
        %1682 = vmatmul.bf16.gmra.mxu0 %v498
        %v1683 = vpop.f32.mrf.mxu0
        %v1684 = vadd.f32 %v1115, %v1683
        %v1685 = vpop.f32.mrf.mxu0
        %v1686 = vadd.f32 %v1117, %v1685
        %1687 = vmatmul.bf16.gmra.mxu0 %v499
        %v1688 = vpop.f32.mrf.mxu0
        %v1689 = vadd.f32 %v1120, %v1688
        %v1690 = vpop.f32.mrf.mxu0
        %v1691 = vadd.f32 %v1122, %v1690
        %1692 = vmatmul.bf16.gmra.mxu0 %v500
        %v1693 = vpop.f32.mrf.mxu0
        %v1694 = vadd.f32 %v1125, %v1693
        %v1695 = vpop.f32.mrf.mxu0
        %v1696 = vadd.f32 %v1127, %v1695
        %1697 = vmatmul.bf16.gmra.mxu0 %v501
        %v1698 = vpop.f32.mrf.mxu0
        %v1699 = vadd.f32 %v1130, %v1698
        %v1700 = vpop.f32.mrf.mxu0
        %v1701 = vadd.f32 %v1132, %v1700
        %1702 = vmatmul.bf16.gmra.mxu0 %v502
        %v1703 = vpop.f32.mrf.mxu0
        %v1704 = vadd.f32 %v1135, %v1703
        %v1705 = vpop.f32.mrf.mxu0
        %v1706 = vadd.f32 %v1137, %v1705
        %1707 = vmatmul.bf16.gmra.mxu0 %v503
        %v1708 = vpop.f32.mrf.mxu0
        %v1709 = vadd.f32 %v1140, %v1708
        %v1710 = vpop.f32.mrf.mxu0
        %v1711 = vadd.f32 %v1142, %v1710
        %1712 = vmatmul.bf16.gmra.mxu0 %v504
        %v1713 = vpop.f32.mrf.mxu0
        %v1714 = vadd.f32 %v1145, %v1713
        %v1715 = vpop.f32.mrf.mxu0
        %v1716 = vadd.f32 %v1147, %v1715
        %1717 = vmatmul.bf16.gmra.mxu0 %v505
        %v1718 = vpop.f32.mrf.mxu0
        %v1719 = vadd.f32 %v1150, %v1718
        %v1720 = vpop.f32.mrf.mxu0
        %v1721 = vadd.f32 %v1152, %v1720
        %1722 = vmatmul.bf16.gmra.mxu0 %v506
        %v1723 = vpop.f32.mrf.mxu0
        %v1724 = vadd.f32 %v1155, %v1723
        %v1725 = vpop.f32.mrf.mxu0
        %1726 = vmatmul.bf16.gmra.mxu0 %v507
        %v1727 = vpop.f32.mrf.mxu0
        %v1728 = vpop.f32.mrf.mxu0
        %1729 = vdwg.mxu0
        %1730 = vmatpush.bf16.msra.mxu0 %v1429
        %1731 = vmatpush.bf16.msra.mxu0 %v1426
        %1732 = vmatpush.bf16.msra.mxu0 %v1423
        %1733 = vmatpush.bf16.msra.mxu0 %v1420
        %1734 = vmatpush.bf16.msra.mxu0 %v1417
        %1735 = vmatpush.bf16.msra.mxu0 %v1414
        %1736 = vmatpush.bf16.msra.mxu0 %v1411
        %1737 = vmatpush.bf16.msra.mxu0 %v1408
        %1738 = vmatmul.bf16.gmra.mxu0 %v481
        %v1739 = vpop.f32.mrf.mxu0
        %v1740 = vpop.f32.mrf.mxu0
        %1741 = vmatmul.bf16.gmra.mxu0 %v482
        %v1742 = vpop.f32.mrf.mxu0
        %v1743 = vpop.f32.mrf.mxu0
        %1744 = vmatmul.bf16.gmra.mxu0 %v483
        %v1745 = vpop.f32.mrf.mxu0
        %v1746 = vpop.f32.mrf.mxu0
        %1747 = vmatmul.bf16.gmra.mxu0 %v484
        %v1748 = vpop.f32.mrf.mxu0
        %v1749 = vadd.f32 %v1180, %v1748
        %v1750 = vpop.f32.mrf.mxu0
        %v1751 = vadd.f32 %v1182, %v1750
        %1752 = vmatmul.bf16.gmra.mxu0 %v485
        %v1753 = vpop.f32.mrf.mxu0
        %v1754 = vadd.f32 %v1185, %v1753
        %v1755 = vpop.f32.mrf.mxu0
        %v1756 = vadd.f32 %v1187, %v1755
        %1757 = vmatmul.bf16.gmra.mxu0 %v486
        %v1758 = vpop.f32.mrf.mxu0
        %v1759 = vadd.f32 %v1190, %v1758
        %v1760 = vpop.f32.mrf.mxu0
        %v1761 = vadd.f32 %v1192, %v1760
        %1762 = vmatmul.bf16.gmra.mxu0 %v487
        %v1763 = vpop.f32.mrf.mxu0
        %v1764 = vadd.f32 %v1195, %v1763
        %v1765 = vpop.f32.mrf.mxu0
        %v1766 = vadd.f32 %v1197, %v1765
        %1767 = vmatmul.bf16.gmra.mxu0 %v488
        %v1768 = vpop.f32.mrf.mxu0
        %v1769 = vadd.f32 %v1200, %v1768
        %v1770 = vpop.f32.mrf.mxu0
        %v1771 = vadd.f32 %v1202, %v1770
        %1772 = vmatmul.bf16.gmra.mxu0 %v489
        %v1773 = vpop.f32.mrf.mxu0
        %v1774 = vadd.f32 %v1205, %v1773
        %v1775 = vpop.f32.mrf.mxu0
        %v1776 = vadd.f32 %v1207, %v1775
        %1777 = vmatmul.bf16.gmra.mxu0 %v490
        %v1778 = vpop.f32.mrf.mxu0
        %v1779 = vadd.f32 %v1210, %v1778
        %v1780 = vpop.f32.mrf.mxu0
        %v1781 = vadd.f32 %v1212, %v1780
        %1782 = vmatmul.bf16.gmra.mxu0 %v491
        %v1783 = vpop.f32.mrf.mxu0
        %v1784 = vadd.f32 %v1215, %v1783
        %v1785 = vpop.f32.mrf.mxu0
        %v1786 = vadd.f32 %v1217, %v1785
        %1787 = vmatmul.bf16.gmra.mxu0 %v492
        %v1788 = vpop.f32.mrf.mxu0
        %v1789 = vadd.f32 %v1220, %v1788
        %v1790 = vpop.f32.mrf.mxu0
        %v1791 = vadd.f32 %v1222, %v1790
        %1792 = vmatmul.bf16.gmra.mxu0 %v493
        %v1793 = vpop.f32.mrf.mxu0
        %v1794 = vadd.f32 %v1225, %v1793
        %v1795 = vpop.f32.mrf.mxu0
        %v1796 = vadd.f32 %v1227, %v1795
        %1797 = vmatmul.bf16.gmra.mxu0 %v494
        %v1798 = vpop.f32.mrf.mxu0
        %v1799 = vadd.f32 %v1230, %v1798
        %v1800 = vpop.f32.mrf.mxu0
        %v1801 = vadd.f32 %v1232, %v1800
        %1802 = vmatmul.bf16.gmra.mxu0 %v495
        %v1803 = vpop.f32.mrf.mxu0
        %v1804 = vadd.f32 %v1235, %v1803
        %v1805 = vpop.f32.mrf.mxu0
        %v1806 = vadd.f32 %v1237, %v1805
        %1807 = vmatmul.bf16.gmra.mxu0 %v496
        %v1808 = vpop.f32.mrf.mxu0
        %v1809 = vadd.f32 %v1240, %v1808
        %v1810 = vpop.f32.mrf.mxu0
        %v1811 = vadd.f32 %v1242, %v1810
        %1812 = vmatmul.bf16.gmra.mxu0 %v497
        %v1813 = vpop.f32.mrf.mxu0
        %v1814 = vadd.f32 %v1245, %v1813
        %v1815 = vpop.f32.mrf.mxu0
        %v1816 = vadd.f32 %v1247, %v1815
        %1817 = vmatmul.bf16.gmra.mxu0 %v498
        %v1818 = vpop.f32.mrf.mxu0
        %v1819 = vadd.f32 %v1250, %v1818
        %v1820 = vpop.f32.mrf.mxu0
        %v1821 = vadd.f32 %v1252, %v1820
        %1822 = vmatmul.bf16.gmra.mxu0 %v499
        %v1823 = vpop.f32.mrf.mxu0
        %v1824 = vadd.f32 %v1255, %v1823
        %v1825 = vpop.f32.mrf.mxu0
        %v1826 = vadd.f32 %v1257, %v1825
        %1827 = vmatmul.bf16.gmra.mxu0 %v500
        %v1828 = vpop.f32.mrf.mxu0
        %v1829 = vadd.f32 %v1260, %v1828
        %v1830 = vpop.f32.mrf.mxu0
        %v1831 = vadd.f32 %v1262, %v1830
        %1832 = vmatmul.bf16.gmra.mxu0 %v501
        %v1833 = vpop.f32.mrf.mxu0
        %v1834 = vadd.f32 %v1265, %v1833
        %v1835 = vpop.f32.mrf.mxu0
        %v1836 = vadd.f32 %v1267, %v1835
        %1837 = vmatmul.bf16.gmra.mxu0 %v502
        %v1838 = vpop.f32.mrf.mxu0
        %v1839 = vadd.f32 %v1270, %v1838
        %v1840 = vpop.f32.mrf.mxu0
        %v1841 = vadd.f32 %v1272, %v1840
        %1842 = vmatmul.bf16.gmra.mxu0 %v503
        %v1843 = vpop.f32.mrf.mxu0
        %v1844 = vadd.f32 %v1275, %v1843
        %v1845 = vpop.f32.mrf.mxu0
        %v1846 = vadd.f32 %v1277, %v1845
        %1847 = vmatmul.bf16.gmra.mxu0 %v504
        %v1848 = vpop.f32.mrf.mxu0
        %v1849 = vadd.f32 %v1280, %v1848
        %v1850 = vpop.f32.mrf.mxu0
        %v1851 = vadd.f32 %v1282, %v1850
        %1852 = vmatmul.bf16.gmra.mxu0 %v505
        %v1853 = vpop.f32.mrf.mxu0
        %v1854 = vadd.f32 %v1285, %v1853
        %v1855 = vpop.f32.mrf.mxu0
        %v1856 = vadd.f32 %v1287, %v1855
        %1857 = vmatmul.bf16.gmra.mxu0 %v506
        %v1858 = vpop.f32.mrf.mxu0
        %v1859 = vadd.f32 %v1290, %v1858
        %v1860 = vpop.f32.mrf.mxu0
        %v1861 = vadd.f32 %v1292, %v1860
        %1862 = vmatmul.bf16.gmra.mxu0 %v507
        %v1863 = vpop.f32.mrf.mxu0
        %v1864 = vadd.f32 %v1295, %v1863
        %v1865 = vpop.f32.mrf.mxu0
        %v1866 = vadd.f32 %v1297, %v1865
        %1867 = vdwg.mxu0
        %v1868 = vld [vmem:[%s249] sm:$0xe]
        %s1869 = scalar_lea.vmem %s1, 384
        %v1870 = vld [vmem:[%s1869] sm:$0xff]
        %v1871 = vld [vmem:[%s1869 + $0x8] sm:$0xf]
        %v1872 = vld [vmem:[%s1869 + $0xc] sm:$0xff]
        %v1873 = vld [vmem:[%s1869 + $0x14] sm:$0xf]
        %v1874 = vld [vmem:[%s1869 + $0x18] sm:$0xff]
        %v1875 = vld [vmem:[%s1869 + $0x20] sm:$0xf]
        %v1876 = vld [vmem:[%s1869 + $0x24] sm:$0xff]
        %v1877 = vld [vmem:[%s1869 + $0x2c] sm:$0xf]
        %v1878 = vld [vmem:[%s1869 + $0x30] sm:$0xff]
        %v1879 = vld [vmem:[%s1869 + $0x38] sm:$0xf]
        %v1880 = vld [vmem:[%s1869 + $0x3c] sm:$0xff]
        %v1881 = vld [vmem:[%s1869 + $0x44] sm:$0xf]
        %v1882 = vld [vmem:[%s1869 + $0x48] sm:$0xff]
        %v1883 = vld [vmem:[%s1869 + $0x50] sm:$0xf]
        %v1884 = vld [vmem:[%s1869 + $0x54] sm:$0xff]
        %v1885 = vld [vmem:[%s1869 + $0x5c] sm:$0xf]
        %v1886 = vld [vmem:[%s1869 + $0x60] sm:$0xff]
        %v1887 = vld [vmem:[%s1869 + $0x68] sm:$0xf]
        %v1888 = vld [vmem:[%s1869 + $0x6c] sm:$0xff]
        %v1889 = vld [vmem:[%s1869 + $0x74] sm:$0xf]
        %v1890 = vld [vmem:[%s1869 + $0x78] sm:$0xff]
        %v1891 = vld [vmem:[%s1869 + $0x80] sm:$0xf]
        %v1892 = vld [vmem:[%s1869 + $0x84] sm:$0xff]
        %v1893 = vld [vmem:[%s1869 + $0x8c] sm:$0xf]
        %v1894 = vld [vmem:[%s1869 + $0x90] sm:$0xff]
        %v1895 = vld [vmem:[%s1869 + $0x98] sm:$0xf]
        %v1896 = vld [vmem:[%s1869 + $0x9c] sm:$0xff]
        %v1897 = vld [vmem:[%s1869 + $0xa4] sm:$0xf]
        %v1898 = vld [vmem:[%s1869 + $0xa8] sm:$0xff]
        %v1899 = vld [vmem:[%s1869 + $0xb0] sm:$0xf]
        %v1900 = vld [vmem:[%s1869 + $0xb4] sm:$0xff]
        %v1901 = vld [vmem:[%s1869 + $0xbc] sm:$0xf]
        %v1903 = vunpack.c.l.b16 %v1868
        %v1904 = vpack.c.b16 %v427, %v1903
        %vm1905 = vcmask 1046528
        %v1906 = vrot.slane %v1904, 1
        %v1907 = vrot.slane %v482, 1
        %v1908 = vsel %vm1905, %v1906, %v1907
        %v1909 = vrot.slane %v483, 1
        %v1910 = vsel %vm1905, %v1907, %v1909
        %v1911 = vrot.slane %v484, 1
        %v1912 = vsel %vm1905, %v1909, %v1911
        %v1913 = vrot.slane %v485, 1
        %v1914 = vsel %vm1905, %v1911, %v1913
        %v1915 = vrot.slane %v486, 1
        %v1916 = vsel %vm1905, %v1913, %v1915
        %v1917 = vrot.slane %v487, 1
        %v1918 = vsel %vm1905, %v1915, %v1917
        %v1919 = vrot.slane %v488, 1
        %v1920 = vsel %vm1905, %v1917, %v1919
        %v1921 = vrot.slane %v489, 1
        %v1922 = vsel %vm1905, %v1919, %v1921
        %v1923 = vrot.slane %v490, 1
        %v1924 = vsel %vm1905, %v1921, %v1923
        %v1925 = vrot.slane %v491, 1
        %v1926 = vsel %vm1905, %v1923, %v1925
        %v1927 = vrot.slane %v492, 1
        %v1928 = vsel %vm1905, %v1925, %v1927
        %v1929 = vrot.slane %v493, 1
        %v1930 = vsel %vm1905, %v1927, %v1929
        %v1931 = vrot.slane %v494, 1
        %v1932 = vsel %vm1905, %v1929, %v1931
        %v1933 = vrot.slane %v495, 1
        %v1934 = vsel %vm1905, %v1931, %v1933
        %v1935 = vrot.slane %v496, 1
        %v1936 = vsel %vm1905, %v1933, %v1935
        %v1937 = vrot.slane %v497, 1
        %v1938 = vsel %vm1905, %v1935, %v1937
        %v1939 = vrot.slane %v498, 1
        %v1940 = vsel %vm1905, %v1937, %v1939
        %v1941 = vrot.slane %v499, 1
        %v1942 = vsel %vm1905, %v1939, %v1941
        %v1943 = vrot.slane %v500, 1
        %v1944 = vsel %vm1905, %v1941, %v1943
        %v1945 = vrot.slane %v501, 1
        %v1946 = vsel %vm1905, %v1943, %v1945
        %v1947 = vrot.slane %v502, 1
        %v1948 = vsel %vm1905, %v1945, %v1947
        %v1949 = vrot.slane %v503, 1
        %v1950 = vsel %vm1905, %v1947, %v1949
        %v1951 = vrot.slane %v504, 1
        %v1952 = vsel %vm1905, %v1949, %v1951
        %v1953 = vrot.slane %v505, 1
        %v1954 = vsel %vm1905, %v1951, %v1953
        %v1955 = vrot.slane %v506, 1
        %v1956 = vsel %vm1905, %v1953, %v1955
        %v1957 = vrot.slane %v507, 1
        %v1958 = vsel %vm1905, %v1955, %v1957
        %v1959 = vrot.slane %v508, 1
        %v1960 = vsel %vm1905, %v1957, %v1959
        %v2020 = vunpack.c.l.b16 %v1870
        %v2021 = vunpack.c.h.b16 %v1870
        %v2022 = vunpack.c.l.b16 %v1871
        %v2023 = vunpack.c.l.b16 %v1872
        %v2024 = vunpack.c.h.b16 %v1872
        %v2025 = vunpack.c.l.b16 %v1873
        %v2026 = vunpack.c.l.b16 %v1874
        %v2027 = vunpack.c.h.b16 %v1874
        %v2028 = vunpack.c.l.b16 %v1875
        %v2029 = vunpack.c.l.b16 %v1876
        %v2030 = vunpack.c.h.b16 %v1876
        %v2031 = vunpack.c.l.b16 %v1877
        %v2032 = vunpack.c.l.b16 %v1878
        %v2033 = vunpack.c.h.b16 %v1878
        %v2034 = vunpack.c.l.b16 %v1879
        %v2035 = vunpack.c.l.b16 %v1880
        %v2036 = vunpack.c.h.b16 %v1880
        %v2037 = vunpack.c.l.b16 %v1881
        %v2038 = vunpack.c.l.b16 %v1882
        %v2039 = vunpack.c.h.b16 %v1882
        %v2040 = vunpack.c.l.b16 %v1883
        %v2041 = vunpack.c.l.b16 %v1884
        %v2042 = vunpack.c.h.b16 %v1884
        %v2043 = vunpack.c.l.b16 %v1885
        %v2044 = vunpack.c.l.b16 %v1886
        %v2045 = vunpack.c.h.b16 %v1886
        %v2046 = vunpack.c.l.b16 %v1887
        %v2047 = vunpack.c.l.b16 %v1888
        %v2048 = vunpack.c.h.b16 %v1888
        %v2049 = vunpack.c.l.b16 %v1889
        %v2050 = vunpack.c.l.b16 %v1890
        %v2051 = vunpack.c.h.b16 %v1890
        %v2052 = vunpack.c.l.b16 %v1891
        %v2053 = vunpack.c.l.b16 %v1892
        %v2054 = vunpack.c.h.b16 %v1892
        %v2055 = vunpack.c.l.b16 %v1893
        %v2056 = vunpack.c.l.b16 %v1894
        %v2057 = vunpack.c.h.b16 %v1894
        %v2058 = vunpack.c.l.b16 %v1895
        %v2059 = vunpack.c.l.b16 %v1896
        %v2060 = vunpack.c.h.b16 %v1896
        %v2061 = vunpack.c.l.b16 %v1897
        %v2062 = vunpack.c.l.b16 %v1898
        %v2063 = vunpack.c.h.b16 %v1898
        %v2064 = vunpack.c.l.b16 %v1899
        %v2065 = vunpack.c.l.b16 %v1900
        %v2066 = vunpack.c.h.b16 %v1900
        %v2067 = vunpack.c.l.b16 %v1901
        %v2068 = vpack.c.b16 %v2023, %v2020
        %v2069 = vpack.c.b16 %v2024, %v2021
        %v2070 = vpack.c.b16 %v2025, %v2022
        %v2071 = vpack.c.b16 %v2029, %v2026
        %v2072 = vpack.c.b16 %v2030, %v2027
        %v2073 = vpack.c.b16 %v2031, %v2028
        %v2074 = vpack.c.b16 %v2035, %v2032
        %v2075 = vpack.c.b16 %v2036, %v2033
        %v2076 = vpack.c.b16 %v2037, %v2034
        %v2077 = vpack.c.b16 %v2041, %v2038
        %v2078 = vpack.c.b16 %v2042, %v2039
        %v2079 = vpack.c.b16 %v2043, %v2040
        %v2080 = vpack.c.b16 %v2047, %v2044
        %v2081 = vpack.c.b16 %v2048, %v2045
        %v2082 = vpack.c.b16 %v2049, %v2046
        %v2083 = vpack.c.b16 %v2053, %v2050
        %v2084 = vpack.c.b16 %v2054, %v2051
        %v2085 = vpack.c.b16 %v2055, %v2052
        %v2086 = vpack.c.b16 %v2059, %v2056
        %v2087 = vpack.c.b16 %v2060, %v2057
        %v2088 = vpack.c.b16 %v2061, %v2058
        %v2089 = vpack.c.b16 %v2065, %v2062
        %v2090 = vpack.c.b16 %v2066, %v2063
        %v2091 = vpack.c.b16 %v2067, %v2064
        %2116 = vmatpush.bf16.msra.mxu0 %v2089
        %2117 = vmatpush.bf16.msra.mxu0 %v2086
        %2118 = vmatpush.bf16.msra.mxu0 %v2083
        %2119 = vmatpush.bf16.msra.mxu0 %v2080
        %2120 = vmatpush.bf16.msra.mxu0 %v2077
        %2121 = vmatpush.bf16.msra.mxu0 %v2074
        %2122 = vmatpush.bf16.msra.mxu0 %v2071
        %2123 = vmatpush.bf16.msra.mxu0 %v2068
        %2124 = vmatmul.bf16.gmra.mxu0 %v1908
        %v2125 = vpop.f32.mrf.mxu0
        %v2126 = vadd.f32 0.0, %v2125
        %v2127 = vpop.f32.mrf.mxu0
        %v2128 = vadd.f32 0.0, %v2127
        %2129 = vmatmul.bf16.gmra.mxu0 %v1910
        %v2130 = vpop.f32.mrf.mxu0
        %v2131 = vadd.f32 0.0, %v2130
        %v2132 = vpop.f32.mrf.mxu0
        %v2133 = vadd.f32 0.0, %v2132
        %2134 = vmatmul.bf16.gmra.mxu0 %v1912
        %v2135 = vpop.f32.mrf.mxu0
        %v2136 = vadd.f32 0.0, %v2135
        %v2137 = vpop.f32.mrf.mxu0
        %v2138 = vadd.f32 0.0, %v2137
        %2139 = vmatmul.bf16.gmra.mxu0 %v1914
        %v2140 = vpop.f32.mrf.mxu0
        %v2141 = vadd.f32 0.0, %v2140
        %v2142 = vpop.f32.mrf.mxu0
        %v2143 = vadd.f32 0.0, %v2142
        %2144 = vmatmul.bf16.gmra.mxu0 %v1916
        %v2145 = vpop.f32.mrf.mxu0
        %v2146 = vadd.f32 0.0, %v2145
        %v2147 = vpop.f32.mrf.mxu0
        %v2148 = vadd.f32 0.0, %v2147
        %2149 = vmatmul.bf16.gmra.mxu0 %v1918
        %v2150 = vpop.f32.mrf.mxu0
        %v2151 = vadd.f32 0.0, %v2150
        %v2152 = vpop.f32.mrf.mxu0
        %v2153 = vadd.f32 0.0, %v2152
        %2154 = vmatmul.bf16.gmra.mxu0 %v1920
        %v2155 = vpop.f32.mrf.mxu0
        %v2156 = vadd.f32 0.0, %v2155
        %v2157 = vpop.f32.mrf.mxu0
        %v2158 = vadd.f32 0.0, %v2157
        %2159 = vmatmul.bf16.gmra.mxu0 %v1922
        %v2160 = vpop.f32.mrf.mxu0
        %v2161 = vadd.f32 0.0, %v2160
        %v2162 = vpop.f32.mrf.mxu0
        %v2163 = vadd.f32 0.0, %v2162
        %2164 = vmatmul.bf16.gmra.mxu0 %v1924
        %v2165 = vpop.f32.mrf.mxu0
        %v2166 = vadd.f32 0.0, %v2165
        %v2167 = vpop.f32.mrf.mxu0
        %v2168 = vadd.f32 0.0, %v2167
        %2169 = vmatmul.bf16.gmra.mxu0 %v1926
        %v2170 = vpop.f32.mrf.mxu0
        %v2171 = vadd.f32 0.0, %v2170
        %v2172 = vpop.f32.mrf.mxu0
        %v2173 = vadd.f32 0.0, %v2172
        %2174 = vmatmul.bf16.gmra.mxu0 %v1928
        %v2175 = vpop.f32.mrf.mxu0
        %v2176 = vadd.f32 0.0, %v2175
        %v2177 = vpop.f32.mrf.mxu0
        %v2178 = vadd.f32 0.0, %v2177
        %2179 = vmatmul.bf16.gmra.mxu0 %v1930
        %v2180 = vpop.f32.mrf.mxu0
        %v2181 = vadd.f32 0.0, %v2180
        %v2182 = vpop.f32.mrf.mxu0
        %v2183 = vadd.f32 0.0, %v2182
        %2184 = vmatmul.bf16.gmra.mxu0 %v1932
        %v2185 = vpop.f32.mrf.mxu0
        %v2186 = vadd.f32 0.0, %v2185
        %v2187 = vpop.f32.mrf.mxu0
        %v2188 = vadd.f32 0.0, %v2187
        %2189 = vmatmul.bf16.gmra.mxu0 %v1934
        %v2190 = vpop.f32.mrf.mxu0
        %v2191 = vadd.f32 0.0, %v2190
        %v2192 = vpop.f32.mrf.mxu0
        %v2193 = vadd.f32 0.0, %v2192
        %2194 = vmatmul.bf16.gmra.mxu0 %v1936
        %v2195 = vpop.f32.mrf.mxu0
        %v2196 = vadd.f32 0.0, %v2195
        %v2197 = vpop.f32.mrf.mxu0
        %v2198 = vadd.f32 0.0, %v2197
        %2199 = vmatmul.bf16.gmra.mxu0 %v1938
        %v2200 = vpop.f32.mrf.mxu0
        %v2201 = vadd.f32 0.0, %v2200
        %v2202 = vpop.f32.mrf.mxu0
        %v2203 = vadd.f32 0.0, %v2202
        %2204 = vmatmul.bf16.gmra.mxu0 %v1940
        %v2205 = vpop.f32.mrf.mxu0
        %v2206 = vadd.f32 0.0, %v2205
        %v2207 = vpop.f32.mrf.mxu0
        %v2208 = vadd.f32 0.0, %v2207
        %2209 = vmatmul.bf16.gmra.mxu0 %v1942
        %v2210 = vpop.f32.mrf.mxu0
        %v2211 = vadd.f32 0.0, %v2210
        %v2212 = vpop.f32.mrf.mxu0
        %v2213 = vadd.f32 0.0, %v2212
        %2214 = vmatmul.bf16.gmra.mxu0 %v1944
        %v2215 = vpop.f32.mrf.mxu0
        %v2216 = vadd.f32 0.0, %v2215
        %v2217 = vpop.f32.mrf.mxu0
        %v2218 = vadd.f32 0.0, %v2217
        %2219 = vmatmul.bf16.gmra.mxu0 %v1946
        %v2220 = vpop.f32.mrf.mxu0
        %v2221 = vadd.f32 0.0, %v2220
        %v2222 = vpop.f32.mrf.mxu0
        %v2223 = vadd.f32 0.0, %v2222
        %2224 = vmatmul.bf16.gmra.mxu0 %v1948
        %v2225 = vpop.f32.mrf.mxu0
        %v2226 = vadd.f32 0.0, %v2225
        %v2227 = vpop.f32.mrf.mxu0
        %v2228 = vadd.f32 0.0, %v2227
        %2229 = vmatmul.bf16.gmra.mxu0 %v1950
        %v2230 = vpop.f32.mrf.mxu0
        %v2231 = vadd.f32 0.0, %v2230
        %v2232 = vpop.f32.mrf.mxu0
        %v2233 = vadd.f32 0.0, %v2232
        %2234 = vmatmul.bf16.gmra.mxu0 %v1952
        %v2235 = vpop.f32.mrf.mxu0
        %v2236 = vadd.f32 0.0, %v2235
        %v2237 = vpop.f32.mrf.mxu0
        %v2238 = vadd.f32 0.0, %v2237
        %2239 = vmatmul.bf16.gmra.mxu0 %v1954
        %v2240 = vpop.f32.mrf.mxu0
        %v2241 = vadd.f32 0.0, %v2240
        %v2242 = vpop.f32.mrf.mxu0
        %v2243 = vadd.f32 0.0, %v2242
        %2244 = vmatmul.bf16.gmra.mxu0 %v1956
        %v2245 = vpop.f32.mrf.mxu0
        %v2246 = vpop.f32.mrf.mxu0
        %2247 = vmatmul.bf16.gmra.mxu0 %v1958
        %v2248 = vpop.f32.mrf.mxu0
        %v2249 = vpop.f32.mrf.mxu0
        %2250 = vmatmul.bf16.gmra.mxu0 %v1960
        %v2251 = vpop.f32.mrf.mxu0
        %v2252 = vpop.f32.mrf.mxu0
        %2253 = vdwg.mxu0
        %2254 = vmatpush.bf16.msra.mxu0 %v2090
        %2255 = vmatpush.bf16.msra.mxu0 %v2087
        %2256 = vmatpush.bf16.msra.mxu0 %v2084
        %2257 = vmatpush.bf16.msra.mxu0 %v2081
        %2258 = vmatpush.bf16.msra.mxu0 %v2078
        %2259 = vmatpush.bf16.msra.mxu0 %v2075
        %2260 = vmatpush.bf16.msra.mxu0 %v2072
        %2261 = vmatpush.bf16.msra.mxu0 %v2069
        %2262 = vmatmul.bf16.gmra.mxu0 %v1908
        %v2263 = vpop.f32.mrf.mxu0
        %v2264 = vpop.f32.mrf.mxu0
        %2265 = vmatmul.bf16.gmra.mxu0 %v1910
        %v2266 = vpop.f32.mrf.mxu0
        %v2267 = vpop.f32.mrf.mxu0
        %v2268 = vadd.f32 0.0, %v2267
        %2269 = vmatmul.bf16.gmra.mxu0 %v1912
        %v2270 = vpop.f32.mrf.mxu0
        %v2271 = vadd.f32 0.0, %v2270
        %v2272 = vpop.f32.mrf.mxu0
        %v2273 = vadd.f32 0.0, %v2272
        %2274 = vmatmul.bf16.gmra.mxu0 %v1914
        %v2275 = vpop.f32.mrf.mxu0
        %v2276 = vadd.f32 0.0, %v2275
        %v2277 = vpop.f32.mrf.mxu0
        %v2278 = vadd.f32 0.0, %v2277
        %2279 = vmatmul.bf16.gmra.mxu0 %v1916
        %v2280 = vpop.f32.mrf.mxu0
        %v2281 = vadd.f32 0.0, %v2280
        %v2282 = vpop.f32.mrf.mxu0
        %v2283 = vadd.f32 0.0, %v2282
        %2284 = vmatmul.bf16.gmra.mxu0 %v1918
        %v2285 = vpop.f32.mrf.mxu0
        %v2286 = vadd.f32 0.0, %v2285
        %v2287 = vpop.f32.mrf.mxu0
        %v2288 = vadd.f32 0.0, %v2287
        %2289 = vmatmul.bf16.gmra.mxu0 %v1920
        %v2290 = vpop.f32.mrf.mxu0
        %v2291 = vadd.f32 0.0, %v2290
        %v2292 = vpop.f32.mrf.mxu0
        %v2293 = vadd.f32 0.0, %v2292
        %2294 = vmatmul.bf16.gmra.mxu0 %v1922
        %v2295 = vpop.f32.mrf.mxu0
        %v2296 = vadd.f32 0.0, %v2295
        %v2297 = vpop.f32.mrf.mxu0
        %v2298 = vadd.f32 0.0, %v2297
        %2299 = vmatmul.bf16.gmra.mxu0 %v1924
        %v2300 = vpop.f32.mrf.mxu0
        %v2301 = vadd.f32 0.0, %v2300
        %v2302 = vpop.f32.mrf.mxu0
        %v2303 = vadd.f32 0.0, %v2302
        %2304 = vmatmul.bf16.gmra.mxu0 %v1926
        %v2305 = vpop.f32.mrf.mxu0
        %v2306 = vadd.f32 0.0, %v2305
        %v2307 = vpop.f32.mrf.mxu0
        %v2308 = vadd.f32 0.0, %v2307
        %2309 = vmatmul.bf16.gmra.mxu0 %v1928
        %v2310 = vpop.f32.mrf.mxu0
        %v2311 = vadd.f32 0.0, %v2310
        %v2312 = vpop.f32.mrf.mxu0
        %v2313 = vadd.f32 0.0, %v2312
        %2314 = vmatmul.bf16.gmra.mxu0 %v1930
        %v2315 = vpop.f32.mrf.mxu0
        %v2316 = vadd.f32 0.0, %v2315
        %v2317 = vpop.f32.mrf.mxu0
        %v2318 = vadd.f32 0.0, %v2317
        %2319 = vmatmul.bf16.gmra.mxu0 %v1932
        %v2320 = vpop.f32.mrf.mxu0
        %v2321 = vadd.f32 0.0, %v2320
        %v2322 = vpop.f32.mrf.mxu0
        %v2323 = vadd.f32 0.0, %v2322
        %2324 = vmatmul.bf16.gmra.mxu0 %v1934
        %v2325 = vpop.f32.mrf.mxu0
        %v2326 = vadd.f32 0.0, %v2325
        %v2327 = vpop.f32.mrf.mxu0
        %v2328 = vadd.f32 0.0, %v2327
        %2329 = vmatmul.bf16.gmra.mxu0 %v1936
        %v2330 = vpop.f32.mrf.mxu0
        %v2331 = vadd.f32 0.0, %v2330
        %v2332 = vpop.f32.mrf.mxu0
        %v2333 = vadd.f32 0.0, %v2332
        %2334 = vmatmul.bf16.gmra.mxu0 %v1938
        %v2335 = vpop.f32.mrf.mxu0
        %v2336 = vadd.f32 0.0, %v2335
        %v2337 = vpop.f32.mrf.mxu0
        %v2338 = vadd.f32 0.0, %v2337
        %2339 = vmatmul.bf16.gmra.mxu0 %v1940
        %v2340 = vpop.f32.mrf.mxu0
        %v2341 = vadd.f32 0.0, %v2340
        %v2342 = vpop.f32.mrf.mxu0
        %v2343 = vadd.f32 0.0, %v2342
        %2344 = vmatmul.bf16.gmra.mxu0 %v1942
        %v2345 = vpop.f32.mrf.mxu0
        %v2346 = vadd.f32 0.0, %v2345
        %v2347 = vpop.f32.mrf.mxu0
        %v2348 = vadd.f32 0.0, %v2347
        %2349 = vmatmul.bf16.gmra.mxu0 %v1944
        %v2350 = vpop.f32.mrf.mxu0
        %v2351 = vadd.f32 0.0, %v2350
        %v2352 = vpop.f32.mrf.mxu0
        %v2353 = vadd.f32 0.0, %v2352
        %2354 = vmatmul.bf16.gmra.mxu0 %v1946
        %v2355 = vpop.f32.mrf.mxu0
        %v2356 = vadd.f32 0.0, %v2355
        %v2357 = vpop.f32.mrf.mxu0
        %v2358 = vadd.f32 0.0, %v2357
        %2359 = vmatmul.bf16.gmra.mxu0 %v1948
        %v2360 = vpop.f32.mrf.mxu0
        %v2361 = vadd.f32 0.0, %v2360
        %v2362 = vpop.f32.mrf.mxu0
        %v2363 = vadd.f32 0.0, %v2362
        %2364 = vmatmul.bf16.gmra.mxu0 %v1950
        %v2365 = vpop.f32.mrf.mxu0
        %v2366 = vadd.f32 0.0, %v2365
        %v2367 = vpop.f32.mrf.mxu0
        %v2368 = vadd.f32 0.0, %v2367
        %2369 = vmatmul.bf16.gmra.mxu0 %v1952
        %v2370 = vpop.f32.mrf.mxu0
        %v2371 = vadd.f32 0.0, %v2370
        %v2372 = vpop.f32.mrf.mxu0
        %v2373 = vadd.f32 0.0, %v2372
        %2374 = vmatmul.bf16.gmra.mxu0 %v1954
        %v2375 = vpop.f32.mrf.mxu0
        %v2376 = vadd.f32 0.0, %v2375
        %v2377 = vpop.f32.mrf.mxu0
        %v2378 = vadd.f32 0.0, %v2377
        %2379 = vmatmul.bf16.gmra.mxu0 %v1956
        %v2380 = vpop.f32.mrf.mxu0
        %v2381 = vadd.f32 0.0, %v2380
        %v2382 = vpop.f32.mrf.mxu0
        %v2383 = vadd.f32 0.0, %v2382
        %2384 = vmatmul.bf16.gmra.mxu0 %v1958
        %v2385 = vpop.f32.mrf.mxu0
        %v2386 = vadd.f32 0.0, %v2385
        %v2387 = vpop.f32.mrf.mxu0
        %2388 = vmatmul.bf16.gmra.mxu0 %v1960
        %v2389 = vpop.f32.mrf.mxu0
        %v2390 = vpop.f32.mrf.mxu0
        %2391 = vdwg.mxu0
        %2392 = vmatpush.bf16.msra.mxu0 %v2091
        %2393 = vmatpush.bf16.msra.mxu0 %v2088
        %2394 = vmatpush.bf16.msra.mxu0 %v2085
        %2395 = vmatpush.bf16.msra.mxu0 %v2082
        %2396 = vmatpush.bf16.msra.mxu0 %v2079
        %2397 = vmatpush.bf16.msra.mxu0 %v2076
        %2398 = vmatpush.bf16.msra.mxu0 %v2073
        %2399 = vmatpush.bf16.msra.mxu0 %v2070
        %2400 = vmatmul.bf16.gmra.mxu0 %v1908
        %v2401 = vpop.f32.mrf.mxu0
        %v2402 = vpop.f32.mrf.mxu0
        %2403 = vmatmul.bf16.gmra.mxu0 %v1910
        %v2404 = vpop.f32.mrf.mxu0
        %v2405 = vpop.f32.mrf.mxu0
        %2406 = vmatmul.bf16.gmra.mxu0 %v1912
        %v2407 = vpop.f32.mrf.mxu0
        %v2408 = vpop.f32.mrf.mxu0
        %2409 = vmatmul.bf16.gmra.mxu0 %v1914
        %v2410 = vpop.f32.mrf.mxu0
        %v2411 = vadd.f32 0.0, %v2410
        %v2412 = vpop.f32.mrf.mxu0
        %v2413 = vadd.f32 0.0, %v2412
        %2414 = vmatmul.bf16.gmra.mxu0 %v1916
        %v2415 = vpop.f32.mrf.mxu0
        %v2416 = vadd.f32 0.0, %v2415
        %v2417 = vpop.f32.mrf.mxu0
        %v2418 = vadd.f32 0.0, %v2417
        %2419 = vmatmul.bf16.gmra.mxu0 %v1918
        %v2420 = vpop.f32.mrf.mxu0
        %v2421 = vadd.f32 0.0, %v2420
        %v2422 = vpop.f32.mrf.mxu0
        %v2423 = vadd.f32 0.0, %v2422
        %2424 = vmatmul.bf16.gmra.mxu0 %v1920
        %v2425 = vpop.f32.mrf.mxu0
        %v2426 = vadd.f32 0.0, %v2425
        %v2427 = vpop.f32.mrf.mxu0
        %v2428 = vadd.f32 0.0, %v2427
        %2429 = vmatmul.bf16.gmra.mxu0 %v1922
        %v2430 = vpop.f32.mrf.mxu0
        %v2431 = vadd.f32 0.0, %v2430
        %v2432 = vpop.f32.mrf.mxu0
        %v2433 = vadd.f32 0.0, %v2432
        %2434 = vmatmul.bf16.gmra.mxu0 %v1924
        %v2435 = vpop.f32.mrf.mxu0
        %v2436 = vadd.f32 0.0, %v2435
        %v2437 = vpop.f32.mrf.mxu0
        %v2438 = vadd.f32 0.0, %v2437
        %2439 = vmatmul.bf16.gmra.mxu0 %v1926
        %v2440 = vpop.f32.mrf.mxu0
        %v2441 = vadd.f32 0.0, %v2440
        %v2442 = vpop.f32.mrf.mxu0
        %v2443 = vadd.f32 0.0, %v2442
        %2444 = vmatmul.bf16.gmra.mxu0 %v1928
        %v2445 = vpop.f32.mrf.mxu0
        %v2446 = vadd.f32 0.0, %v2445
        %v2447 = vpop.f32.mrf.mxu0
        %v2448 = vadd.f32 0.0, %v2447
        %2449 = vmatmul.bf16.gmra.mxu0 %v1930
        %v2450 = vpop.f32.mrf.mxu0
        %v2451 = vadd.f32 0.0, %v2450
        %v2452 = vpop.f32.mrf.mxu0
        %v2453 = vadd.f32 0.0, %v2452
        %2454 = vmatmul.bf16.gmra.mxu0 %v1932
        %v2455 = vpop.f32.mrf.mxu0
        %v2456 = vadd.f32 0.0, %v2455
        %v2457 = vpop.f32.mrf.mxu0
        %v2458 = vadd.f32 0.0, %v2457
        %2459 = vmatmul.bf16.gmra.mxu0 %v1934
        %v2460 = vpop.f32.mrf.mxu0
        %v2461 = vadd.f32 0.0, %v2460
        %v2462 = vpop.f32.mrf.mxu0
        %v2463 = vadd.f32 0.0, %v2462
        %2464 = vmatmul.bf16.gmra.mxu0 %v1936
        %v2465 = vpop.f32.mrf.mxu0
        %v2466 = vadd.f32 0.0, %v2465
        %v2467 = vpop.f32.mrf.mxu0
        %v2468 = vadd.f32 0.0, %v2467
        %2469 = vmatmul.bf16.gmra.mxu0 %v1938
        %v2470 = vpop.f32.mrf.mxu0
        %v2471 = vadd.f32 0.0, %v2470
        %v2472 = vpop.f32.mrf.mxu0
        %v2473 = vadd.f32 0.0, %v2472
        %2474 = vmatmul.bf16.gmra.mxu0 %v1940
        %v2475 = vpop.f32.mrf.mxu0
        %v2476 = vadd.f32 0.0, %v2475
        %v2477 = vpop.f32.mrf.mxu0
        %v2478 = vadd.f32 0.0, %v2477
        %2479 = vmatmul.bf16.gmra.mxu0 %v1942
        %v2480 = vpop.f32.mrf.mxu0
        %v2481 = vadd.f32 0.0, %v2480
        %v2482 = vpop.f32.mrf.mxu0
        %v2483 = vadd.f32 0.0, %v2482
        %2484 = vmatmul.bf16.gmra.mxu0 %v1944
        %v2485 = vpop.f32.mrf.mxu0
        %v2486 = vadd.f32 0.0, %v2485
        %v2487 = vpop.f32.mrf.mxu0
        %v2488 = vadd.f32 0.0, %v2487
        %2489 = vmatmul.bf16.gmra.mxu0 %v1946
        %v2490 = vpop.f32.mrf.mxu0
        %v2491 = vadd.f32 0.0, %v2490
        %v2492 = vpop.f32.mrf.mxu0
        %v2493 = vadd.f32 0.0, %v2492
        %2494 = vmatmul.bf16.gmra.mxu0 %v1948
        %v2495 = vpop.f32.mrf.mxu0
        %v2496 = vadd.f32 0.0, %v2495
        %v2497 = vpop.f32.mrf.mxu0
        %v2498 = vadd.f32 0.0, %v2497
        %2499 = vmatmul.bf16.gmra.mxu0 %v1950
        %v2500 = vpop.f32.mrf.mxu0
        %v2501 = vadd.f32 0.0, %v2500
        %v2502 = vpop.f32.mrf.mxu0
        %v2503 = vadd.f32 0.0, %v2502
        %2504 = vmatmul.bf16.gmra.mxu0 %v1952
        %v2505 = vpop.f32.mrf.mxu0
        %v2506 = vadd.f32 0.0, %v2505
        %v2507 = vpop.f32.mrf.mxu0
        %v2508 = vadd.f32 0.0, %v2507
        %2509 = vmatmul.bf16.gmra.mxu0 %v1954
        %v2510 = vpop.f32.mrf.mxu0
        %v2511 = vadd.f32 0.0, %v2510
        %v2512 = vpop.f32.mrf.mxu0
        %v2513 = vadd.f32 0.0, %v2512
        %2514 = vmatmul.bf16.gmra.mxu0 %v1956
        %v2515 = vpop.f32.mrf.mxu0
        %v2516 = vadd.f32 0.0, %v2515
        %v2517 = vpop.f32.mrf.mxu0
        %v2518 = vadd.f32 0.0, %v2517
        %2519 = vmatmul.bf16.gmra.mxu0 %v1958
        %v2520 = vpop.f32.mrf.mxu0
        %v2521 = vadd.f32 0.0, %v2520
        %v2522 = vpop.f32.mrf.mxu0
        %v2523 = vadd.f32 0.0, %v2522
        %2524 = vmatmul.bf16.gmra.mxu0 %v1960
        %v2525 = vpop.f32.mrf.mxu0
        %v2526 = vadd.f32 0.0, %v2525
        %v2527 = vpop.f32.mrf.mxu0
        %v2528 = vadd.f32 0.0, %v2527
        %2529 = vdwg.mxu0
        %v2530 = vadd.f32 %v1464, %v2126
        %v2531 = vadd.f32 %v1466, %v2128
        %v2532 = vadd.f32 %v1469, %v2131
        %v2533 = vadd.f32 %v1471, %v2133
        %v2534 = vadd.f32 %v1606, %v2268
        %v2535 = vadd.f32 %v1474, %v2136
        %v2536 = vadd.f32 %v1609, %v2271
        %v2537 = vadd.f32 %v1476, %v2138
        %v2538 = vadd.f32 %v1611, %v2273
        %v2539 = vadd.f32 %v1479, %v2141
        %v2540 = vadd.f32 %v1614, %v2276
        %v2541 = vadd.f32 %v1749, %v2411
        %v2542 = vadd.f32 %v1481, %v2143
        %v2543 = vadd.f32 %v1616, %v2278
        %v2544 = vadd.f32 %v1751, %v2413
        %v2545 = vadd.f32 %v1484, %v2146
        %v2546 = vadd.f32 %v1619, %v2281
        %v2547 = vadd.f32 %v1754, %v2416
        %v2548 = vadd.f32 %v1486, %v2148
        %v2549 = vadd.f32 %v1621, %v2283
        %v2550 = vadd.f32 %v1756, %v2418
        %v2551 = vadd.f32 %v1489, %v2151
        %v2552 = vadd.f32 %v1624, %v2286
        %v2553 = vadd.f32 %v1759, %v2421
        %v2554 = vadd.f32 %v1491, %v2153
        %v2555 = vadd.f32 %v1626, %v2288
        %v2556 = vadd.f32 %v1761, %v2423
        %v2557 = vadd.f32 %v1494, %v2156
        %v2558 = vadd.f32 %v1629, %v2291
        %v2559 = vadd.f32 %v1764, %v2426
        %v2560 = vadd.f32 %v1496, %v2158
        %v2561 = vadd.f32 %v1631, %v2293
        %v2562 = vadd.f32 %v1766, %v2428
        %v2563 = vadd.f32 %v1499, %v2161
        %v2564 = vadd.f32 %v1634, %v2296
        %v2565 = vadd.f32 %v1769, %v2431
        %v2566 = vadd.f32 %v1501, %v2163
        %v2567 = vadd.f32 %v1636, %v2298
        %v2568 = vadd.f32 %v1771, %v2433
        %v2569 = vadd.f32 %v1504, %v2166
        %v2570 = vadd.f32 %v1639, %v2301
        %v2571 = vadd.f32 %v1774, %v2436
        %v2572 = vadd.f32 %v1506, %v2168
        %v2573 = vadd.f32 %v1641, %v2303
        %v2574 = vadd.f32 %v1776, %v2438
        %v2575 = vadd.f32 %v1509, %v2171
        %v2576 = vadd.f32 %v1644, %v2306
        %v2577 = vadd.f32 %v1779, %v2441
        %v2578 = vadd.f32 %v1511, %v2173
        %v2579 = vadd.f32 %v1646, %v2308
        %v2580 = vadd.f32 %v1781, %v2443
        %v2581 = vadd.f32 %v1514, %v2176
        %v2582 = vadd.f32 %v1649, %v2311
        %v2583 = vadd.f32 %v1784, %v2446
        %v2584 = vadd.f32 %v1516, %v2178
        %v2585 = vadd.f32 %v1651, %v2313
        %v2586 = vadd.f32 %v1786, %v2448
        %v2587 = vadd.f32 %v1519, %v2181
        %v2588 = vadd.f32 %v1654, %v2316
        %v2589 = vadd.f32 %v1789, %v2451
        %v2590 = vadd.f32 %v1521, %v2183
        %v2591 = vadd.f32 %v1656, %v2318
        %v2592 = vadd.f32 %v1791, %v2453
        %v2593 = vadd.f32 %v1524, %v2186
        %v2594 = vadd.f32 %v1659, %v2321
        %v2595 = vadd.f32 %v1794, %v2456
        %v2596 = vadd.f32 %v1526, %v2188
        %v2597 = vadd.f32 %v1661, %v2323
        %v2598 = vadd.f32 %v1796, %v2458
        %v2599 = vadd.f32 %v1529, %v2191
        %v2600 = vadd.f32 %v1664, %v2326
        %v2601 = vadd.f32 %v1799, %v2461
        %v2602 = vadd.f32 %v1531, %v2193
        %v2603 = vadd.f32 %v1666, %v2328
        %v2604 = vadd.f32 %v1801, %v2463
        %v2605 = vadd.f32 %v1534, %v2196
        %v2606 = vadd.f32 %v1669, %v2331
        %v2607 = vadd.f32 %v1804, %v2466
        %v2608 = vadd.f32 %v1536, %v2198
        %v2609 = vadd.f32 %v1671, %v2333
        %v2610 = vadd.f32 %v1806, %v2468
        %v2611 = vadd.f32 %v1539, %v2201
        %v2612 = vadd.f32 %v1674, %v2336
        %v2613 = vadd.f32 %v1809, %v2471
        %v2614 = vadd.f32 %v1541, %v2203
        %v2615 = vadd.f32 %v1676, %v2338
        %v2616 = vadd.f32 %v1811, %v2473
        %v2617 = vadd.f32 %v1544, %v2206
        %v2618 = vadd.f32 %v1679, %v2341
        %v2619 = vadd.f32 %v1814, %v2476
        %v2620 = vadd.f32 %v1546, %v2208
        %v2621 = vadd.f32 %v1681, %v2343
        %v2622 = vadd.f32 %v1816, %v2478
        %v2623 = vadd.f32 %v1549, %v2211
        %v2624 = vadd.f32 %v1684, %v2346
        %v2625 = vadd.f32 %v1819, %v2481
        %v2626 = vadd.f32 %v1551, %v2213
        %v2627 = vadd.f32 %v1686, %v2348
        %v2628 = vadd.f32 %v1821, %v2483
        %v2629 = vadd.f32 %v1554, %v2216
        %v2630 = vadd.f32 %v1689, %v2351
        %v2631 = vadd.f32 %v1824, %v2486
        %v2632 = vadd.f32 %v1556, %v2218
        %v2633 = vadd.f32 %v1691, %v2353
        %v2634 = vadd.f32 %v1826, %v2488
        %v2635 = vadd.f32 %v1559, %v2221
        %v2636 = vadd.f32 %v1694, %v2356
        %v2637 = vadd.f32 %v1829, %v2491
        %v2638 = vadd.f32 %v1561, %v2223
        %v2639 = vadd.f32 %v1696, %v2358
        %v2640 = vadd.f32 %v1831, %v2493
        %v2641 = vadd.f32 %v1564, %v2226
        %v2642 = vadd.f32 %v1699, %v2361
        %v2643 = vadd.f32 %v1834, %v2496
        %v2644 = vadd.f32 %v1566, %v2228
        %v2645 = vadd.f32 %v1701, %v2363
        %v2646 = vadd.f32 %v1836, %v2498
        %v2647 = vadd.f32 %v1569, %v2231
        %v2648 = vadd.f32 %v1704, %v2366
        %v2649 = vadd.f32 %v1839, %v2501
        %v2650 = vadd.f32 %v1571, %v2233
        %v2651 = vadd.f32 %v1706, %v2368
        %v2652 = vadd.f32 %v1841, %v2503
        %v2653 = vadd.f32 %v1574, %v2236
        %v2654 = vadd.f32 %v1709, %v2371
        %v2655 = vadd.f32 %v1844, %v2506
        %v2656 = vadd.f32 %v1576, %v2238
        %v2657 = vadd.f32 %v1711, %v2373
        %v2658 = vadd.f32 %v1846, %v2508
        %v2659 = vadd.f32 %v1579, %v2241
        %v2660 = vadd.f32 %v1714, %v2376
        %v2661 = vadd.f32 %v1849, %v2511
        %v2662 = vadd.f32 %v1581, %v2243
        %v2663 = vadd.f32 %v1716, %v2378
        %v2664 = vadd.f32 %v1851, %v2513
        %v2665 = vadd.f32 %v1719, %v2381
        %v2666 = vadd.f32 %v1854, %v2516
        %v2667 = vadd.f32 %v1721, %v2383
        %v2668 = vadd.f32 %v1856, %v2518
        %v2669 = vadd.f32 %v1724, %v2386
        %v2670 = vadd.f32 %v1859, %v2521
        %v2671 = vadd.f32 %v1861, %v2523
        %v2672 = vadd.f32 %v1864, %v2526
        %v2673 = vadd.f32 %v1866, %v2528
        %v2674 = vadd.f32 %v2530, %v2534
        %v2675 = vadd.f32 %v2531, %v2536
        %v2676 = vadd.f32 %v2532, %v2538
        %v2677 = vadd.f32 %v2533, %v2540
        %v2678 = vadd.f32 %v2535, %v2543
        %v2679 = vadd.f32 %v2537, %v2546
        %v2680 = vadd.f32 %v2539, %v2549
        %v2681 = vadd.f32 %v2542, %v2552
        %v2682 = vadd.f32 %v2545, %v2555
        %v2683 = vadd.f32 %v2548, %v2558
        %v2684 = vadd.f32 %v2551, %v2561
        %v2685 = vadd.f32 %v2554, %v2564
        %v2686 = vadd.f32 %v2557, %v2567
        %v2687 = vadd.f32 %v2560, %v2570
        %v2688 = vadd.f32 %v2563, %v2573
        %v2689 = vadd.f32 %v2566, %v2576
        %v2690 = vadd.f32 %v2569, %v2579
        %v2691 = vadd.f32 %v2572, %v2582
        %v2692 = vadd.f32 %v2575, %v2585
        %v2693 = vadd.f32 %v2578, %v2588
        %v2694 = vadd.f32 %v2581, %v2591
        %v2695 = vadd.f32 %v2584, %v2594
        %v2696 = vadd.f32 %v2587, %v2597
        %v2697 = vadd.f32 %v2590, %v2600
        %v2698 = vadd.f32 %v2593, %v2603
        %v2699 = vadd.f32 %v2596, %v2606
        %v2700 = vadd.f32 %v2599, %v2609
        %v2701 = vadd.f32 %v2602, %v2612
        %v2702 = vadd.f32 %v2605, %v2615
        %v2703 = vadd.f32 %v2608, %v2618
        %v2704 = vadd.f32 %v2611, %v2621
        %v2705 = vadd.f32 %v2614, %v2624
        %v2706 = vadd.f32 %v2617, %v2627
        %v2707 = vadd.f32 %v2620, %v2630
        %v2708 = vadd.f32 %v2623, %v2633
        %v2709 = vadd.f32 %v2626, %v2636
        %v2710 = vadd.f32 %v2629, %v2639
        %v2711 = vadd.f32 %v2632, %v2642
        %v2712 = vadd.f32 %v2635, %v2645
        %v2713 = vadd.f32 %v2638, %v2648
        %v2714 = vadd.f32 %v2641, %v2651
        %v2715 = vadd.f32 %v2644, %v2654
        %v2716 = vadd.f32 %v2647, %v2657
        %v2717 = vadd.f32 %v2650, %v2660
        %v2718 = vadd.f32 %v2653, %v2663
        %v2719 = vadd.f32 %v2656, %v2665
        %v2720 = vadd.f32 %v2659, %v2667
        %v2721 = vadd.f32 %v2662, %v2669
        %v2722 = vadd.f32 %v2674, %v2541
        %v2723 = vadd.f32 %v2675, %v2544
        %v2724 = vadd.f32 %v2676, %v2547
        %v2725 = vadd.f32 %v2677, %v2550
        %v2726 = vadd.f32 %v2678, %v2553
        %v2727 = vadd.f32 %v2679, %v2556
        %v2728 = vadd.f32 %v2680, %v2559
        %v2729 = vadd.f32 %v2681, %v2562
        %v2730 = vadd.f32 %v2682, %v2565
        %v2731 = vadd.f32 %v2683, %v2568
        %v2732 = vadd.f32 %v2684, %v2571
        %v2733 = vadd.f32 %v2685, %v2574
        %v2734 = vadd.f32 %v2686, %v2577
        %v2735 = vadd.f32 %v2687, %v2580
        %v2736 = vadd.f32 %v2688, %v2583
        %v2737 = vadd.f32 %v2689, %v2586
        %v2738 = vadd.f32 %v2690, %v2589
        %v2739 = vadd.f32 %v2691, %v2592
        %v2740 = vadd.f32 %v2692, %v2595
        %v2741 = vadd.f32 %v2693, %v2598
        %v2742 = vadd.f32 %v2694, %v2601
        %v2743 = vadd.f32 %v2695, %v2604
        %v2744 = vadd.f32 %v2696, %v2607
        %v2745 = vadd.f32 %v2697, %v2610
        %v2746 = vadd.f32 %v2698, %v2613
        %v2747 = vadd.f32 %v2699, %v2616
        %v2748 = vadd.f32 %v2700, %v2619
        %v2749 = vadd.f32 %v2701, %v2622
        %v2750 = vadd.f32 %v2702, %v2625
        %v2751 = vadd.f32 %v2703, %v2628
        %v2752 = vadd.f32 %v2704, %v2631
        %v2753 = vadd.f32 %v2705, %v2634
        %v2754 = vadd.f32 %v2706, %v2637
        %v2755 = vadd.f32 %v2707, %v2640
        %v2756 = vadd.f32 %v2708, %v2643
        %v2757 = vadd.f32 %v2709, %v2646
        %v2758 = vadd.f32 %v2710, %v2649
        %v2759 = vadd.f32 %v2711, %v2652
        %v2760 = vadd.f32 %v2712, %v2655
        %v2761 = vadd.f32 %v2713, %v2658
        %v2762 = vadd.f32 %v2714, %v2661
        %v2763 = vadd.f32 %v2715, %v2664
        %v2764 = vadd.f32 %v2716, %v2666
        %v2765 = vadd.f32 %v2717, %v2668
        %v2766 = vadd.f32 %v2718, %v2670
        %v2767 = vadd.f32 %v2719, %v2671
        %v2768 = vadd.f32 %v2720, %v2672
        %v2769 = vadd.f32 %v2721, %v2673
        %v2770 = vld [vmem:[%s3] sm:$0x1]
        %v2771 = vperm.slane %v2770, 0
        %v2772 = vmul.f32 %v2722, %v2771
        %v2773 = vmul.f32 %v2723, %v2771
        %v2774 = vmul.f32 %v2724, %v2771
        %v2775 = vmul.f32 %v2725, %v2771
        %v2776 = vmul.f32 %v2726, %v2771
        %v2777 = vmul.f32 %v2727, %v2771
        %v2778 = vmul.f32 %v2728, %v2771
        %v2779 = vmul.f32 %v2729, %v2771
        %v2780 = vmul.f32 %v2730, %v2771
        %v2781 = vmul.f32 %v2731, %v2771
        %v2782 = vmul.f32 %v2732, %v2771
        %v2783 = vmul.f32 %v2733, %v2771
        %v2784 = vmul.f32 %v2734, %v2771
        %v2785 = vmul.f32 %v2735, %v2771
        %v2786 = vmul.f32 %v2736, %v2771
        %v2787 = vmul.f32 %v2737, %v2771
        %v2788 = vmul.f32 %v2738, %v2771
        %v2789 = vmul.f32 %v2739, %v2771
        %v2790 = vmul.f32 %v2740, %v2771
        %v2791 = vmul.f32 %v2741, %v2771
        %v2792 = vmul.f32 %v2742, %v2771
        %v2793 = vmul.f32 %v2743, %v2771
        %v2794 = vmul.f32 %v2744, %v2771
        %v2795 = vmul.f32 %v2745, %v2771
        %v2796 = vmul.f32 %v2746, %v2771
        %v2797 = vmul.f32 %v2747, %v2771
        %v2798 = vmul.f32 %v2748, %v2771
        %v2799 = vmul.f32 %v2749, %v2771
        %v2800 = vmul.f32 %v2750, %v2771
        %v2801 = vmul.f32 %v2751, %v2771
        %v2802 = vmul.f32 %v2752, %v2771
        %v2803 = vmul.f32 %v2753, %v2771
        %v2804 = vmul.f32 %v2754, %v2771
        %v2805 = vmul.f32 %v2755, %v2771
        %v2806 = vmul.f32 %v2756, %v2771
        %v2807 = vmul.f32 %v2757, %v2771
        %v2808 = vmul.f32 %v2758, %v2771
        %v2809 = vmul.f32 %v2759, %v2771
        %v2810 = vmul.f32 %v2760, %v2771
        %v2811 = vmul.f32 %v2761, %v2771
        %v2812 = vmul.f32 %v2762, %v2771
        %v2813 = vmul.f32 %v2763, %v2771
        %v2814 = vmul.f32 %v2764, %v2771
        %v2815 = vmul.f32 %v2765, %v2771
        %v2816 = vmul.f32 %v2766, %v2771
        %v2817 = vmul.f32 %v2767, %v2771
        %v2818 = vmul.f32 %v2768, %v2771
        %v2819 = vmul.f32 %v2769, %v2771
        %v2820 = vld [vmem:[%s3 + $0x1] sm:$0x1]
        %v2821 = vperm.slane %v2820, 0
        %v2822 = vadd.f32 %v2772, %v2821
        %v2823 = vadd.f32 %v2773, %v2821
        %v2824 = vadd.f32 %v2774, %v2821
        %v2825 = vadd.f32 %v2775, %v2821
        %v2826 = vadd.f32 %v2776, %v2821
        %v2827 = vadd.f32 %v2777, %v2821
        %v2828 = vadd.f32 %v2778, %v2821
        %v2829 = vadd.f32 %v2779, %v2821
        %v2830 = vadd.f32 %v2780, %v2821
        %v2831 = vadd.f32 %v2781, %v2821
        %v2832 = vadd.f32 %v2782, %v2821
        %v2833 = vadd.f32 %v2783, %v2821
        %v2834 = vadd.f32 %v2784, %v2821
        %v2835 = vadd.f32 %v2785, %v2821
        %v2836 = vadd.f32 %v2786, %v2821
        %v2837 = vadd.f32 %v2787, %v2821
        %v2838 = vadd.f32 %v2788, %v2821
        %v2839 = vadd.f32 %v2789, %v2821
        %v2840 = vadd.f32 %v2790, %v2821
        %v2841 = vadd.f32 %v2791, %v2821
        %v2842 = vadd.f32 %v2792, %v2821
        %v2843 = vadd.f32 %v2793, %v2821
        %v2844 = vadd.f32 %v2794, %v2821
        %v2845 = vadd.f32 %v2795, %v2821
        %v2846 = vadd.f32 %v2796, %v2821
        %v2847 = vadd.f32 %v2797, %v2821
        %v2848 = vadd.f32 %v2798, %v2821
        %v2849 = vadd.f32 %v2799, %v2821
        %v2850 = vadd.f32 %v2800, %v2821
        %v2851 = vadd.f32 %v2801, %v2821
        %v2852 = vadd.f32 %v2802, %v2821
        %v2853 = vadd.f32 %v2803, %v2821
        %v2854 = vadd.f32 %v2804, %v2821
        %v2855 = vadd.f32 %v2805, %v2821
        %v2856 = vadd.f32 %v2806, %v2821
        %v2857 = vadd.f32 %v2807, %v2821
        %v2858 = vadd.f32 %v2808, %v2821
        %v2859 = vadd.f32 %v2809, %v2821
        %v2860 = vadd.f32 %v2810, %v2821
        %v2861 = vadd.f32 %v2811, %v2821
        %v2862 = vadd.f32 %v2812, %v2821
        %v2863 = vadd.f32 %v2813, %v2821
        %v2864 = vadd.f32 %v2814, %v2821
        %v2865 = vadd.f32 %v2815, %v2821
        %v2866 = vadd.f32 %v2816, %v2821
        %v2867 = vadd.f32 %v2817, %v2821
        %v2868 = vadd.f32 %v2818, %v2821
        %v2869 = vadd.f32 %v2819, %v2821
        %v2870 = vmax.f32 %v2822, 0.0
        %v2871 = vmax.f32 %v2823, 0.0
        %v2872 = vmax.f32 %v2824, 0.0
        %v2873 = vmax.f32 %v2825, 0.0
        %v2874 = vmax.f32 %v2826, 0.0
        %v2875 = vmax.f32 %v2827, 0.0
        %v2876 = vmax.f32 %v2828, 0.0
        %v2877 = vmax.f32 %v2829, 0.0
        %v2878 = vmax.f32 %v2830, 0.0
        %v2879 = vmax.f32 %v2831, 0.0
        %v2880 = vmax.f32 %v2832, 0.0
        %v2881 = vmax.f32 %v2833, 0.0
        %v2882 = vmax.f32 %v2834, 0.0
        %v2883 = vmax.f32 %v2835, 0.0
        %v2884 = vmax.f32 %v2836, 0.0
        %v2885 = vmax.f32 %v2837, 0.0
        %v2886 = vmax.f32 %v2838, 0.0
        %v2887 = vmax.f32 %v2839, 0.0
        %v2888 = vmax.f32 %v2840, 0.0
        %v2889 = vmax.f32 %v2841, 0.0
        %v2890 = vmax.f32 %v2842, 0.0
        %v2891 = vmax.f32 %v2843, 0.0
        %v2892 = vmax.f32 %v2844, 0.0
        %v2893 = vmax.f32 %v2845, 0.0
        %v2894 = vmax.f32 %v2846, 0.0
        %v2895 = vmax.f32 %v2847, 0.0
        %v2896 = vmax.f32 %v2848, 0.0
        %v2897 = vmax.f32 %v2849, 0.0
        %v2898 = vmax.f32 %v2850, 0.0
        %v2899 = vmax.f32 %v2851, 0.0
        %v2900 = vmax.f32 %v2852, 0.0
        %v2901 = vmax.f32 %v2853, 0.0
        %v2902 = vmax.f32 %v2854, 0.0
        %v2903 = vmax.f32 %v2855, 0.0
        %v2904 = vmax.f32 %v2856, 0.0
        %v2905 = vmax.f32 %v2857, 0.0
        %v2906 = vmax.f32 %v2858, 0.0
        %v2907 = vmax.f32 %v2859, 0.0
        %v2908 = vmax.f32 %v2860, 0.0
        %v2909 = vmax.f32 %v2861, 0.0
        %v2910 = vmax.f32 %v2862, 0.0
        %v2911 = vmax.f32 %v2863, 0.0
        %v2912 = vmax.f32 %v2864, 0.0
        %v2913 = vmax.f32 %v2865, 0.0
        %v2914 = vmax.f32 %v2866, 0.0
        %v2915 = vmax.f32 %v2867, 0.0
        %v2916 = vmax.f32 %v2868, 0.0
        %v2917 = vmax.f32 %v2869, 0.0
        %v2918 = vld [vmem:[%s5] sm:$0xff]
        %v2919 = vld [vmem:[%s5 + $0x8] sm:$0xff]
        %v2920 = vld [vmem:[%s5 + $0x10] sm:$0xff]
        %v2921 = vld [vmem:[%s5 + $0x18] sm:$0xff]
        %v2922 = vld [vmem:[%s5 + $0x20] sm:$0xff]
        %v2923 = vld [vmem:[%s5 + $0x28] sm:$0xff]
        %v2924 = vld [vmem:[%s5 + $0x30] sm:$0xff]
        %v2925 = vld [vmem:[%s5 + $0x38] sm:$0xff]
        %v2926 = vld [vmem:[%s5 + $0x40] sm:$0xff]
        %v2927 = vld [vmem:[%s5 + $0x48] sm:$0xff]
        %v2928 = vld [vmem:[%s5 + $0x50] sm:$0xff]
        %v2929 = vld [vmem:[%s5 + $0x58] sm:$0xff]
        %v2930 = vld [vmem:[%s5 + $0x60] sm:$0xff]
        %v2931 = vld [vmem:[%s5 + $0x68] sm:$0xff]
        %v2932 = vld [vmem:[%s5 + $0x70] sm:$0xff]
        %v2933 = vld [vmem:[%s5 + $0x78] sm:$0xff]
        %v2934 = vld [vmem:[%s5 + $0x80] sm:$0xff]
        %v2935 = vld [vmem:[%s5 + $0x88] sm:$0xff]
        %v2936 = vld [vmem:[%s5 + $0x90] sm:$0xff]
        %v2937 = vld [vmem:[%s5 + $0x98] sm:$0xff]
        %v2938 = vld [vmem:[%s5 + $0xa0] sm:$0xff]
        %v2939 = vld [vmem:[%s5 + $0xa8] sm:$0xff]
        %v2940 = vld [vmem:[%s5 + $0xb0] sm:$0xff]
        %v2941 = vld [vmem:[%s5 + $0xb8] sm:$0xff]
        %v2942 = vld [vmem:[%s5 + $0xc0] sm:$0xff]
        %v2943 = vld [vmem:[%s5 + $0xc8] sm:$0xff]
        %v2944 = vld [vmem:[%s5 + $0xd0] sm:$0xff]
        %v2945 = vld [vmem:[%s5 + $0xd8] sm:$0xff]
        %v2946 = vld [vmem:[%s5 + $0xe0] sm:$0xff]
        %v2947 = vld [vmem:[%s5 + $0xe8] sm:$0xff]
        %v2948 = vld [vmem:[%s5 + $0xf0] sm:$0xff]
        %v2949 = vld [vmem:[%s5 + $0xf8] sm:$0xff]
        %v2950 = vld [vmem:[%s5 + $0x100] sm:$0xff]
        %v2951 = vld [vmem:[%s5 + $0x108] sm:$0xff]
        %v2952 = vld [vmem:[%s5 + $0x110] sm:$0xff]
        %v2953 = vld [vmem:[%s5 + $0x118] sm:$0xff]
        %v2954 = vld [vmem:[%s5 + $0x120] sm:$0xff]
        %v2955 = vld [vmem:[%s5 + $0x128] sm:$0xff]
        %v2956 = vld [vmem:[%s5 + $0x130] sm:$0xff]
        %v2957 = vld [vmem:[%s5 + $0x138] sm:$0xff]
        %v2958 = vld [vmem:[%s5 + $0x140] sm:$0xff]
        %v2959 = vld [vmem:[%s5 + $0x148] sm:$0xff]
        %v2960 = vld [vmem:[%s5 + $0x150] sm:$0xff]
        %v2961 = vld [vmem:[%s5 + $0x158] sm:$0xff]
        %v2962 = vld [vmem:[%s5 + $0x160] sm:$0xff]
        %v2963 = vld [vmem:[%s5 + $0x168] sm:$0xff]
        %v2964 = vld [vmem:[%s5 + $0x170] sm:$0xff]
        %v2965 = vld [vmem:[%s5 + $0x178] sm:$0xff]
        %2967 = vset.pattern.permute.xlu0 0
        %2968 = vperm.xlu0 %2967, %v2918
        %v2969 = vpop.permute.xlu0 %2968
        %2972 = vset.pattern.permute.xlu0 0
        %2973 = vperm.xlu0 %2972, %v2919
        %v2974 = vpop.permute.xlu0 %2973
        %2977 = vset.pattern.permute.xlu0 0
        %2978 = vperm.xlu0 %2977, %v2920
        %v2979 = vpop.permute.xlu0 %2978
        %2982 = vset.pattern.permute.xlu0 0
        %2983 = vperm.xlu0 %2982, %v2921
        %v2984 = vpop.permute.xlu0 %2983
        %2987 = vset.pattern.permute.xlu0 0
        %2988 = vperm.xlu0 %2987, %v2922
        %v2989 = vpop.permute.xlu0 %2988
        %2992 = vset.pattern.permute.xlu0 0
        %2993 = vperm.xlu0 %2992, %v2923
        %v2994 = vpop.permute.xlu0 %2993
        %2997 = vset.pattern.permute.xlu0 0
        %2998 = vperm.xlu0 %2997, %v2924
        %v2999 = vpop.permute.xlu0 %2998
        %3002 = vset.pattern.permute.xlu0 0
        %3003 = vperm.xlu0 %3002, %v2925
        %v3004 = vpop.permute.xlu0 %3003
        %3007 = vset.pattern.permute.xlu0 0
        %3008 = vperm.xlu0 %3007, %v2926
        %v3009 = vpop.permute.xlu0 %3008
        %3012 = vset.pattern.permute.xlu0 0
        %3013 = vperm.xlu0 %3012, %v2927
        %v3014 = vpop.permute.xlu0 %3013
        %3017 = vset.pattern.permute.xlu0 0
        %3018 = vperm.xlu0 %3017, %v2928
        %v3019 = vpop.permute.xlu0 %3018
        %3022 = vset.pattern.permute.xlu0 0
        %3023 = vperm.xlu0 %3022, %v2929
        %v3024 = vpop.permute.xlu0 %3023
        %3027 = vset.pattern.permute.xlu0 0
        %3028 = vperm.xlu0 %3027, %v2930
        %v3029 = vpop.permute.xlu0 %3028
        %3032 = vset.pattern.permute.xlu0 0
        %3033 = vperm.xlu0 %3032, %v2931
        %v3034 = vpop.permute.xlu0 %3033
        %3037 = vset.pattern.permute.xlu0 0
        %3038 = vperm.xlu0 %3037, %v2932
        %v3039 = vpop.permute.xlu0 %3038
        %3042 = vset.pattern.permute.xlu0 0
        %3043 = vperm.xlu0 %3042, %v2933
        %v3044 = vpop.permute.xlu0 %3043
        %3047 = vset.pattern.permute.xlu0 0
        %3048 = vperm.xlu0 %3047, %v2934
        %v3049 = vpop.permute.xlu0 %3048
        %3052 = vset.pattern.permute.xlu0 0
        %3053 = vperm.xlu0 %3052, %v2935
        %v3054 = vpop.permute.xlu0 %3053
        %3057 = vset.pattern.permute.xlu0 0
        %3058 = vperm.xlu0 %3057, %v2936
        %v3059 = vpop.permute.xlu0 %3058
        %3062 = vset.pattern.permute.xlu0 0
        %3063 = vperm.xlu0 %3062, %v2937
        %v3064 = vpop.permute.xlu0 %3063
        %3067 = vset.pattern.permute.xlu0 0
        %3068 = vperm.xlu0 %3067, %v2938
        %v3069 = vpop.permute.xlu0 %3068
        %3072 = vset.pattern.permute.xlu0 0
        %3073 = vperm.xlu0 %3072, %v2939
        %v3074 = vpop.permute.xlu0 %3073
        %3077 = vset.pattern.permute.xlu0 0
        %3078 = vperm.xlu0 %3077, %v2940
        %v3079 = vpop.permute.xlu0 %3078
        %3082 = vset.pattern.permute.xlu0 0
        %3083 = vperm.xlu0 %3082, %v2941
        %v3084 = vpop.permute.xlu0 %3083
        %3087 = vset.pattern.permute.xlu0 0
        %3088 = vperm.xlu0 %3087, %v2942
        %v3089 = vpop.permute.xlu0 %3088
        %3092 = vset.pattern.permute.xlu0 0
        %3093 = vperm.xlu0 %3092, %v2943
        %v3094 = vpop.permute.xlu0 %3093
        %3097 = vset.pattern.permute.xlu0 0
        %3098 = vperm.xlu0 %3097, %v2944
        %v3099 = vpop.permute.xlu0 %3098
        %3102 = vset.pattern.permute.xlu0 0
        %3103 = vperm.xlu0 %3102, %v2945
        %v3104 = vpop.permute.xlu0 %3103
        %3107 = vset.pattern.permute.xlu0 0
        %3108 = vperm.xlu0 %3107, %v2946
        %v3109 = vpop.permute.xlu0 %3108
        %3112 = vset.pattern.permute.xlu0 0
        %3113 = vperm.xlu0 %3112, %v2947
        %v3114 = vpop.permute.xlu0 %3113
        %3117 = vset.pattern.permute.xlu0 0
        %3118 = vperm.xlu0 %3117, %v2948
        %v3119 = vpop.permute.xlu0 %3118
        %3122 = vset.pattern.permute.xlu0 0
        %3123 = vperm.xlu0 %3122, %v2949
        %v3124 = vpop.permute.xlu0 %3123
        %3127 = vset.pattern.permute.xlu0 0
        %3128 = vperm.xlu0 %3127, %v2950
        %v3129 = vpop.permute.xlu0 %3128
        %3132 = vset.pattern.permute.xlu0 0
        %3133 = vperm.xlu0 %3132, %v2951
        %v3134 = vpop.permute.xlu0 %3133
        %3137 = vset.pattern.permute.xlu0 0
        %3138 = vperm.xlu0 %3137, %v2952
        %v3139 = vpop.permute.xlu0 %3138
        %3142 = vset.pattern.permute.xlu0 0
        %3143 = vperm.xlu0 %3142, %v2953
        %v3144 = vpop.permute.xlu0 %3143
        %3147 = vset.pattern.permute.xlu0 0
        %3148 = vperm.xlu0 %3147, %v2954
        %v3149 = vpop.permute.xlu0 %3148
        %3152 = vset.pattern.permute.xlu0 0
        %3153 = vperm.xlu0 %3152, %v2955
        %v3154 = vpop.permute.xlu0 %3153
        %3157 = vset.pattern.permute.xlu0 0
        %3158 = vperm.xlu0 %3157, %v2956
        %v3159 = vpop.permute.xlu0 %3158
        %3162 = vset.pattern.permute.xlu0 0
        %3163 = vperm.xlu0 %3162, %v2957
        %v3164 = vpop.permute.xlu0 %3163
        %3167 = vset.pattern.permute.xlu0 0
        %3168 = vperm.xlu0 %3167, %v2958
        %v3169 = vpop.permute.xlu0 %3168
        %3172 = vset.pattern.permute.xlu0 0
        %3173 = vperm.xlu0 %3172, %v2959
        %v3174 = vpop.permute.xlu0 %3173
        %3177 = vset.pattern.permute.xlu0 0
        %3178 = vperm.xlu0 %3177, %v2960
        %v3179 = vpop.permute.xlu0 %3178
        %3182 = vset.pattern.permute.xlu0 0
        %3183 = vperm.xlu0 %3182, %v2961
        %v3184 = vpop.permute.xlu0 %3183
        %3187 = vset.pattern.permute.xlu0 0
        %3188 = vperm.xlu0 %3187, %v2962
        %v3189 = vpop.permute.xlu0 %3188
        %3192 = vset.pattern.permute.xlu0 0
        %3193 = vperm.xlu0 %3192, %v2963
        %v3194 = vpop.permute.xlu0 %3193
        %3197 = vset.pattern.permute.xlu0 0
        %3198 = vperm.xlu0 %3197, %v2964
        %v3199 = vpop.permute.xlu0 %3198
        %3202 = vset.pattern.permute.xlu0 0
        %3203 = vperm.xlu0 %3202, %v2965
        %v3204 = vpop.permute.xlu0 %3203
        %v3206 = vmul.f32 %v2870, %v2969
        %v3207 = vmul.f32 %v2871, %v2974
        %v3208 = vmul.f32 %v2872, %v2979
        %v3209 = vmul.f32 %v2873, %v2984
        %v3210 = vmul.f32 %v2874, %v2989
        %v3211 = vmul.f32 %v2875, %v2994
        %v3212 = vmul.f32 %v2876, %v2999
        %v3213 = vmul.f32 %v2877, %v3004
        %v3214 = vmul.f32 %v2878, %v3009
        %v3215 = vmul.f32 %v2879, %v3014
        %v3216 = vmul.f32 %v2880, %v3019
        %v3217 = vmul.f32 %v2881, %v3024
        %v3218 = vmul.f32 %v2882, %v3029
        %v3219 = vmul.f32 %v2883, %v3034
        %v3220 = vmul.f32 %v2884, %v3039
        %v3221 = vmul.f32 %v2885, %v3044
        %v3222 = vmul.f32 %v2886, %v3049
        %v3223 = vmul.f32 %v2887, %v3054
        %v3224 = vmul.f32 %v2888, %v3059
        %v3225 = vmul.f32 %v2889, %v3064
        %v3226 = vmul.f32 %v2890, %v3069
        %v3227 = vmul.f32 %v2891, %v3074
        %v3228 = vmul.f32 %v2892, %v3079
        %v3229 = vmul.f32 %v2893, %v3084
        %v3230 = vmul.f32 %v2894, %v3089
        %v3231 = vmul.f32 %v2895, %v3094
        %v3232 = vmul.f32 %v2896, %v3099
        %v3233 = vmul.f32 %v2897, %v3104
        %v3234 = vmul.f32 %v2898, %v3109
        %v3235 = vmul.f32 %v2899, %v3114
        %v3236 = vmul.f32 %v2900, %v3119
        %v3237 = vmul.f32 %v2901, %v3124
        %v3238 = vmul.f32 %v2902, %v3129
        %v3239 = vmul.f32 %v2903, %v3134
        %v3240 = vmul.f32 %v2904, %v3139
        %v3241 = vmul.f32 %v2905, %v3144
        %v3242 = vmul.f32 %v2906, %v3149
        %v3243 = vmul.f32 %v2907, %v3154
        %v3244 = vmul.f32 %v2908, %v3159
        %v3245 = vmul.f32 %v2909, %v3164
        %v3246 = vmul.f32 %v2910, %v3169
        %v3247 = vmul.f32 %v2911, %v3174
        %v3248 = vmul.f32 %v2912, %v3179
        %v3249 = vmul.f32 %v2913, %v3184
        %v3250 = vmul.f32 %v2914, %v3189
        %v3251 = vmul.f32 %v2915, %v3194
        %v3252 = vmul.f32 %v2916, %v3199
        %v3253 = vmul.f32 %v2917, %v3204
        %v3254 = vpack.c.bf16 %v3206, %v3206
        %v3255 = vpack.c.bf16 %v3207, %v3207
        %v3256 = vpack.c.bf16 %v3208, %v3208
        %v3257 = vpack.c.bf16 %v3209, %v3209
        %v3258 = vpack.c.bf16 %v3210, %v3210
        %v3259 = vpack.c.bf16 %v3211, %v3211
        %v3260 = vpack.c.bf16 %v3212, %v3212
        %v3261 = vpack.c.bf16 %v3213, %v3213
        %v3262 = vpack.c.bf16 %v3214, %v3214
        %v3263 = vpack.c.bf16 %v3215, %v3215
        %v3264 = vpack.c.bf16 %v3216, %v3216
        %v3265 = vpack.c.bf16 %v3217, %v3217
        %v3266 = vpack.c.bf16 %v3218, %v3218
        %v3267 = vpack.c.bf16 %v3219, %v3219
        %v3268 = vpack.c.bf16 %v3220, %v3220
        %v3269 = vpack.c.bf16 %v3221, %v3221
        %v3270 = vpack.c.bf16 %v3222, %v3222
        %v3271 = vpack.c.bf16 %v3223, %v3223
        %v3272 = vpack.c.bf16 %v3224, %v3224
        %v3273 = vpack.c.bf16 %v3225, %v3225
        %v3274 = vpack.c.bf16 %v3226, %v3226
        %v3275 = vpack.c.bf16 %v3227, %v3227
        %v3276 = vpack.c.bf16 %v3228, %v3228
        %v3277 = vpack.c.bf16 %v3229, %v3229
        %v3278 = vpack.c.bf16 %v3230, %v3230
        %v3279 = vpack.c.bf16 %v3231, %v3231
        %v3280 = vpack.c.bf16 %v3232, %v3232
        %v3281 = vpack.c.bf16 %v3233, %v3233
        %v3282 = vpack.c.bf16 %v3234, %v3234
        %v3283 = vpack.c.bf16 %v3235, %v3235
        %v3284 = vpack.c.bf16 %v3236, %v3236
        %v3285 = vpack.c.bf16 %v3237, %v3237
        %v3286 = vpack.c.bf16 %v3238, %v3238
        %v3287 = vpack.c.bf16 %v3239, %v3239
        %v3288 = vpack.c.bf16 %v3240, %v3240
        %v3289 = vpack.c.bf16 %v3241, %v3241
        %v3290 = vpack.c.bf16 %v3242, %v3242
        %v3291 = vpack.c.bf16 %v3243, %v3243
        %v3292 = vpack.c.bf16 %v3244, %v3244
        %v3293 = vpack.c.bf16 %v3245, %v3245
        %v3294 = vpack.c.bf16 %v3246, %v3246
        %v3295 = vpack.c.bf16 %v3247, %v3247
        %v3296 = vpack.c.bf16 %v3248, %v3248
        %v3297 = vpack.c.bf16 %v3249, %v3249
        %v3298 = vpack.c.bf16 %v3250, %v3250
        %v3299 = vpack.c.bf16 %v3251, %v3251
        %v3300 = vpack.c.bf16 %v3252, %v3252
        %v3301 = vpack.c.bf16 %v3253, %v3253
        %3302 = vst [vmem:[#allocation2] sm:$0xf] 0
        %3303 = vst [vmem:[#allocation2 + $0x4] sm:$0xf] 0
        %3304 = vst [vmem:[#allocation2 + $0x8] sm:$0xf] 0
        %3305 = vst [vmem:[#allocation2 + $0xc] sm:$0xf] 0
        %3306 = vst [vmem:[#allocation2 + $0xd0] sm:$0xf] 0
        %3307 = vst [vmem:[#allocation2 + $0xd4] sm:$0xf] 0
        %3308 = vst [vmem:[#allocation2 + $0xd8] sm:$0xf] 0
        %3309 = vst [vmem:[#allocation2 + $0xdc] sm:$0xf] 0
        %3310 = vst [vmem:[#allocation2 + $0x10] sm:$0xf] %v3254
        %3311 = vst [vmem:[#allocation2 + $0x14] sm:$0xf] %v3255
        %3312 = vst [vmem:[#allocation2 + $0x18] sm:$0xf] %v3256
        %3313 = vst [vmem:[#allocation2 + $0x1c] sm:$0xf] %v3257
        %3314 = vst [vmem:[#allocation2 + $0x20] sm:$0xf] %v3258
        %3315 = vst [vmem:[#allocation2 + $0x24] sm:$0xf] %v3259
        %3316 = vst [vmem:[#allocation2 + $0x28] sm:$0xf] %v3260
        %3317 = vst [vmem:[#allocation2 + $0x2c] sm:$0xf] %v3261
        %3318 = vst [vmem:[#allocation2 + $0x30] sm:$0xf] %v3262
        %3319 = vst [vmem:[#allocation2 + $0x34] sm:$0xf] %v3263
        %3320 = vst [vmem:[#allocation2 + $0x38] sm:$0xf] %v3264
        %3321 = vst [vmem:[#allocation2 + $0x3c] sm:$0xf] %v3265
        %3322 = vst [vmem:[#allocation2 + $0x40] sm:$0xf] %v3266
        %3323 = vst [vmem:[#allocation2 + $0x44] sm:$0xf] %v3267
        %3324 = vst [vmem:[#allocation2 + $0x48] sm:$0xf] %v3268
        %3325 = vst [vmem:[#allocation2 + $0x4c] sm:$0xf] %v3269
        %3326 = vst [vmem:[#allocation2 + $0x50] sm:$0xf] %v3270
        %3327 = vst [vmem:[#allocation2 + $0x54] sm:$0xf] %v3271
        %3328 = vst [vmem:[#allocation2 + $0x58] sm:$0xf] %v3272
        %3329 = vst [vmem:[#allocation2 + $0x5c] sm:$0xf] %v3273
        %3330 = vst [vmem:[#allocation2 + $0x60] sm:$0xf] %v3274
        %3331 = vst [vmem:[#allocation2 + $0x64] sm:$0xf] %v3275
        %3332 = vst [vmem:[#allocation2 + $0x68] sm:$0xf] %v3276
        %3333 = vst [vmem:[#allocation2 + $0x6c] sm:$0xf] %v3277
        %3334 = vst [vmem:[#allocation2 + $0x70] sm:$0xf] %v3278
        %3335 = vst [vmem:[#allocation2 + $0x74] sm:$0xf] %v3279
        %3336 = vst [vmem:[#allocation2 + $0x78] sm:$0xf] %v3280
        %3337 = vst [vmem:[#allocation2 + $0x7c] sm:$0xf] %v3281
        %3338 = vst [vmem:[#allocation2 + $0x80] sm:$0xf] %v3282
        %3339 = vst [vmem:[#allocation2 + $0x84] sm:$0xf] %v3283
        %3340 = vst [vmem:[#allocation2 + $0x88] sm:$0xf] %v3284
        %3341 = vst [vmem:[#allocation2 + $0x8c] sm:$0xf] %v3285
        %3342 = vst [vmem:[#allocation2 + $0x90] sm:$0xf] %v3286
        %3343 = vst [vmem:[#allocation2 + $0x94] sm:$0xf] %v3287
        %3344 = vst [vmem:[#allocation2 + $0x98] sm:$0xf] %v3288
        %3345 = vst [vmem:[#allocation2 + $0x9c] sm:$0xf] %v3289
        %3346 = vst [vmem:[#allocation2 + $0xa0] sm:$0xf] %v3290
        %3347 = vst [vmem:[#allocation2 + $0xa4] sm:$0xf] %v3291
        %3348 = vst [vmem:[#allocation2 + $0xa8] sm:$0xf] %v3292
        %3349 = vst [vmem:[#allocation2 + $0xac] sm:$0xf] %v3293
        %3350 = vst [vmem:[#allocation2 + $0xb0] sm:$0xf] %v3294
        %3351 = vst [vmem:[#allocation2 + $0xb4] sm:$0xf] %v3295
        %3352 = vst [vmem:[#allocation2 + $0xb8] sm:$0xf] %v3296
        %3353 = vst [vmem:[#allocation2 + $0xbc] sm:$0xf] %v3297
        %3354 = vst [vmem:[#allocation2 + $0xc0] sm:$0xf] %v3298
        %3355 = vst [vmem:[#allocation2 + $0xc4] sm:$0xf] %v3299
        %3356 = vst [vmem:[#allocation2 + $0xc8] sm:$0xf] %v3300
        %3357 = vst [vmem:[#allocation2 + $0xcc] sm:$0xf] %v3301
        %v3358 = vld [vmem:[#allocation2] sm:$0x8]
        %v3359 = vld [vmem:[#allocation2 + $0x4] sm:$0xf]
        %v3360 = vld [vmem:[#allocation2 + $0x8] sm:$0xf]
        %v3361 = vld [vmem:[#allocation2 + $0xc] sm:$0xf]
        %v3362 = vld [vmem:[#allocation2 + $0x10] sm:$0xf]
        %v3363 = vld [vmem:[#allocation2 + $0x14] sm:$0xf]
        %v3364 = vld [vmem:[#allocation2 + $0x18] sm:$0xf]
        %v3365 = vld [vmem:[#allocation2 + $0x1c] sm:$0xf]
        %v3366 = vld [vmem:[#allocation2 + $0x20] sm:$0xf]
        %v3367 = vld [vmem:[#allocation2 + $0x24] sm:$0xf]
        %v3368 = vld [vmem:[#allocation2 + $0x28] sm:$0xf]
        %v3369 = vld [vmem:[#allocation2 + $0x2c] sm:$0xf]
        %v3370 = vld [vmem:[#allocation2 + $0x30] sm:$0xf]
        %v3371 = vld [vmem:[#allocation2 + $0x34] sm:$0xf]
        %v3372 = vld [vmem:[#allocation2 + $0x38] sm:$0xf]
        %v3373 = vld [vmem:[#allocation2 + $0x3c] sm:$0xf]
        %v3374 = vld [vmem:[#allocation2 + $0x40] sm:$0xf]
        %v3375 = vld [vmem:[#allocation2 + $0x44] sm:$0xf]
        %v3376 = vld [vmem:[#allocation2 + $0x48] sm:$0xf]
        %v3377 = vld [vmem:[#allocation2 + $0x4c] sm:$0xf]
        %v3378 = vld [vmem:[#allocation2 + $0x50] sm:$0xf]
        %v3379 = vld [vmem:[#allocation2 + $0x54] sm:$0xf]
        %v3380 = vld [vmem:[#allocation2 + $0x58] sm:$0xf]
        %v3381 = vld [vmem:[#allocation2 + $0x5c] sm:$0xf]
        %v3382 = vld [vmem:[#allocation2 + $0x60] sm:$0xf]
        %v3383 = vld [vmem:[#allocation2 + $0x64] sm:$0xf]
        %v3384 = vld [vmem:[#allocation2 + $0x68] sm:$0xf]
        %v3385 = vld [vmem:[#allocation2 + $0x6c] sm:$0xf]
        %v3386 = vld [vmem:[#allocation2 + $0x70] sm:$0xf]
        %v3387 = vld [vmem:[#allocation2 + $0x74] sm:$0xf]
        %v3388 = vld [vmem:[#allocation2 + $0x78] sm:$0xf]
        %v3389 = vld [vmem:[#allocation2 + $0x7c] sm:$0xf]
        %v3390 = vld [vmem:[#allocation2 + $0x80] sm:$0xf]
        %v3391 = vld [vmem:[#allocation2 + $0x84] sm:$0xf]
        %v3392 = vld [vmem:[#allocation2 + $0x88] sm:$0xf]
        %v3393 = vld [vmem:[#allocation2 + $0x8c] sm:$0xf]
        %v3394 = vld [vmem:[#allocation2 + $0x90] sm:$0xf]
        %v3395 = vld [vmem:[#allocation2 + $0x94] sm:$0xf]
        %v3396 = vld [vmem:[#allocation2 + $0x98] sm:$0xf]
        %v3397 = vld [vmem:[#allocation2 + $0x9c] sm:$0xf]
        %v3398 = vld [vmem:[#allocation2 + $0xa0] sm:$0xf]
        %v3399 = vld [vmem:[#allocation2 + $0xa4] sm:$0xf]
        %v3400 = vld [vmem:[#allocation2 + $0xa8] sm:$0xf]
        %v3401 = vld [vmem:[#allocation2 + $0xac] sm:$0xf]
        %v3402 = vld [vmem:[#allocation2 + $0xb0] sm:$0xf]
        %v3403 = vld [vmem:[#allocation2 + $0xb4] sm:$0xf]
        %v3404 = vld [vmem:[#allocation2 + $0xb8] sm:$0xf]
        %v3405 = vld [vmem:[#allocation2 + $0xbc] sm:$0xf]
        %v3406 = vld [vmem:[#allocation2 + $0xc0] sm:$0xf]
        %v3407 = vld [vmem:[#allocation2 + $0xc4] sm:$0xf]
        %v3408 = vld [vmem:[#allocation2 + $0xc8] sm:$0xf]
        %v3409 = vld [vmem:[#allocation2 + $0xcc] sm:$0xf]
        %v3410 = vld [vmem:[#allocation2 + $0xd0] sm:$0xf]
        %v3411 = vld [vmem:[#allocation2 + $0xd4] sm:$0xf]
        %v3412 = vld [vmem:[#allocation2 + $0xd8] sm:$0xf]
        %v3413 = vld [vmem:[%s2] sm:$0xff]
        %v3414 = vld [vmem:[%s2 + $0x8] sm:$0xf]
        %v3415 = vld [vmem:[%s2 + $0xc] sm:$0xff]
        %v3416 = vld [vmem:[%s2 + $0x14] sm:$0xf]
        %v3417 = vld [vmem:[%s2 + $0x18] sm:$0xff]
        %v3418 = vld [vmem:[%s2 + $0x20] sm:$0xf]
        %v3419 = vld [vmem:[%s2 + $0x24] sm:$0xff]
        %v3420 = vld [vmem:[%s2 + $0x2c] sm:$0xf]
        %v3421 = vld [vmem:[%s2 + $0x30] sm:$0xff]
        %v3422 = vld [vmem:[%s2 + $0x38] sm:$0xf]
        %v3423 = vld [vmem:[%s2 + $0x3c] sm:$0xff]
        %v3424 = vld [vmem:[%s2 + $0x44] sm:$0xf]
        %v3425 = vld [vmem:[%s2 + $0x48] sm:$0xff]
        %v3426 = vld [vmem:[%s2 + $0x50] sm:$0xf]
        %v3427 = vld [vmem:[%s2 + $0x54] sm:$0xff]
        %v3428 = vld [vmem:[%s2 + $0x5c] sm:$0xf]
        %v3429 = vld [vmem:[%s2 + $0x60] sm:$0xff]
        %v3430 = vld [vmem:[%s2 + $0x68] sm:$0xf]
        %v3431 = vld [vmem:[%s2 + $0x6c] sm:$0xff]
        %v3432 = vld [vmem:[%s2 + $0x74] sm:$0xf]
        %v3433 = vld [vmem:[%s2 + $0x78] sm:$0xff]
        %v3434 = vld [vmem:[%s2 + $0x80] sm:$0xf]
        %v3435 = vld [vmem:[%s2 + $0x84] sm:$0xff]
        %v3436 = vld [vmem:[%s2 + $0x8c] sm:$0xf]
        %v3437 = vld [vmem:[%s2 + $0x90] sm:$0xff]
        %v3438 = vld [vmem:[%s2 + $0x98] sm:$0xf]
        %v3439 = vld [vmem:[%s2 + $0x9c] sm:$0xff]
        %v3440 = vld [vmem:[%s2 + $0xa4] sm:$0xf]
        %v3441 = vld [vmem:[%s2 + $0xa8] sm:$0xff]
        %v3442 = vld [vmem:[%s2 + $0xb0] sm:$0xf]
        %v3443 = vld [vmem:[%s2 + $0xb4] sm:$0xff]
        %v3444 = vld [vmem:[%s2 + $0xbc] sm:$0xf]
        %s3445 = scalar_lea.vmem %s2, 192
        %v3446 = vld [vmem:[%s3445] sm:$0xff]
        %v3447 = vld [vmem:[%s3445 + $0x8] sm:$0xf]
        %v3448 = vld [vmem:[%s3445 + $0xc] sm:$0xff]
        %v3449 = vld [vmem:[%s3445 + $0x14] sm:$0xf]
        %v3450 = vld [vmem:[%s3445 + $0x18] sm:$0xff]
        %v3451 = vld [vmem:[%s3445 + $0x20] sm:$0xf]
        %v3452 = vld [vmem:[%s3445 + $0x24] sm:$0xff]
        %v3453 = vld [vmem:[%s3445 + $0x2c] sm:$0xf]
        %v3454 = vld [vmem:[%s3445 + $0x30] sm:$0xff]
        %v3455 = vld [vmem:[%s3445 + $0x38] sm:$0xf]
        %v3456 = vld [vmem:[%s3445 + $0x3c] sm:$0xff]
        %v3457 = vld [vmem:[%s3445 + $0x44] sm:$0xf]
        %v3458 = vld [vmem:[%s3445 + $0x48] sm:$0xff]
        %v3459 = vld [vmem:[%s3445 + $0x50] sm:$0xf]
        %v3460 = vld [vmem:[%s3445 + $0x54] sm:$0xff]
        %v3461 = vld [vmem:[%s3445 + $0x5c] sm:$0xf]
        %v3462 = vld [vmem:[%s3445 + $0x60] sm:$0xff]
        %v3463 = vld [vmem:[%s3445 + $0x68] sm:$0xf]
        %v3464 = vld [vmem:[%s3445 + $0x6c] sm:$0xff]
        %v3465 = vld [vmem:[%s3445 + $0x74] sm:$0xf]
        %v3466 = vld [vmem:[%s3445 + $0x78] sm:$0xff]
        %v3467 = vld [vmem:[%s3445 + $0x80] sm:$0xf]
        %v3468 = vld [vmem:[%s3445 + $0x84] sm:$0xff]
        %v3469 = vld [vmem:[%s3445 + $0x8c] sm:$0xf]
        %v3470 = vld [vmem:[%s3445 + $0x90] sm:$0xff]
        %v3471 = vld [vmem:[%s3445 + $0x98] sm:$0xf]
        %v3472 = vld [vmem:[%s3445 + $0x9c] sm:$0xff]
        %v3473 = vld [vmem:[%s3445 + $0xa4] sm:$0xf]
        %v3474 = vld [vmem:[%s3445 + $0xa8] sm:$0xff]
        %v3475 = vld [vmem:[%s3445 + $0xb0] sm:$0xf]
        %v3476 = vld [vmem:[%s3445 + $0xb4] sm:$0xff]
        %v3477 = vld [vmem:[%s3445 + $0xbc] sm:$0xf]
        %v3532 = vunpack.c.l.b16 %v3359
        %v3533 = vunpack.c.l.b16 %v3360
        %v3534 = vunpack.c.l.b16 %v3361
        %v3535 = vunpack.c.l.b16 %v3362
        %v3536 = vunpack.c.l.b16 %v3363
        %v3537 = vunpack.c.l.b16 %v3364
        %v3538 = vunpack.c.l.b16 %v3365
        %v3539 = vunpack.c.l.b16 %v3366
        %v3540 = vunpack.c.l.b16 %v3367
        %v3541 = vunpack.c.l.b16 %v3368
        %v3542 = vunpack.c.l.b16 %v3369
        %v3543 = vunpack.c.l.b16 %v3370
        %v3544 = vunpack.c.l.b16 %v3371
        %v3545 = vunpack.c.l.b16 %v3372
        %v3546 = vunpack.c.l.b16 %v3373
        %v3547 = vunpack.c.l.b16 %v3374
        %v3548 = vunpack.c.l.b16 %v3375
        %v3549 = vunpack.c.l.b16 %v3376
        %v3550 = vunpack.c.l.b16 %v3377
        %v3551 = vunpack.c.l.b16 %v3378
        %v3552 = vunpack.c.l.b16 %v3379
        %v3553 = vunpack.c.l.b16 %v3380
        %v3554 = vunpack.c.l.b16 %v3381
        %v3555 = vunpack.c.l.b16 %v3382
        %v3556 = vunpack.c.l.b16 %v3383
        %v3557 = vunpack.c.l.b16 %v3384
        %v3558 = vunpack.c.l.b16 %v3385
        %v3559 = vunpack.c.l.b16 %v3386
        %v3560 = vunpack.c.l.b16 %v3387
        %v3561 = vunpack.c.l.b16 %v3388
        %v3562 = vunpack.c.l.b16 %v3389
        %v3563 = vunpack.c.l.b16 %v3390
        %v3564 = vunpack.c.l.b16 %v3391
        %v3565 = vunpack.c.l.b16 %v3392
        %v3566 = vunpack.c.l.b16 %v3393
        %v3567 = vunpack.c.l.b16 %v3394
        %v3568 = vunpack.c.l.b16 %v3395
        %v3569 = vunpack.c.l.b16 %v3396
        %v3570 = vunpack.c.l.b16 %v3397
        %v3571 = vunpack.c.l.b16 %v3398
        %v3572 = vunpack.c.l.b16 %v3399
        %v3573 = vunpack.c.l.b16 %v3400
        %v3574 = vunpack.c.l.b16 %v3401
        %v3575 = vunpack.c.l.b16 %v3402
        %v3576 = vunpack.c.l.b16 %v3403
        %v3577 = vunpack.c.l.b16 %v3404
        %v3578 = vunpack.c.l.b16 %v3405
        %v3579 = vunpack.c.l.b16 %v3406
        %v3580 = vunpack.c.l.b16 %v3407
        %v3581 = vunpack.c.l.b16 %v3408
        %v3582 = vunpack.c.l.b16 %v3409
        %v3583 = vunpack.c.l.b16 %v3410
        %v3584 = vunpack.c.l.b16 %v3411
        %v3585 = vunpack.c.l.b16 %v3412
        %v3586 = vpack.c.b16 %v3533, %v3532
        %v3587 = vpack.c.b16 %v3535, %v3534
        %v3588 = vpack.c.b16 %v3537, %v3536
        %v3589 = vpack.c.b16 %v3539, %v3538
        %v3590 = vpack.c.b16 %v3541, %v3540
        %v3591 = vpack.c.b16 %v3543, %v3542
        %v3592 = vpack.c.b16 %v3545, %v3544
        %v3593 = vpack.c.b16 %v3547, %v3546
        %v3594 = vpack.c.b16 %v3549, %v3548
        %v3595 = vpack.c.b16 %v3551, %v3550
        %v3596 = vpack.c.b16 %v3553, %v3552
        %v3597 = vpack.c.b16 %v3555, %v3554
        %v3598 = vpack.c.b16 %v3557, %v3556
        %v3599 = vpack.c.b16 %v3559, %v3558
        %v3600 = vpack.c.b16 %v3561, %v3560
        %v3601 = vpack.c.b16 %v3563, %v3562
        %v3602 = vpack.c.b16 %v3565, %v3564
        %v3603 = vpack.c.b16 %v3567, %v3566
        %v3604 = vpack.c.b16 %v3569, %v3568
        %v3605 = vpack.c.b16 %v3571, %v3570
        %v3606 = vpack.c.b16 %v3573, %v3572
        %v3607 = vpack.c.b16 %v3575, %v3574
        %v3608 = vpack.c.b16 %v3577, %v3576
        %v3609 = vpack.c.b16 %v3579, %v3578
        %v3610 = vpack.c.b16 %v3581, %v3580
        %v3611 = vpack.c.b16 %v3583, %v3582
        %v3612 = vpack.c.b16 %v3585, %v3584
        %v3672 = vunpack.c.l.b16 %v3446
        %v3673 = vunpack.c.h.b16 %v3446
        %v3674 = vunpack.c.l.b16 %v3447
        %v3675 = vunpack.c.l.b16 %v3448
        %v3676 = vunpack.c.h.b16 %v3448
        %v3677 = vunpack.c.l.b16 %v3449
        %v3678 = vunpack.c.l.b16 %v3450
        %v3679 = vunpack.c.h.b16 %v3450
        %v3680 = vunpack.c.l.b16 %v3451
        %v3681 = vunpack.c.l.b16 %v3452
        %v3682 = vunpack.c.h.b16 %v3452
        %v3683 = vunpack.c.l.b16 %v3453
        %v3684 = vunpack.c.l.b16 %v3454
        %v3685 = vunpack.c.h.b16 %v3454
        %v3686 = vunpack.c.l.b16 %v3455
        %v3687 = vunpack.c.l.b16 %v3456
        %v3688 = vunpack.c.h.b16 %v3456
        %v3689 = vunpack.c.l.b16 %v3457
        %v3690 = vunpack.c.l.b16 %v3458
        %v3691 = vunpack.c.h.b16 %v3458
        %v3692 = vunpack.c.l.b16 %v3459
        %v3693 = vunpack.c.l.b16 %v3460
        %v3694 = vunpack.c.h.b16 %v3460
        %v3695 = vunpack.c.l.b16 %v3461
        %v3696 = vunpack.c.l.b16 %v3462
        %v3697 = vunpack.c.h.b16 %v3462
        %v3698 = vunpack.c.l.b16 %v3463
        %v3699 = vunpack.c.l.b16 %v3464
        %v3700 = vunpack.c.h.b16 %v3464
        %v3701 = vunpack.c.l.b16 %v3465
        %v3702 = vunpack.c.l.b16 %v3466
        %v3703 = vunpack.c.h.b16 %v3466
        %v3704 = vunpack.c.l.b16 %v3467
        %v3705 = vunpack.c.l.b16 %v3468
        %v3706 = vunpack.c.h.b16 %v3468
        %v3707 = vunpack.c.l.b16 %v3469
        %v3708 = vunpack.c.l.b16 %v3470
        %v3709 = vunpack.c.h.b16 %v3470
        %v3710 = vunpack.c.l.b16 %v3471
        %v3711 = vunpack.c.l.b16 %v3472
        %v3712 = vunpack.c.h.b16 %v3472
        %v3713 = vunpack.c.l.b16 %v3473
        %v3714 = vunpack.c.l.b16 %v3474
        %v3715 = vunpack.c.h.b16 %v3474
        %v3716 = vunpack.c.l.b16 %v3475
        %v3717 = vunpack.c.l.b16 %v3476
        %v3718 = vunpack.c.h.b16 %v3476
        %v3719 = vunpack.c.l.b16 %v3477
        %v3720 = vpack.c.b16 %v3675, %v3672
        %v3721 = vpack.c.b16 %v3676, %v3673
        %v3722 = vpack.c.b16 %v3677, %v3674
        %v3723 = vpack.c.b16 %v3681, %v3678
        %v3724 = vpack.c.b16 %v3682, %v3679
        %v3725 = vpack.c.b16 %v3683, %v3680
        %v3726 = vpack.c.b16 %v3687, %v3684
        %v3727 = vpack.c.b16 %v3688, %v3685
        %v3728 = vpack.c.b16 %v3689, %v3686
        %v3729 = vpack.c.b16 %v3693, %v3690
        %v3730 = vpack.c.b16 %v3694, %v3691
        %v3731 = vpack.c.b16 %v3695, %v3692
        %v3732 = vpack.c.b16 %v3699, %v3696
        %v3733 = vpack.c.b16 %v3700, %v3697
        %v3734 = vpack.c.b16 %v3701, %v3698
        %v3735 = vpack.c.b16 %v3705, %v3702
        %v3736 = vpack.c.b16 %v3706, %v3703
        %v3737 = vpack.c.b16 %v3707, %v3704
        %v3738 = vpack.c.b16 %v3711, %v3708
        %v3739 = vpack.c.b16 %v3712, %v3709
        %v3740 = vpack.c.b16 %v3713, %v3710
        %v3741 = vpack.c.b16 %v3717, %v3714
        %v3742 = vpack.c.b16 %v3718, %v3715
        %v3743 = vpack.c.b16 %v3719, %v3716
        %3768 = vmatpush.bf16.msra.mxu0 %v3741
        %3769 = vmatpush.bf16.msra.mxu0 %v3738
        %3770 = vmatpush.bf16.msra.mxu0 %v3735
        %3771 = vmatpush.bf16.msra.mxu0 %v3732
        %3772 = vmatpush.bf16.msra.mxu0 %v3729
        %3773 = vmatpush.bf16.msra.mxu0 %v3726
        %3774 = vmatpush.bf16.msra.mxu0 %v3723
        %3775 = vmatpush.bf16.msra.mxu0 %v3720
        %3776 = vmatmul.bf16.gmra.mxu0 %v3586
        %v3777 = vpop.f32.mrf.mxu0
        %v3778 = vadd.f32 0.0, %v3777
        %v3779 = vpop.f32.mrf.mxu0
        %v3780 = vadd.f32 0.0, %v3779
        %3781 = vmatmul.bf16.gmra.mxu0 %v3587
        %v3782 = vpop.f32.mrf.mxu0
        %v3783 = vpop.f32.mrf.mxu0
        %v3784 = vadd.f32 0.0, %v3783
        %3785 = vmatmul.bf16.gmra.mxu0 %v3588
        %v3786 = vpop.f32.mrf.mxu0
        %v3787 = vadd.f32 0.0, %v3786
        %v3788 = vpop.f32.mrf.mxu0
        %3789 = vmatmul.bf16.gmra.mxu0 %v3589
        %v3790 = vpop.f32.mrf.mxu0
        %v3791 = vadd.f32 0.0, %v3790
        %v3792 = vpop.f32.mrf.mxu0
        %v3793 = vadd.f32 0.0, %v3792
        %3794 = vmatmul.bf16.gmra.mxu0 %v3590
        %v3795 = vpop.f32.mrf.mxu0
        %v3796 = vpop.f32.mrf.mxu0
        %v3797 = vadd.f32 0.0, %v3796
        %3798 = vmatmul.bf16.gmra.mxu0 %v3591
        %v3799 = vpop.f32.mrf.mxu0
        %v3800 = vadd.f32 0.0, %v3799
        %v3801 = vpop.f32.mrf.mxu0
        %3802 = vmatmul.bf16.gmra.mxu0 %v3592
        %v3803 = vpop.f32.mrf.mxu0
        %v3804 = vadd.f32 0.0, %v3803
        %v3805 = vpop.f32.mrf.mxu0
        %v3806 = vadd.f32 0.0, %v3805
        %3807 = vmatmul.bf16.gmra.mxu0 %v3593
        %v3808 = vpop.f32.mrf.mxu0
        %v3809 = vpop.f32.mrf.mxu0
        %v3810 = vadd.f32 0.0, %v3809
        %3811 = vmatmul.bf16.gmra.mxu0 %v3594
        %v3812 = vpop.f32.mrf.mxu0
        %v3813 = vadd.f32 0.0, %v3812
        %v3814 = vpop.f32.mrf.mxu0
        %3815 = vmatmul.bf16.gmra.mxu0 %v3595
        %v3816 = vpop.f32.mrf.mxu0
        %v3817 = vadd.f32 0.0, %v3816
        %v3818 = vpop.f32.mrf.mxu0
        %v3819 = vadd.f32 0.0, %v3818
        %3820 = vmatmul.bf16.gmra.mxu0 %v3596
        %v3821 = vpop.f32.mrf.mxu0
        %v3822 = vpop.f32.mrf.mxu0
        %v3823 = vadd.f32 0.0, %v3822
        %3824 = vmatmul.bf16.gmra.mxu0 %v3597
        %v3825 = vpop.f32.mrf.mxu0
        %v3826 = vadd.f32 0.0, %v3825
        %v3827 = vpop.f32.mrf.mxu0
        %3828 = vmatmul.bf16.gmra.mxu0 %v3598
        %v3829 = vpop.f32.mrf.mxu0
        %v3830 = vadd.f32 0.0, %v3829
        %v3831 = vpop.f32.mrf.mxu0
        %v3832 = vadd.f32 0.0, %v3831
        %3833 = vmatmul.bf16.gmra.mxu0 %v3599
        %v3834 = vpop.f32.mrf.mxu0
        %v3835 = vpop.f32.mrf.mxu0
        %v3836 = vadd.f32 0.0, %v3835
        %3837 = vmatmul.bf16.gmra.mxu0 %v3600
        %v3838 = vpop.f32.mrf.mxu0
        %v3839 = vadd.f32 0.0, %v3838
        %v3840 = vpop.f32.mrf.mxu0
        %3841 = vmatmul.bf16.gmra.mxu0 %v3601
        %v3842 = vpop.f32.mrf.mxu0
        %v3843 = vadd.f32 0.0, %v3842
        %v3844 = vpop.f32.mrf.mxu0
        %v3845 = vadd.f32 0.0, %v3844
        %3846 = vmatmul.bf16.gmra.mxu0 %v3602
        %v3847 = vpop.f32.mrf.mxu0
        %v3848 = vpop.f32.mrf.mxu0
        %v3849 = vadd.f32 0.0, %v3848
        %3850 = vmatmul.bf16.gmra.mxu0 %v3603
        %v3851 = vpop.f32.mrf.mxu0
        %v3852 = vadd.f32 0.0, %v3851
        %v3853 = vpop.f32.mrf.mxu0
        %3854 = vmatmul.bf16.gmra.mxu0 %v3604
        %v3855 = vpop.f32.mrf.mxu0
        %v3856 = vadd.f32 0.0, %v3855
        %v3857 = vpop.f32.mrf.mxu0
        %v3858 = vadd.f32 0.0, %v3857
        %3859 = vmatmul.bf16.gmra.mxu0 %v3605
        %v3860 = vpop.f32.mrf.mxu0
        %v3861 = vpop.f32.mrf.mxu0
        %v3862 = vadd.f32 0.0, %v3861
        %3863 = vmatmul.bf16.gmra.mxu0 %v3606
        %v3864 = vpop.f32.mrf.mxu0
        %v3865 = vadd.f32 0.0, %v3864
        %v3866 = vpop.f32.mrf.mxu0
        %3867 = vmatmul.bf16.gmra.mxu0 %v3607
        %v3868 = vpop.f32.mrf.mxu0
        %v3869 = vadd.f32 0.0, %v3868
        %v3870 = vpop.f32.mrf.mxu0
        %v3871 = vadd.f32 0.0, %v3870
        %3872 = vmatmul.bf16.gmra.mxu0 %v3608
        %v3873 = vpop.f32.mrf.mxu0
        %v3874 = vpop.f32.mrf.mxu0
        %v3875 = vadd.f32 0.0, %v3874
        %3876 = vmatmul.bf16.gmra.mxu0 %v3609
        %v3877 = vpop.f32.mrf.mxu0
        %v3878 = vadd.f32 0.0, %v3877
        %v3879 = vpop.f32.mrf.mxu0
        %3880 = vmatmul.bf16.gmra.mxu0 %v3610
        %v3881 = vpop.f32.mrf.mxu0
        %v3882 = vpop.f32.mrf.mxu0
        %3883 = vmatmul.bf16.gmra.mxu0 %v3611
        %v3884 = vpop.f32.mrf.mxu0
        %v3885 = vpop.f32.mrf.mxu0
        %3886 = vmatmul.bf16.gmra.mxu0 %v3612
        %v3887 = vpop.f32.mrf.mxu0
        %v3888 = vpop.f32.mrf.mxu0
        %3889 = vdwg.mxu0
        %3890 = vmatpush.bf16.msra.mxu0 %v3742
        %3891 = vmatpush.bf16.msra.mxu0 %v3739
        %3892 = vmatpush.bf16.msra.mxu0 %v3736
        %3893 = vmatpush.bf16.msra.mxu0 %v3733
        %3894 = vmatpush.bf16.msra.mxu0 %v3730
        %3895 = vmatpush.bf16.msra.mxu0 %v3727
        %3896 = vmatpush.bf16.msra.mxu0 %v3724
        %3897 = vmatpush.bf16.msra.mxu0 %v3721
        %3898 = vmatmul.bf16.gmra.mxu0 %v3586
        %v3899 = vpop.f32.mrf.mxu0
        %v3900 = vpop.f32.mrf.mxu0
        %3901 = vmatmul.bf16.gmra.mxu0 %v3587
        %v3902 = vpop.f32.mrf.mxu0
        %v3903 = vpop.f32.mrf.mxu0
        %v3904 = vadd.f32 0.0, %v3903
        %3905 = vmatmul.bf16.gmra.mxu0 %v3588
        %v3906 = vpop.f32.mrf.mxu0
        %v3907 = vadd.f32 0.0, %v3906
        %v3908 = vpop.f32.mrf.mxu0
        %3909 = vmatmul.bf16.gmra.mxu0 %v3589
        %v3910 = vpop.f32.mrf.mxu0
        %v3911 = vadd.f32 0.0, %v3910
        %v3912 = vpop.f32.mrf.mxu0
        %v3913 = vadd.f32 0.0, %v3912
        %3914 = vmatmul.bf16.gmra.mxu0 %v3590
        %v3915 = vpop.f32.mrf.mxu0
        %v3916 = vpop.f32.mrf.mxu0
        %v3917 = vadd.f32 0.0, %v3916
        %3918 = vmatmul.bf16.gmra.mxu0 %v3591
        %v3919 = vpop.f32.mrf.mxu0
        %v3920 = vadd.f32 0.0, %v3919
        %v3921 = vpop.f32.mrf.mxu0
        %3922 = vmatmul.bf16.gmra.mxu0 %v3592
        %v3923 = vpop.f32.mrf.mxu0
        %v3924 = vadd.f32 0.0, %v3923
        %v3925 = vpop.f32.mrf.mxu0
        %v3926 = vadd.f32 0.0, %v3925
        %3927 = vmatmul.bf16.gmra.mxu0 %v3593
        %v3928 = vpop.f32.mrf.mxu0
        %v3929 = vpop.f32.mrf.mxu0
        %v3930 = vadd.f32 0.0, %v3929
        %3931 = vmatmul.bf16.gmra.mxu0 %v3594
        %v3932 = vpop.f32.mrf.mxu0
        %v3933 = vadd.f32 0.0, %v3932
        %v3934 = vpop.f32.mrf.mxu0
        %3935 = vmatmul.bf16.gmra.mxu0 %v3595
        %v3936 = vpop.f32.mrf.mxu0
        %v3937 = vadd.f32 0.0, %v3936
        %v3938 = vpop.f32.mrf.mxu0
        %v3939 = vadd.f32 0.0, %v3938
        %3940 = vmatmul.bf16.gmra.mxu0 %v3596
        %v3941 = vpop.f32.mrf.mxu0
        %v3942 = vpop.f32.mrf.mxu0
        %v3943 = vadd.f32 0.0, %v3942
        %3944 = vmatmul.bf16.gmra.mxu0 %v3597
        %v3945 = vpop.f32.mrf.mxu0
        %v3946 = vadd.f32 0.0, %v3945
        %v3947 = vpop.f32.mrf.mxu0
        %3948 = vmatmul.bf16.gmra.mxu0 %v3598
        %v3949 = vpop.f32.mrf.mxu0
        %v3950 = vadd.f32 0.0, %v3949
        %v3951 = vpop.f32.mrf.mxu0
        %v3952 = vadd.f32 0.0, %v3951
        %3953 = vmatmul.bf16.gmra.mxu0 %v3599
        %v3954 = vpop.f32.mrf.mxu0
        %v3955 = vpop.f32.mrf.mxu0
        %v3956 = vadd.f32 0.0, %v3955
        %3957 = vmatmul.bf16.gmra.mxu0 %v3600
        %v3958 = vpop.f32.mrf.mxu0
        %v3959 = vadd.f32 0.0, %v3958
        %v3960 = vpop.f32.mrf.mxu0
        %3961 = vmatmul.bf16.gmra.mxu0 %v3601
        %v3962 = vpop.f32.mrf.mxu0
        %v3963 = vadd.f32 0.0, %v3962
        %v3964 = vpop.f32.mrf.mxu0
        %v3965 = vadd.f32 0.0, %v3964
        %3966 = vmatmul.bf16.gmra.mxu0 %v3602
        %v3967 = vpop.f32.mrf.mxu0
        %v3968 = vpop.f32.mrf.mxu0
        %v3969 = vadd.f32 0.0, %v3968
        %3970 = vmatmul.bf16.gmra.mxu0 %v3603
        %v3971 = vpop.f32.mrf.mxu0
        %v3972 = vadd.f32 0.0, %v3971
        %v3973 = vpop.f32.mrf.mxu0
        %3974 = vmatmul.bf16.gmra.mxu0 %v3604
        %v3975 = vpop.f32.mrf.mxu0
        %v3976 = vadd.f32 0.0, %v3975
        %v3977 = vpop.f32.mrf.mxu0
        %v3978 = vadd.f32 0.0, %v3977
        %3979 = vmatmul.bf16.gmra.mxu0 %v3605
        %v3980 = vpop.f32.mrf.mxu0
        %v3981 = vpop.f32.mrf.mxu0
        %v3982 = vadd.f32 0.0, %v3981
        %3983 = vmatmul.bf16.gmra.mxu0 %v3606
        %v3984 = vpop.f32.mrf.mxu0
        %v3985 = vadd.f32 0.0, %v3984
        %v3986 = vpop.f32.mrf.mxu0
        %3987 = vmatmul.bf16.gmra.mxu0 %v3607
        %v3988 = vpop.f32.mrf.mxu0
        %v3989 = vadd.f32 0.0, %v3988
        %v3990 = vpop.f32.mrf.mxu0
        %v3991 = vadd.f32 0.0, %v3990
        %3992 = vmatmul.bf16.gmra.mxu0 %v3608
        %v3993 = vpop.f32.mrf.mxu0
        %v3994 = vpop.f32.mrf.mxu0
        %v3995 = vadd.f32 0.0, %v3994
        %3996 = vmatmul.bf16.gmra.mxu0 %v3609
        %v3997 = vpop.f32.mrf.mxu0
        %v3998 = vadd.f32 0.0, %v3997
        %v3999 = vpop.f32.mrf.mxu0
        %4000 = vmatmul.bf16.gmra.mxu0 %v3610
        %v4001 = vpop.f32.mrf.mxu0
        %v4002 = vadd.f32 0.0, %v4001
        %v4003 = vpop.f32.mrf.mxu0
        %v4004 = vadd.f32 0.0, %v4003
        %4005 = vmatmul.bf16.gmra.mxu0 %v3611
        %v4006 = vpop.f32.mrf.mxu0
        %v4007 = vpop.f32.mrf.mxu0
        %4008 = vmatmul.bf16.gmra.mxu0 %v3612
        %v4009 = vpop.f32.mrf.mxu0
        %v4010 = vpop.f32.mrf.mxu0
        %4011 = vdwg.mxu0
        %4012 = vmatpush.bf16.msra.mxu0 %v3743
        %4013 = vmatpush.bf16.msra.mxu0 %v3740
        %4014 = vmatpush.bf16.msra.mxu0 %v3737
        %4015 = vmatpush.bf16.msra.mxu0 %v3734
        %4016 = vmatpush.bf16.msra.mxu0 %v3731
        %4017 = vmatpush.bf16.msra.mxu0 %v3728
        %4018 = vmatpush.bf16.msra.mxu0 %v3725
        %4019 = vmatpush.bf16.msra.mxu0 %v3722
        %4020 = vmatmul.bf16.gmra.mxu0 %v3586
        %v4021 = vpop.f32.mrf.mxu0
        %v4022 = vpop.f32.mrf.mxu0
        %4023 = vmatmul.bf16.gmra.mxu0 %v3587
        %v4024 = vpop.f32.mrf.mxu0
        %v4025 = vpop.f32.mrf.mxu0
        %4026 = vmatmul.bf16.gmra.mxu0 %v3588
        %v4027 = vpop.f32.mrf.mxu0
        %v4028 = vpop.f32.mrf.mxu0
        %4029 = vmatmul.bf16.gmra.mxu0 %v3589
        %v4030 = vpop.f32.mrf.mxu0
        %v4031 = vadd.f32 0.0, %v4030
        %v4032 = vpop.f32.mrf.mxu0
        %v4033 = vadd.f32 0.0, %v4032
        %4034 = vmatmul.bf16.gmra.mxu0 %v3590
        %v4035 = vpop.f32.mrf.mxu0
        %v4036 = vpop.f32.mrf.mxu0
        %v4037 = vadd.f32 0.0, %v4036
        %4038 = vmatmul.bf16.gmra.mxu0 %v3591
        %v4039 = vpop.f32.mrf.mxu0
        %v4040 = vadd.f32 0.0, %v4039
        %v4041 = vpop.f32.mrf.mxu0
        %4042 = vmatmul.bf16.gmra.mxu0 %v3592
        %v4043 = vpop.f32.mrf.mxu0
        %v4044 = vadd.f32 0.0, %v4043
        %v4045 = vpop.f32.mrf.mxu0
        %v4046 = vadd.f32 0.0, %v4045
        %4047 = vmatmul.bf16.gmra.mxu0 %v3593
        %v4048 = vpop.f32.mrf.mxu0
        %v4049 = vpop.f32.mrf.mxu0
        %v4050 = vadd.f32 0.0, %v4049
        %4051 = vmatmul.bf16.gmra.mxu0 %v3594
        %v4052 = vpop.f32.mrf.mxu0
        %v4053 = vadd.f32 0.0, %v4052
        %v4054 = vpop.f32.mrf.mxu0
        %4055 = vmatmul.bf16.gmra.mxu0 %v3595
        %v4056 = vpop.f32.mrf.mxu0
        %v4057 = vadd.f32 0.0, %v4056
        %v4058 = vpop.f32.mrf.mxu0
        %v4059 = vadd.f32 0.0, %v4058
        %4060 = vmatmul.bf16.gmra.mxu0 %v3596
        %v4061 = vpop.f32.mrf.mxu0
        %v4062 = vpop.f32.mrf.mxu0
        %v4063 = vadd.f32 0.0, %v4062
        %4064 = vmatmul.bf16.gmra.mxu0 %v3597
        %v4065 = vpop.f32.mrf.mxu0
        %v4066 = vadd.f32 0.0, %v4065
        %v4067 = vpop.f32.mrf.mxu0
        %4068 = vmatmul.bf16.gmra.mxu0 %v3598
        %v4069 = vpop.f32.mrf.mxu0
        %v4070 = vadd.f32 0.0, %v4069
        %v4071 = vpop.f32.mrf.mxu0
        %v4072 = vadd.f32 0.0, %v4071
        %4073 = vmatmul.bf16.gmra.mxu0 %v3599
        %v4074 = vpop.f32.mrf.mxu0
        %v4075 = vpop.f32.mrf.mxu0
        %v4076 = vadd.f32 0.0, %v4075
        %4077 = vmatmul.bf16.gmra.mxu0 %v3600
        %v4078 = vpop.f32.mrf.mxu0
        %v4079 = vadd.f32 0.0, %v4078
        %v4080 = vpop.f32.mrf.mxu0
        %4081 = vmatmul.bf16.gmra.mxu0 %v3601
        %v4082 = vpop.f32.mrf.mxu0
        %v4083 = vadd.f32 0.0, %v4082
        %v4084 = vpop.f32.mrf.mxu0
        %v4085 = vadd.f32 0.0, %v4084
        %4086 = vmatmul.bf16.gmra.mxu0 %v3602
        %v4087 = vpop.f32.mrf.mxu0
        %v4088 = vpop.f32.mrf.mxu0
        %v4089 = vadd.f32 0.0, %v4088
        %4090 = vmatmul.bf16.gmra.mxu0 %v3603
        %v4091 = vpop.f32.mrf.mxu0
        %v4092 = vadd.f32 0.0, %v4091
        %v4093 = vpop.f32.mrf.mxu0
        %4094 = vmatmul.bf16.gmra.mxu0 %v3604
        %v4095 = vpop.f32.mrf.mxu0
        %v4096 = vadd.f32 0.0, %v4095
        %v4097 = vpop.f32.mrf.mxu0
        %v4098 = vadd.f32 0.0, %v4097
        %4099 = vmatmul.bf16.gmra.mxu0 %v3605
        %v4100 = vpop.f32.mrf.mxu0
        %v4101 = vpop.f32.mrf.mxu0
        %v4102 = vadd.f32 0.0, %v4101
        %4103 = vmatmul.bf16.gmra.mxu0 %v3606
        %v4104 = vpop.f32.mrf.mxu0
        %v4105 = vadd.f32 0.0, %v4104
        %v4106 = vpop.f32.mrf.mxu0
        %4107 = vmatmul.bf16.gmra.mxu0 %v3607
        %v4108 = vpop.f32.mrf.mxu0
        %v4109 = vadd.f32 0.0, %v4108
        %v4110 = vpop.f32.mrf.mxu0
        %v4111 = vadd.f32 0.0, %v4110
        %4112 = vmatmul.bf16.gmra.mxu0 %v3608
        %v4113 = vpop.f32.mrf.mxu0
        %v4114 = vpop.f32.mrf.mxu0
        %v4115 = vadd.f32 0.0, %v4114
        %4116 = vmatmul.bf16.gmra.mxu0 %v3609
        %v4117 = vpop.f32.mrf.mxu0
        %v4118 = vadd.f32 0.0, %v4117
        %v4119 = vpop.f32.mrf.mxu0
        %4120 = vmatmul.bf16.gmra.mxu0 %v3610
        %v4121 = vpop.f32.mrf.mxu0
        %v4122 = vadd.f32 0.0, %v4121
        %v4123 = vpop.f32.mrf.mxu0
        %v4124 = vadd.f32 0.0, %v4123
        %4125 = vmatmul.bf16.gmra.mxu0 %v3611
        %v4126 = vpop.f32.mrf.mxu0
        %v4127 = vpop.f32.mrf.mxu0
        %v4128 = vadd.f32 0.0, %v4127
        %4129 = vmatmul.bf16.gmra.mxu0 %v3612
        %v4130 = vpop.f32.mrf.mxu0
        %v4131 = vadd.f32 0.0, %v4130
        %v4132 = vpop.f32.mrf.mxu0
        %4133 = vdwg.mxu0
        %v4135 = vunpack.c.l.b16 %v3358
        %v4136 = vpack.c.b16 %v3532, %v4135
        %v4137 = vpack.c.b16 %v3534, %v3533
        %v4138 = vpack.c.b16 %v3536, %v3535
        %v4139 = vpack.c.b16 %v3538, %v3537
        %v4140 = vpack.c.b16 %v3540, %v3539
        %v4141 = vpack.c.b16 %v3542, %v3541
        %v4142 = vpack.c.b16 %v3544, %v3543
        %v4143 = vpack.c.b16 %v3546, %v3545
        %v4144 = vpack.c.b16 %v3548, %v3547
        %v4145 = vpack.c.b16 %v3550, %v3549
        %v4146 = vpack.c.b16 %v3552, %v3551
        %v4147 = vpack.c.b16 %v3554, %v3553
        %v4148 = vpack.c.b16 %v3556, %v3555
        %v4149 = vpack.c.b16 %v3558, %v3557
        %v4150 = vpack.c.b16 %v3560, %v3559
        %v4151 = vpack.c.b16 %v3562, %v3561
        %v4152 = vpack.c.b16 %v3564, %v3563
        %v4153 = vpack.c.b16 %v3566, %v3565
        %v4154 = vpack.c.b16 %v3568, %v3567
        %v4155 = vpack.c.b16 %v3570, %v3569
        %v4156 = vpack.c.b16 %v3572, %v3571
        %v4157 = vpack.c.b16 %v3574, %v3573
        %v4158 = vpack.c.b16 %v3576, %v3575
        %v4159 = vpack.c.b16 %v3578, %v3577
        %v4160 = vpack.c.b16 %v3580, %v3579
        %v4161 = vpack.c.b16 %v3582, %v3581
        %v4162 = vpack.c.b16 %v3584, %v3583
        %v4163 = vpack.c.b16 %v3585, %v3585
        %vm4164 = vsmask.f32 4352
        %v4166 = vshrl.u32 %v4136, 16
        %v4168 = vrot.slane %v4166, 3
        %v4169 = vshll.u32 %v4136, 16
        %v4171 = vrot.slane %v4169, 4
        %v4172 = vor.u32 %v4168, %v4171
        %v4174 = vshrl.u32 %v4137, 16
        %v4176 = vrot.slane %v4174, 3
        %v4177 = vshll.u32 %v4137, 16
        %v4179 = vrot.slane %v4177, 4
        %v4180 = vor.u32 %v4176, %v4179
        %v4181 = vsel %vm4164, %v4172, %v4180
        %v4183 = vshrl.u32 %v4138, 16
        %v4185 = vrot.slane %v4183, 3
        %v4186 = vshll.u32 %v4138, 16
        %v4188 = vrot.slane %v4186, 4
        %v4189 = vor.u32 %v4185, %v4188
        %v4190 = vsel %vm4164, %v4180, %v4189
        %v4192 = vshrl.u32 %v4139, 16
        %v4194 = vrot.slane %v4192, 3
        %v4195 = vshll.u32 %v4139, 16
        %v4197 = vrot.slane %v4195, 4
        %v4198 = vor.u32 %v4194, %v4197
        %v4199 = vsel %vm4164, %v4189, %v4198
        %v4201 = vshrl.u32 %v4140, 16
        %v4203 = vrot.slane %v4201, 3
        %v4204 = vshll.u32 %v4140, 16
        %v4206 = vrot.slane %v4204, 4
        %v4207 = vor.u32 %v4203, %v4206
        %v4208 = vsel %vm4164, %v4198, %v4207
        %v4210 = vshrl.u32 %v4141, 16
        %v4212 = vrot.slane %v4210, 3
        %v4213 = vshll.u32 %v4141, 16
        %v4215 = vrot.slane %v4213, 4
        %v4216 = vor.u32 %v4212, %v4215
        %v4217 = vsel %vm4164, %v4207, %v4216
        %v4219 = vshrl.u32 %v4142, 16
        %v4221 = vrot.slane %v4219, 3
        %v4222 = vshll.u32 %v4142, 16
        %v4224 = vrot.slane %v4222, 4
        %v4225 = vor.u32 %v4221, %v4224
        %v4226 = vsel %vm4164, %v4216, %v4225
        %v4228 = vshrl.u32 %v4143, 16
        %v4230 = vrot.slane %v4228, 3
        %v4231 = vshll.u32 %v4143, 16
        %v4233 = vrot.slane %v4231, 4
        %v4234 = vor.u32 %v4230, %v4233
        %v4235 = vsel %vm4164, %v4225, %v4234
        %v4237 = vshrl.u32 %v4144, 16
        %v4239 = vrot.slane %v4237, 3
        %v4240 = vshll.u32 %v4144, 16
        %v4242 = vrot.slane %v4240, 4
        %v4243 = vor.u32 %v4239, %v4242
        %v4244 = vsel %vm4164, %v4234, %v4243
        %v4246 = vshrl.u32 %v4145, 16
        %v4248 = vrot.slane %v4246, 3
        %v4249 = vshll.u32 %v4145, 16
        %v4251 = vrot.slane %v4249, 4
        %v4252 = vor.u32 %v4248, %v4251
        %v4253 = vsel %vm4164, %v4243, %v4252
        %v4255 = vshrl.u32 %v4146, 16
        %v4257 = vrot.slane %v4255, 3
        %v4258 = vshll.u32 %v4146, 16
        %v4260 = vrot.slane %v4258, 4
        %v4261 = vor.u32 %v4257, %v4260
        %v4262 = vsel %vm4164, %v4252, %v4261
        %v4264 = vshrl.u32 %v4147, 16
        %v4266 = vrot.slane %v4264, 3
        %v4267 = vshll.u32 %v4147, 16
        %v4269 = vrot.slane %v4267, 4
        %v4270 = vor.u32 %v4266, %v4269
        %v4271 = vsel %vm4164, %v4261, %v4270
        %v4273 = vshrl.u32 %v4148, 16
        %v4275 = vrot.slane %v4273, 3
        %v4276 = vshll.u32 %v4148, 16
        %v4278 = vrot.slane %v4276, 4
        %v4279 = vor.u32 %v4275, %v4278
        %v4280 = vsel %vm4164, %v4270, %v4279
        %v4282 = vshrl.u32 %v4149, 16
        %v4284 = vrot.slane %v4282, 3
        %v4285 = vshll.u32 %v4149, 16
        %v4287 = vrot.slane %v4285, 4
        %v4288 = vor.u32 %v4284, %v4287
        %v4289 = vsel %vm4164, %v4279, %v4288
        %v4291 = vshrl.u32 %v4150, 16
        %v4293 = vrot.slane %v4291, 3
        %v4294 = vshll.u32 %v4150, 16
        %v4296 = vrot.slane %v4294, 4
        %v4297 = vor.u32 %v4293, %v4296
        %v4298 = vsel %vm4164, %v4288, %v4297
        %v4300 = vshrl.u32 %v4151, 16
        %v4302 = vrot.slane %v4300, 3
        %v4303 = vshll.u32 %v4151, 16
        %v4305 = vrot.slane %v4303, 4
        %v4306 = vor.u32 %v4302, %v4305
        %v4307 = vsel %vm4164, %v4297, %v4306
        %v4309 = vshrl.u32 %v4152, 16
        %v4311 = vrot.slane %v4309, 3
        %v4312 = vshll.u32 %v4152, 16
        %v4314 = vrot.slane %v4312, 4
        %v4315 = vor.u32 %v4311, %v4314
        %v4316 = vsel %vm4164, %v4306, %v4315
        %v4318 = vshrl.u32 %v4153, 16
        %v4320 = vrot.slane %v4318, 3
        %v4321 = vshll.u32 %v4153, 16
        %v4323 = vrot.slane %v4321, 4
        %v4324 = vor.u32 %v4320, %v4323
        %v4325 = vsel %vm4164, %v4315, %v4324
        %v4327 = vshrl.u32 %v4154, 16
        %v4329 = vrot.slane %v4327, 3
        %v4330 = vshll.u32 %v4154, 16
        %v4332 = vrot.slane %v4330, 4
        %v4333 = vor.u32 %v4329, %v4332
        %v4334 = vsel %vm4164, %v4324, %v4333
        %v4336 = vshrl.u32 %v4155, 16
        %v4338 = vrot.slane %v4336, 3
        %v4339 = vshll.u32 %v4155, 16
        %v4341 = vrot.slane %v4339, 4
        %v4342 = vor.u32 %v4338, %v4341
        %v4343 = vsel %vm4164, %v4333, %v4342
        %v4345 = vshrl.u32 %v4156, 16
        %v4347 = vrot.slane %v4345, 3
        %v4348 = vshll.u32 %v4156, 16
        %v4350 = vrot.slane %v4348, 4
        %v4351 = vor.u32 %v4347, %v4350
        %v4352 = vsel %vm4164, %v4342, %v4351
        %v4354 = vshrl.u32 %v4157, 16
        %v4356 = vrot.slane %v4354, 3
        %v4357 = vshll.u32 %v4157, 16
        %v4359 = vrot.slane %v4357, 4
        %v4360 = vor.u32 %v4356, %v4359
        %v4361 = vsel %vm4164, %v4351, %v4360
        %v4363 = vshrl.u32 %v4158, 16
        %v4365 = vrot.slane %v4363, 3
        %v4366 = vshll.u32 %v4158, 16
        %v4368 = vrot.slane %v4366, 4
        %v4369 = vor.u32 %v4365, %v4368
        %v4370 = vsel %vm4164, %v4360, %v4369
        %v4372 = vshrl.u32 %v4159, 16
        %v4374 = vrot.slane %v4372, 3
        %v4375 = vshll.u32 %v4159, 16
        %v4377 = vrot.slane %v4375, 4
        %v4378 = vor.u32 %v4374, %v4377
        %v4379 = vsel %vm4164, %v4369, %v4378
        %v4381 = vshrl.u32 %v4160, 16
        %v4383 = vrot.slane %v4381, 3
        %v4384 = vshll.u32 %v4160, 16
        %v4386 = vrot.slane %v4384, 4
        %v4387 = vor.u32 %v4383, %v4386
        %v4388 = vsel %vm4164, %v4378, %v4387
        %v4390 = vshrl.u32 %v4161, 16
        %v4392 = vrot.slane %v4390, 3
        %v4393 = vshll.u32 %v4161, 16
        %v4395 = vrot.slane %v4393, 4
        %v4396 = vor.u32 %v4392, %v4395
        %v4397 = vsel %vm4164, %v4387, %v4396
        %v4399 = vshrl.u32 %v4162, 16
        %v4401 = vrot.slane %v4399, 3
        %v4402 = vshll.u32 %v4162, 16
        %v4404 = vrot.slane %v4402, 4
        %v4405 = vor.u32 %v4401, %v4404
        %v4406 = vsel %vm4164, %v4396, %v4405
        %v4408 = vshrl.u32 %v4163, 16
        %v4410 = vrot.slane %v4408, 3
        %v4411 = vshll.u32 %v4163, 16
        %v4413 = vrot.slane %v4411, 4
        %v4414 = vor.u32 %v4410, %v4413
        %v4415 = vsel %vm4164, %v4405, %v4414
        %v4475 = vunpack.c.l.b16 %v3413
        %v4476 = vunpack.c.h.b16 %v3413
        %v4477 = vunpack.c.l.b16 %v3414
        %v4478 = vunpack.c.l.b16 %v3415
        %v4479 = vunpack.c.h.b16 %v3415
        %v4480 = vunpack.c.l.b16 %v3416
        %v4481 = vunpack.c.l.b16 %v3417
        %v4482 = vunpack.c.h.b16 %v3417
        %v4483 = vunpack.c.l.b16 %v3418
        %v4484 = vunpack.c.l.b16 %v3419
        %v4485 = vunpack.c.h.b16 %v3419
        %v4486 = vunpack.c.l.b16 %v3420
        %v4487 = vunpack.c.l.b16 %v3421
        %v4488 = vunpack.c.h.b16 %v3421
        %v4489 = vunpack.c.l.b16 %v3422
        %v4490 = vunpack.c.l.b16 %v3423
        %v4491 = vunpack.c.h.b16 %v3423
        %v4492 = vunpack.c.l.b16 %v3424
        %v4493 = vunpack.c.l.b16 %v3425
        %v4494 = vunpack.c.h.b16 %v3425
        %v4495 = vunpack.c.l.b16 %v3426
        %v4496 = vunpack.c.l.b16 %v3427
        %v4497 = vunpack.c.h.b16 %v3427
        %v4498 = vunpack.c.l.b16 %v3428
        %v4499 = vunpack.c.l.b16 %v3429
        %v4500 = vunpack.c.h.b16 %v3429
        %v4501 = vunpack.c.l.b16 %v3430
        %v4502 = vunpack.c.l.b16 %v3431
        %v4503 = vunpack.c.h.b16 %v3431
        %v4504 = vunpack.c.l.b16 %v3432
        %v4505 = vunpack.c.l.b16 %v3433
        %v4506 = vunpack.c.h.b16 %v3433
        %v4507 = vunpack.c.l.b16 %v3434
        %v4508 = vunpack.c.l.b16 %v3435
        %v4509 = vunpack.c.h.b16 %v3435
        %v4510 = vunpack.c.l.b16 %v3436
        %v4511 = vunpack.c.l.b16 %v3437
        %v4512 = vunpack.c.h.b16 %v3437
        %v4513 = vunpack.c.l.b16 %v3438
        %v4514 = vunpack.c.l.b16 %v3439
        %v4515 = vunpack.c.h.b16 %v3439
        %v4516 = vunpack.c.l.b16 %v3440
        %v4517 = vunpack.c.l.b16 %v3441
        %v4518 = vunpack.c.h.b16 %v3441
        %v4519 = vunpack.c.l.b16 %v3442
        %v4520 = vunpack.c.l.b16 %v3443
        %v4521 = vunpack.c.h.b16 %v3443
        %v4522 = vunpack.c.l.b16 %v3444
        %v4523 = vpack.c.b16 %v4478, %v4475
        %v4524 = vpack.c.b16 %v4479, %v4476
        %v4525 = vpack.c.b16 %v4480, %v4477
        %v4526 = vpack.c.b16 %v4484, %v4481
        %v4527 = vpack.c.b16 %v4485, %v4482
        %v4528 = vpack.c.b16 %v4486, %v4483
        %v4529 = vpack.c.b16 %v4490, %v4487
        %v4530 = vpack.c.b16 %v4491, %v4488
        %v4531 = vpack.c.b16 %v4492, %v4489
        %v4532 = vpack.c.b16 %v4496, %v4493
        %v4533 = vpack.c.b16 %v4497, %v4494
        %v4534 = vpack.c.b16 %v4498, %v4495
        %v4535 = vpack.c.b16 %v4502, %v4499
        %v4536 = vpack.c.b16 %v4503, %v4500
        %v4537 = vpack.c.b16 %v4504, %v4501
        %v4538 = vpack.c.b16 %v4508, %v4505
        %v4539 = vpack.c.b16 %v4509, %v4506
        %v4540 = vpack.c.b16 %v4510, %v4507
        %v4541 = vpack.c.b16 %v4514, %v4511
        %v4542 = vpack.c.b16 %v4515, %v4512
        %v4543 = vpack.c.b16 %v4516, %v4513
        %v4544 = vpack.c.b16 %v4520, %v4517
        %v4545 = vpack.c.b16 %v4521, %v4518
        %v4546 = vpack.c.b16 %v4522, %v4519
        %4571 = vmatpush.bf16.msra.mxu0 %v4544
        %4572 = vmatpush.bf16.msra.mxu0 %v4541
        %4573 = vmatpush.bf16.msra.mxu0 %v4538
        %4574 = vmatpush.bf16.msra.mxu0 %v4535
        %4575 = vmatpush.bf16.msra.mxu0 %v4532
        %4576 = vmatpush.bf16.msra.mxu0 %v4529
        %4577 = vmatpush.bf16.msra.mxu0 %v4526
        %4578 = vmatpush.bf16.msra.mxu0 %v4523
        %4579 = vmatmul.bf16.gmra.mxu0 %v4181
        %v4580 = vpop.f32.mrf.mxu0
        %v4581 = vadd.f32 %v3778, %v4580
        %v4582 = vpop.f32.mrf.mxu0
        %v4583 = vadd.f32 %v3780, %v4582
        %4584 = vmatmul.bf16.gmra.mxu0 %v4190
        %v4585 = vpop.f32.mrf.mxu0
        %v4586 = vpop.f32.mrf.mxu0
        %v4587 = vadd.f32 %v3784, %v4586
        %4588 = vmatmul.bf16.gmra.mxu0 %v4199
        %v4589 = vpop.f32.mrf.mxu0
        %v4590 = vadd.f32 %v3787, %v4589
        %v4591 = vpop.f32.mrf.mxu0
        %4592 = vmatmul.bf16.gmra.mxu0 %v4208
        %v4593 = vpop.f32.mrf.mxu0
        %v4594 = vadd.f32 %v3791, %v4593
        %v4595 = vpop.f32.mrf.mxu0
        %v4596 = vadd.f32 %v3793, %v4595
        %4597 = vmatmul.bf16.gmra.mxu0 %v4217
        %v4598 = vpop.f32.mrf.mxu0
        %v4599 = vpop.f32.mrf.mxu0
        %v4600 = vadd.f32 %v3797, %v4599
        %4601 = vmatmul.bf16.gmra.mxu0 %v4226
        %v4602 = vpop.f32.mrf.mxu0
        %v4603 = vadd.f32 %v3800, %v4602
        %v4604 = vpop.f32.mrf.mxu0
        %4605 = vmatmul.bf16.gmra.mxu0 %v4235
        %v4606 = vpop.f32.mrf.mxu0
        %v4607 = vadd.f32 %v3804, %v4606
        %v4608 = vpop.f32.mrf.mxu0
        %v4609 = vadd.f32 %v3806, %v4608
        %4610 = vmatmul.bf16.gmra.mxu0 %v4244
        %v4611 = vpop.f32.mrf.mxu0
        %v4612 = vpop.f32.mrf.mxu0
        %v4613 = vadd.f32 %v3810, %v4612
        %4614 = vmatmul.bf16.gmra.mxu0 %v4253
        %v4615 = vpop.f32.mrf.mxu0
        %v4616 = vadd.f32 %v3813, %v4615
        %v4617 = vpop.f32.mrf.mxu0
        %4618 = vmatmul.bf16.gmra.mxu0 %v4262
        %v4619 = vpop.f32.mrf.mxu0
        %v4620 = vadd.f32 %v3817, %v4619
        %v4621 = vpop.f32.mrf.mxu0
        %v4622 = vadd.f32 %v3819, %v4621
        %4623 = vmatmul.bf16.gmra.mxu0 %v4271
        %v4624 = vpop.f32.mrf.mxu0
        %v4625 = vpop.f32.mrf.mxu0
        %v4626 = vadd.f32 %v3823, %v4625
        %4627 = vmatmul.bf16.gmra.mxu0 %v4280
        %v4628 = vpop.f32.mrf.mxu0
        %v4629 = vadd.f32 %v3826, %v4628
        %v4630 = vpop.f32.mrf.mxu0
        %4631 = vmatmul.bf16.gmra.mxu0 %v4289
        %v4632 = vpop.f32.mrf.mxu0
        %v4633 = vadd.f32 %v3830, %v4632
        %v4634 = vpop.f32.mrf.mxu0
        %v4635 = vadd.f32 %v3832, %v4634
        %4636 = vmatmul.bf16.gmra.mxu0 %v4298
        %v4637 = vpop.f32.mrf.mxu0
        %v4638 = vpop.f32.mrf.mxu0
        %v4639 = vadd.f32 %v3836, %v4638
        %4640 = vmatmul.bf16.gmra.mxu0 %v4307
        %v4641 = vpop.f32.mrf.mxu0
        %v4642 = vadd.f32 %v3839, %v4641
        %v4643 = vpop.f32.mrf.mxu0
        %4644 = vmatmul.bf16.gmra.mxu0 %v4316
        %v4645 = vpop.f32.mrf.mxu0
        %v4646 = vadd.f32 %v3843, %v4645
        %v4647 = vpop.f32.mrf.mxu0
        %v4648 = vadd.f32 %v3845, %v4647
        %4649 = vmatmul.bf16.gmra.mxu0 %v4325
        %v4650 = vpop.f32.mrf.mxu0
        %v4651 = vpop.f32.mrf.mxu0
        %v4652 = vadd.f32 %v3849, %v4651
        %4653 = vmatmul.bf16.gmra.mxu0 %v4334
        %v4654 = vpop.f32.mrf.mxu0
        %v4655 = vadd.f32 %v3852, %v4654
        %v4656 = vpop.f32.mrf.mxu0
        %4657 = vmatmul.bf16.gmra.mxu0 %v4343
        %v4658 = vpop.f32.mrf.mxu0
        %v4659 = vadd.f32 %v3856, %v4658
        %v4660 = vpop.f32.mrf.mxu0
        %v4661 = vadd.f32 %v3858, %v4660
        %4662 = vmatmul.bf16.gmra.mxu0 %v4352
        %v4663 = vpop.f32.mrf.mxu0
        %v4664 = vpop.f32.mrf.mxu0
        %v4665 = vadd.f32 %v3862, %v4664
        %4666 = vmatmul.bf16.gmra.mxu0 %v4361
        %v4667 = vpop.f32.mrf.mxu0
        %v4668 = vadd.f32 %v3865, %v4667
        %v4669 = vpop.f32.mrf.mxu0
        %4670 = vmatmul.bf16.gmra.mxu0 %v4370
        %v4671 = vpop.f32.mrf.mxu0
        %v4672 = vadd.f32 %v3869, %v4671
        %v4673 = vpop.f32.mrf.mxu0
        %v4674 = vadd.f32 %v3871, %v4673
        %4675 = vmatmul.bf16.gmra.mxu0 %v4379
        %v4676 = vpop.f32.mrf.mxu0
        %v4677 = vpop.f32.mrf.mxu0
        %v4678 = vadd.f32 %v3875, %v4677
        %4679 = vmatmul.bf16.gmra.mxu0 %v4388
        %v4680 = vpop.f32.mrf.mxu0
        %v4681 = vadd.f32 %v3878, %v4680
        %v4682 = vpop.f32.mrf.mxu0
        %4683 = vmatmul.bf16.gmra.mxu0 %v4397
        %v4684 = vpop.f32.mrf.mxu0
        %v4685 = vpop.f32.mrf.mxu0
        %4686 = vmatmul.bf16.gmra.mxu0 %v4406
        %v4687 = vpop.f32.mrf.mxu0
        %v4688 = vpop.f32.mrf.mxu0
        %4689 = vmatmul.bf16.gmra.mxu0 %v4415
        %v4690 = vpop.f32.mrf.mxu0
        %v4691 = vpop.f32.mrf.mxu0
        %4692 = vdwg.mxu0
        %4693 = vmatpush.bf16.msra.mxu0 %v4545
        %4694 = vmatpush.bf16.msra.mxu0 %v4542
        %4695 = vmatpush.bf16.msra.mxu0 %v4539
        %4696 = vmatpush.bf16.msra.mxu0 %v4536
        %4697 = vmatpush.bf16.msra.mxu0 %v4533
        %4698 = vmatpush.bf16.msra.mxu0 %v4530
        %4699 = vmatpush.bf16.msra.mxu0 %v4527
        %4700 = vmatpush.bf16.msra.mxu0 %v4524
        %4701 = vmatmul.bf16.gmra.mxu0 %v4181
        %v4702 = vpop.f32.mrf.mxu0
        %v4703 = vpop.f32.mrf.mxu0
        %4704 = vmatmul.bf16.gmra.mxu0 %v4190
        %v4705 = vpop.f32.mrf.mxu0
        %v4706 = vpop.f32.mrf.mxu0
        %v4707 = vadd.f32 %v3904, %v4706
        %4708 = vmatmul.bf16.gmra.mxu0 %v4199
        %v4709 = vpop.f32.mrf.mxu0
        %v4710 = vadd.f32 %v3907, %v4709
        %v4711 = vpop.f32.mrf.mxu0
        %4712 = vmatmul.bf16.gmra.mxu0 %v4208
        %v4713 = vpop.f32.mrf.mxu0
        %v4714 = vadd.f32 %v3911, %v4713
        %v4715 = vpop.f32.mrf.mxu0
        %v4716 = vadd.f32 %v3913, %v4715
        %4717 = vmatmul.bf16.gmra.mxu0 %v4217
        %v4718 = vpop.f32.mrf.mxu0
        %v4719 = vpop.f32.mrf.mxu0
        %v4720 = vadd.f32 %v3917, %v4719
        %4721 = vmatmul.bf16.gmra.mxu0 %v4226
        %v4722 = vpop.f32.mrf.mxu0
        %v4723 = vadd.f32 %v3920, %v4722
        %v4724 = vpop.f32.mrf.mxu0
        %4725 = vmatmul.bf16.gmra.mxu0 %v4235
        %v4726 = vpop.f32.mrf.mxu0
        %v4727 = vadd.f32 %v3924, %v4726
        %v4728 = vpop.f32.mrf.mxu0
        %v4729 = vadd.f32 %v3926, %v4728
        %4730 = vmatmul.bf16.gmra.mxu0 %v4244
        %v4731 = vpop.f32.mrf.mxu0
        %v4732 = vpop.f32.mrf.mxu0
        %v4733 = vadd.f32 %v3930, %v4732
        %4734 = vmatmul.bf16.gmra.mxu0 %v4253
        %v4735 = vpop.f32.mrf.mxu0
        %v4736 = vadd.f32 %v3933, %v4735
        %v4737 = vpop.f32.mrf.mxu0
        %4738 = vmatmul.bf16.gmra.mxu0 %v4262
        %v4739 = vpop.f32.mrf.mxu0
        %v4740 = vadd.f32 %v3937, %v4739
        %v4741 = vpop.f32.mrf.mxu0
        %v4742 = vadd.f32 %v3939, %v4741
        %4743 = vmatmul.bf16.gmra.mxu0 %v4271
        %v4744 = vpop.f32.mrf.mxu0
        %v4745 = vpop.f32.mrf.mxu0
        %v4746 = vadd.f32 %v3943, %v4745
        %4747 = vmatmul.bf16.gmra.mxu0 %v4280
        %v4748 = vpop.f32.mrf.mxu0
        %v4749 = vadd.f32 %v3946, %v4748
        %v4750 = vpop.f32.mrf.mxu0
        %4751 = vmatmul.bf16.gmra.mxu0 %v4289
        %v4752 = vpop.f32.mrf.mxu0
        %v4753 = vadd.f32 %v3950, %v4752
        %v4754 = vpop.f32.mrf.mxu0
        %v4755 = vadd.f32 %v3952, %v4754
        %4756 = vmatmul.bf16.gmra.mxu0 %v4298
        %v4757 = vpop.f32.mrf.mxu0
        %v4758 = vpop.f32.mrf.mxu0
        %v4759 = vadd.f32 %v3956, %v4758
        %4760 = vmatmul.bf16.gmra.mxu0 %v4307
        %v4761 = vpop.f32.mrf.mxu0
        %v4762 = vadd.f32 %v3959, %v4761
        %v4763 = vpop.f32.mrf.mxu0
        %4764 = vmatmul.bf16.gmra.mxu0 %v4316
        %v4765 = vpop.f32.mrf.mxu0
        %v4766 = vadd.f32 %v3963, %v4765
        %v4767 = vpop.f32.mrf.mxu0
        %v4768 = vadd.f32 %v3965, %v4767
        %4769 = vmatmul.bf16.gmra.mxu0 %v4325
        %v4770 = vpop.f32.mrf.mxu0
        %v4771 = vpop.f32.mrf.mxu0
        %v4772 = vadd.f32 %v3969, %v4771
        %4773 = vmatmul.bf16.gmra.mxu0 %v4334
        %v4774 = vpop.f32.mrf.mxu0
        %v4775 = vadd.f32 %v3972, %v4774
        %v4776 = vpop.f32.mrf.mxu0
        %4777 = vmatmul.bf16.gmra.mxu0 %v4343
        %v4778 = vpop.f32.mrf.mxu0
        %v4779 = vadd.f32 %v3976, %v4778
        %v4780 = vpop.f32.mrf.mxu0
        %v4781 = vadd.f32 %v3978, %v4780
        %4782 = vmatmul.bf16.gmra.mxu0 %v4352
        %v4783 = vpop.f32.mrf.mxu0
        %v4784 = vpop.f32.mrf.mxu0
        %v4785 = vadd.f32 %v3982, %v4784
        %4786 = vmatmul.bf16.gmra.mxu0 %v4361
        %v4787 = vpop.f32.mrf.mxu0
        %v4788 = vadd.f32 %v3985, %v4787
        %v4789 = vpop.f32.mrf.mxu0
        %4790 = vmatmul.bf16.gmra.mxu0 %v4370
        %v4791 = vpop.f32.mrf.mxu0
        %v4792 = vadd.f32 %v3989, %v4791
        %v4793 = vpop.f32.mrf.mxu0
        %v4794 = vadd.f32 %v3991, %v4793
        %4795 = vmatmul.bf16.gmra.mxu0 %v4379
        %v4796 = vpop.f32.mrf.mxu0
        %v4797 = vpop.f32.mrf.mxu0
        %v4798 = vadd.f32 %v3995, %v4797
        %4799 = vmatmul.bf16.gmra.mxu0 %v4388
        %v4800 = vpop.f32.mrf.mxu0
        %v4801 = vadd.f32 %v3998, %v4800
        %v4802 = vpop.f32.mrf.mxu0
        %4803 = vmatmul.bf16.gmra.mxu0 %v4397
        %v4804 = vpop.f32.mrf.mxu0
        %v4805 = vadd.f32 %v4002, %v4804
        %v4806 = vpop.f32.mrf.mxu0
        %v4807 = vadd.f32 %v4004, %v4806
        %4808 = vmatmul.bf16.gmra.mxu0 %v4406
        %v4809 = vpop.f32.mrf.mxu0
        %v4810 = vpop.f32.mrf.mxu0
        %4811 = vmatmul.bf16.gmra.mxu0 %v4415
        %v4812 = vpop.f32.mrf.mxu0
        %v4813 = vpop.f32.mrf.mxu0
        %4814 = vdwg.mxu0
        %4815 = vmatpush.bf16.msra.mxu0 %v4546
        %4816 = vmatpush.bf16.msra.mxu0 %v4543
        %4817 = vmatpush.bf16.msra.mxu0 %v4540
        %4818 = vmatpush.bf16.msra.mxu0 %v4537
        %4819 = vmatpush.bf16.msra.mxu0 %v4534
        %4820 = vmatpush.bf16.msra.mxu0 %v4531
        %4821 = vmatpush.bf16.msra.mxu0 %v4528
        %4822 = vmatpush.bf16.msra.mxu0 %v4525
        %4823 = vmatmul.bf16.gmra.mxu0 %v4181
        %v4824 = vpop.f32.mrf.mxu0
        %v4825 = vpop.f32.mrf.mxu0
        %4826 = vmatmul.bf16.gmra.mxu0 %v4190
        %v4827 = vpop.f32.mrf.mxu0
        %v4828 = vpop.f32.mrf.mxu0
        %4829 = vmatmul.bf16.gmra.mxu0 %v4199
        %v4830 = vpop.f32.mrf.mxu0
        %v4831 = vpop.f32.mrf.mxu0
        %4832 = vmatmul.bf16.gmra.mxu0 %v4208
        %v4833 = vpop.f32.mrf.mxu0
        %v4834 = vadd.f32 %v4031, %v4833
        %v4835 = vpop.f32.mrf.mxu0
        %v4836 = vadd.f32 %v4033, %v4835
        %4837 = vmatmul.bf16.gmra.mxu0 %v4217
        %v4838 = vpop.f32.mrf.mxu0
        %v4839 = vpop.f32.mrf.mxu0
        %v4840 = vadd.f32 %v4037, %v4839
        %4841 = vmatmul.bf16.gmra.mxu0 %v4226
        %v4842 = vpop.f32.mrf.mxu0
        %v4843 = vadd.f32 %v4040, %v4842
        %v4844 = vpop.f32.mrf.mxu0
        %4845 = vmatmul.bf16.gmra.mxu0 %v4235
        %v4846 = vpop.f32.mrf.mxu0
        %v4847 = vadd.f32 %v4044, %v4846
        %v4848 = vpop.f32.mrf.mxu0
        %v4849 = vadd.f32 %v4046, %v4848
        %4850 = vmatmul.bf16.gmra.mxu0 %v4244
        %v4851 = vpop.f32.mrf.mxu0
        %v4852 = vpop.f32.mrf.mxu0
        %v4853 = vadd.f32 %v4050, %v4852
        %4854 = vmatmul.bf16.gmra.mxu0 %v4253
        %v4855 = vpop.f32.mrf.mxu0
        %v4856 = vadd.f32 %v4053, %v4855
        %v4857 = vpop.f32.mrf.mxu0
        %4858 = vmatmul.bf16.gmra.mxu0 %v4262
        %v4859 = vpop.f32.mrf.mxu0
        %v4860 = vadd.f32 %v4057, %v4859
        %v4861 = vpop.f32.mrf.mxu0
        %v4862 = vadd.f32 %v4059, %v4861
        %4863 = vmatmul.bf16.gmra.mxu0 %v4271
        %v4864 = vpop.f32.mrf.mxu0
        %v4865 = vpop.f32.mrf.mxu0
        %v4866 = vadd.f32 %v4063, %v4865
        %4867 = vmatmul.bf16.gmra.mxu0 %v4280
        %v4868 = vpop.f32.mrf.mxu0
        %v4869 = vadd.f32 %v4066, %v4868
        %v4870 = vpop.f32.mrf.mxu0
        %4871 = vmatmul.bf16.gmra.mxu0 %v4289
        %v4872 = vpop.f32.mrf.mxu0
        %v4873 = vadd.f32 %v4070, %v4872
        %v4874 = vpop.f32.mrf.mxu0
        %v4875 = vadd.f32 %v4072, %v4874
        %4876 = vmatmul.bf16.gmra.mxu0 %v4298
        %v4877 = vpop.f32.mrf.mxu0
        %v4878 = vpop.f32.mrf.mxu0
        %v4879 = vadd.f32 %v4076, %v4878
        %4880 = vmatmul.bf16.gmra.mxu0 %v4307
        %v4881 = vpop.f32.mrf.mxu0
        %v4882 = vadd.f32 %v4079, %v4881
        %v4883 = vpop.f32.mrf.mxu0
        %4884 = vmatmul.bf16.gmra.mxu0 %v4316
        %v4885 = vpop.f32.mrf.mxu0
        %v4886 = vadd.f32 %v4083, %v4885
        %v4887 = vpop.f32.mrf.mxu0
        %v4888 = vadd.f32 %v4085, %v4887
        %4889 = vmatmul.bf16.gmra.mxu0 %v4325
        %v4890 = vpop.f32.mrf.mxu0
        %v4891 = vpop.f32.mrf.mxu0
        %v4892 = vadd.f32 %v4089, %v4891
        %4893 = vmatmul.bf16.gmra.mxu0 %v4334
        %v4894 = vpop.f32.mrf.mxu0
        %v4895 = vadd.f32 %v4092, %v4894
        %v4896 = vpop.f32.mrf.mxu0
        %4897 = vmatmul.bf16.gmra.mxu0 %v4343
        %v4898 = vpop.f32.mrf.mxu0
        %v4899 = vadd.f32 %v4096, %v4898
        %v4900 = vpop.f32.mrf.mxu0
        %v4901 = vadd.f32 %v4098, %v4900
        %4902 = vmatmul.bf16.gmra.mxu0 %v4352
        %v4903 = vpop.f32.mrf.mxu0
        %v4904 = vpop.f32.mrf.mxu0
        %v4905 = vadd.f32 %v4102, %v4904
        %4906 = vmatmul.bf16.gmra.mxu0 %v4361
        %v4907 = vpop.f32.mrf.mxu0
        %v4908 = vadd.f32 %v4105, %v4907
        %v4909 = vpop.f32.mrf.mxu0
        %4910 = vmatmul.bf16.gmra.mxu0 %v4370
        %v4911 = vpop.f32.mrf.mxu0
        %v4912 = vadd.f32 %v4109, %v4911
        %v4913 = vpop.f32.mrf.mxu0
        %v4914 = vadd.f32 %v4111, %v4913
        %4915 = vmatmul.bf16.gmra.mxu0 %v4379
        %v4916 = vpop.f32.mrf.mxu0
        %v4917 = vpop.f32.mrf.mxu0
        %v4918 = vadd.f32 %v4115, %v4917
        %4919 = vmatmul.bf16.gmra.mxu0 %v4388
        %v4920 = vpop.f32.mrf.mxu0
        %v4921 = vadd.f32 %v4118, %v4920
        %v4922 = vpop.f32.mrf.mxu0
        %4923 = vmatmul.bf16.gmra.mxu0 %v4397
        %v4924 = vpop.f32.mrf.mxu0
        %v4925 = vadd.f32 %v4122, %v4924
        %v4926 = vpop.f32.mrf.mxu0
        %v4927 = vadd.f32 %v4124, %v4926
        %4928 = vmatmul.bf16.gmra.mxu0 %v4406
        %v4929 = vpop.f32.mrf.mxu0
        %v4930 = vpop.f32.mrf.mxu0
        %v4931 = vadd.f32 %v4128, %v4930
        %4932 = vmatmul.bf16.gmra.mxu0 %v4415
        %v4933 = vpop.f32.mrf.mxu0
        %v4934 = vadd.f32 %v4131, %v4933
        %v4935 = vpop.f32.mrf.mxu0
        %4936 = vdwg.mxu0
        %v4937 = vld [vmem:[#allocation2 + $0x4] sm:$0xf]
        %v4938 = vld [vmem:[#allocation2 + $0x8] sm:$0xf]
        %v4939 = vld [vmem:[#allocation2 + $0xc] sm:$0xf]
        %v4940 = vld [vmem:[#allocation2 + $0x10] sm:$0xf]
        %v4941 = vld [vmem:[#allocation2 + $0x14] sm:$0xf]
        %v4942 = vld [vmem:[#allocation2 + $0x18] sm:$0xf]
        %v4943 = vld [vmem:[#allocation2 + $0x1c] sm:$0xf]
        %v4944 = vld [vmem:[#allocation2 + $0x20] sm:$0xf]
        %v4945 = vld [vmem:[#allocation2 + $0x24] sm:$0xf]
        %v4946 = vld [vmem:[#allocation2 + $0x28] sm:$0xf]
        %v4947 = vld [vmem:[#allocation2 + $0x2c] sm:$0xf]
        %v4948 = vld [vmem:[#allocation2 + $0x30] sm:$0xf]
        %v4949 = vld [vmem:[#allocation2 + $0x34] sm:$0xf]
        %v4950 = vld [vmem:[#allocation2 + $0x38] sm:$0xf]
        %v4951 = vld [vmem:[#allocation2 + $0x3c] sm:$0xf]
        %v4952 = vld [vmem:[#allocation2 + $0x40] sm:$0xf]
        %v4953 = vld [vmem:[#allocation2 + $0x44] sm:$0xf]
        %v4954 = vld [vmem:[#allocation2 + $0x48] sm:$0xf]
        %v4955 = vld [vmem:[#allocation2 + $0x4c] sm:$0xf]
        %v4956 = vld [vmem:[#allocation2 + $0x50] sm:$0xf]
        %v4957 = vld [vmem:[#allocation2 + $0x54] sm:$0xf]
        %v4958 = vld [vmem:[#allocation2 + $0x58] sm:$0xf]
        %v4959 = vld [vmem:[#allocation2 + $0x5c] sm:$0xf]
        %v4960 = vld [vmem:[#allocation2 + $0x60] sm:$0xf]
        %v4961 = vld [vmem:[#allocation2 + $0x64] sm:$0xf]
        %v4962 = vld [vmem:[#allocation2 + $0x68] sm:$0xf]
        %v4963 = vld [vmem:[#allocation2 + $0x6c] sm:$0xf]
        %v4964 = vld [vmem:[#allocation2 + $0x70] sm:$0xf]
        %v4965 = vld [vmem:[#allocation2 + $0x74] sm:$0xf]
        %v4966 = vld [vmem:[#allocation2 + $0x78] sm:$0xf]
        %v4967 = vld [vmem:[#allocation2 + $0x7c] sm:$0xf]
        %v4968 = vld [vmem:[#allocation2 + $0x80] sm:$0xf]
        %v4969 = vld [vmem:[#allocation2 + $0x84] sm:$0xf]
        %v4970 = vld [vmem:[#allocation2 + $0x88] sm:$0xf]
        %v4971 = vld [vmem:[#allocation2 + $0x8c] sm:$0xf]
        %v4972 = vld [vmem:[#allocation2 + $0x90] sm:$0xf]
        %v4973 = vld [vmem:[#allocation2 + $0x94] sm:$0xf]
        %v4974 = vld [vmem:[#allocation2 + $0x98] sm:$0xf]
        %v4975 = vld [vmem:[#allocation2 + $0x9c] sm:$0xf]
        %v4976 = vld [vmem:[#allocation2 + $0xa0] sm:$0xf]
        %v4977 = vld [vmem:[#allocation2 + $0xa4] sm:$0xf]
        %v4978 = vld [vmem:[#allocation2 + $0xa8] sm:$0xf]
        %v4979 = vld [vmem:[#allocation2 + $0xac] sm:$0xf]
        %v4980 = vld [vmem:[#allocation2 + $0xb0] sm:$0xf]
        %v4981 = vld [vmem:[#allocation2 + $0xb4] sm:$0xf]
        %v4982 = vld [vmem:[#allocation2 + $0xb8] sm:$0xf]
        %v4983 = vld [vmem:[#allocation2 + $0xbc] sm:$0xf]
        %v4984 = vld [vmem:[#allocation2 + $0xc0] sm:$0xf]
        %v4985 = vld [vmem:[#allocation2 + $0xc4] sm:$0xf]
        %v4986 = vld [vmem:[#allocation2 + $0xc8] sm:$0xf]
        %v4987 = vld [vmem:[#allocation2 + $0xcc] sm:$0xf]
        %v4988 = vld [vmem:[#allocation2 + $0xd0] sm:$0xf]
        %v4989 = vld [vmem:[#allocation2 + $0xd4] sm:$0xf]
        %v4990 = vld [vmem:[#allocation2 + $0xd8] sm:$0xf]
        %v4991 = vld [vmem:[#allocation2 + $0xdc] sm:$0x1]
        %s4992 = scalar_lea.vmem %s2, 384
        %v4993 = vld [vmem:[%s4992] sm:$0xff]
        %v4994 = vld [vmem:[%s4992 + $0x8] sm:$0xf]
        %v4995 = vld [vmem:[%s4992 + $0xc] sm:$0xff]
        %v4996 = vld [vmem:[%s4992 + $0x14] sm:$0xf]
        %v4997 = vld [vmem:[%s4992 + $0x18] sm:$0xff]
        %v4998 = vld [vmem:[%s4992 + $0x20] sm:$0xf]
        %v4999 = vld [vmem:[%s4992 + $0x24] sm:$0xff]
        %v5000 = vld [vmem:[%s4992 + $0x2c] sm:$0xf]
        %v5001 = vld [vmem:[%s4992 + $0x30] sm:$0xff]
        %v5002 = vld [vmem:[%s4992 + $0x38] sm:$0xf]
        %v5003 = vld [vmem:[%s4992 + $0x3c] sm:$0xff]
        %v5004 = vld [vmem:[%s4992 + $0x44] sm:$0xf]
        %v5005 = vld [vmem:[%s4992 + $0x48] sm:$0xff]
        %v5006 = vld [vmem:[%s4992 + $0x50] sm:$0xf]
        %v5007 = vld [vmem:[%s4992 + $0x54] sm:$0xff]
        %v5008 = vld [vmem:[%s4992 + $0x5c] sm:$0xf]
        %v5009 = vld [vmem:[%s4992 + $0x60] sm:$0xff]
        %v5010 = vld [vmem:[%s4992 + $0x68] sm:$0xf]
        %v5011 = vld [vmem:[%s4992 + $0x6c] sm:$0xff]
        %v5012 = vld [vmem:[%s4992 + $0x74] sm:$0xf]
        %v5013 = vld [vmem:[%s4992 + $0x78] sm:$0xff]
        %v5014 = vld [vmem:[%s4992 + $0x80] sm:$0xf]
        %v5015 = vld [vmem:[%s4992 + $0x84] sm:$0xff]
        %v5016 = vld [vmem:[%s4992 + $0x8c] sm:$0xf]
        %v5017 = vld [vmem:[%s4992 + $0x90] sm:$0xff]
        %v5018 = vld [vmem:[%s4992 + $0x98] sm:$0xf]
        %v5019 = vld [vmem:[%s4992 + $0x9c] sm:$0xff]
        %v5020 = vld [vmem:[%s4992 + $0xa4] sm:$0xf]
        %v5021 = vld [vmem:[%s4992 + $0xa8] sm:$0xff]
        %v5022 = vld [vmem:[%s4992 + $0xb0] sm:$0xf]
        %v5023 = vld [vmem:[%s4992 + $0xb4] sm:$0xff]
        %v5024 = vld [vmem:[%s4992 + $0xbc] sm:$0xf]
        %v5080 = vunpack.c.l.b16 %v4937
        %v5081 = vunpack.c.l.b16 %v4938
        %v5082 = vunpack.c.l.b16 %v4939
        %v5083 = vunpack.c.l.b16 %v4940
        %v5084 = vunpack.c.l.b16 %v4941
        %v5085 = vunpack.c.l.b16 %v4942
        %v5086 = vunpack.c.l.b16 %v4943
        %v5087 = vunpack.c.l.b16 %v4944
        %v5088 = vunpack.c.l.b16 %v4945
        %v5089 = vunpack.c.l.b16 %v4946
        %v5090 = vunpack.c.l.b16 %v4947
        %v5091 = vunpack.c.l.b16 %v4948
        %v5092 = vunpack.c.l.b16 %v4949
        %v5093 = vunpack.c.l.b16 %v4950
        %v5094 = vunpack.c.l.b16 %v4951
        %v5095 = vunpack.c.l.b16 %v4952
        %v5096 = vunpack.c.l.b16 %v4953
        %v5097 = vunpack.c.l.b16 %v4954
        %v5098 = vunpack.c.l.b16 %v4955
        %v5099 = vunpack.c.l.b16 %v4956
        %v5100 = vunpack.c.l.b16 %v4957
        %v5101 = vunpack.c.l.b16 %v4958
        %v5102 = vunpack.c.l.b16 %v4959
        %v5103 = vunpack.c.l.b16 %v4960
        %v5104 = vunpack.c.l.b16 %v4961
        %v5105 = vunpack.c.l.b16 %v4962
        %v5106 = vunpack.c.l.b16 %v4963
        %v5107 = vunpack.c.l.b16 %v4964
        %v5108 = vunpack.c.l.b16 %v4965
        %v5109 = vunpack.c.l.b16 %v4966
        %v5110 = vunpack.c.l.b16 %v4967
        %v5111 = vunpack.c.l.b16 %v4968
        %v5112 = vunpack.c.l.b16 %v4969
        %v5113 = vunpack.c.l.b16 %v4970
        %v5114 = vunpack.c.l.b16 %v4971
        %v5115 = vunpack.c.l.b16 %v4972
        %v5116 = vunpack.c.l.b16 %v4973
        %v5117 = vunpack.c.l.b16 %v4974
        %v5118 = vunpack.c.l.b16 %v4975
        %v5119 = vunpack.c.l.b16 %v4976
        %v5120 = vunpack.c.l.b16 %v4977
        %v5121 = vunpack.c.l.b16 %v4978
        %v5122 = vunpack.c.l.b16 %v4979
        %v5123 = vunpack.c.l.b16 %v4980
        %v5124 = vunpack.c.l.b16 %v4981
        %v5125 = vunpack.c.l.b16 %v4982
        %v5126 = vunpack.c.l.b16 %v4983
        %v5127 = vunpack.c.l.b16 %v4984
        %v5128 = vunpack.c.l.b16 %v4985
        %v5129 = vunpack.c.l.b16 %v4986
        %v5130 = vunpack.c.l.b16 %v4987
        %v5131 = vunpack.c.l.b16 %v4988
        %v5132 = vunpack.c.l.b16 %v4989
        %v5133 = vunpack.c.l.b16 %v4990
        %v5134 = vunpack.c.l.b16 %v4991
        %v5135 = vpack.c.b16 %v5081, %v5080
        %v5136 = vpack.c.b16 %v5083, %v5082
        %v5137 = vpack.c.b16 %v5085, %v5084
        %v5138 = vpack.c.b16 %v5087, %v5086
        %v5139 = vpack.c.b16 %v5089, %v5088
        %v5140 = vpack.c.b16 %v5091, %v5090
        %v5141 = vpack.c.b16 %v5093, %v5092
        %v5142 = vpack.c.b16 %v5095, %v5094
        %v5143 = vpack.c.b16 %v5097, %v5096
        %v5144 = vpack.c.b16 %v5099, %v5098
        %v5145 = vpack.c.b16 %v5101, %v5100
        %v5146 = vpack.c.b16 %v5103, %v5102
        %v5147 = vpack.c.b16 %v5105, %v5104
        %v5148 = vpack.c.b16 %v5107, %v5106
        %v5149 = vpack.c.b16 %v5109, %v5108
        %v5150 = vpack.c.b16 %v5111, %v5110
        %v5151 = vpack.c.b16 %v5113, %v5112
        %v5152 = vpack.c.b16 %v5115, %v5114
        %v5153 = vpack.c.b16 %v5117, %v5116
        %v5154 = vpack.c.b16 %v5119, %v5118
        %v5155 = vpack.c.b16 %v5121, %v5120
        %v5156 = vpack.c.b16 %v5123, %v5122
        %v5157 = vpack.c.b16 %v5125, %v5124
        %v5158 = vpack.c.b16 %v5127, %v5126
        %v5159 = vpack.c.b16 %v5129, %v5128
        %v5160 = vpack.c.b16 %v5131, %v5130
        %v5161 = vpack.c.b16 %v5133, %v5132
        %v5162 = vpack.c.b16 %v5134, %v5134
        %v5164 = vshrl.u32 %v5135, 16
        %v5166 = vshll.u32 %v5135, 16
        %v5168 = vrot.slane %v5166, 1
        %v5169 = vor.u32 %v5164, %v5168
        %v5171 = vshll.u32 %v5136, 16
        %v5173 = vrot.slane %v5171, 1
        %v5174 = vsel %vm509, %v5169, %v5173
        %v5175 = vshrl.u32 %v5136, 16
        %v5177 = vor.u32 %v5175, %v5173
        %v5179 = vshll.u32 %v5137, 16
        %v5181 = vrot.slane %v5179, 1
        %v5182 = vsel %vm509, %v5177, %v5181
        %v5183 = vshrl.u32 %v5137, 16
        %v5185 = vor.u32 %v5183, %v5181
        %v5187 = vshll.u32 %v5138, 16
        %v5189 = vrot.slane %v5187, 1
        %v5190 = vsel %vm509, %v5185, %v5189
        %v5191 = vshrl.u32 %v5138, 16
        %v5193 = vor.u32 %v5191, %v5189
        %v5195 = vshll.u32 %v5139, 16
        %v5197 = vrot.slane %v5195, 1
        %v5198 = vsel %vm509, %v5193, %v5197
        %v5199 = vshrl.u32 %v5139, 16
        %v5201 = vor.u32 %v5199, %v5197
        %v5203 = vshll.u32 %v5140, 16
        %v5205 = vrot.slane %v5203, 1
        %v5206 = vsel %vm509, %v5201, %v5205
        %v5207 = vshrl.u32 %v5140, 16
        %v5209 = vor.u32 %v5207, %v5205
        %v5211 = vshll.u32 %v5141, 16
        %v5213 = vrot.slane %v5211, 1
        %v5214 = vsel %vm509, %v5209, %v5213
        %v5215 = vshrl.u32 %v5141, 16
        %v5217 = vor.u32 %v5215, %v5213
        %v5219 = vshll.u32 %v5142, 16
        %v5221 = vrot.slane %v5219, 1
        %v5222 = vsel %vm509, %v5217, %v5221
        %v5223 = vshrl.u32 %v5142, 16
        %v5225 = vor.u32 %v5223, %v5221
        %v5227 = vshll.u32 %v5143, 16
        %v5229 = vrot.slane %v5227, 1
        %v5230 = vsel %vm509, %v5225, %v5229
        %v5231 = vshrl.u32 %v5143, 16
        %v5233 = vor.u32 %v5231, %v5229
        %v5235 = vshll.u32 %v5144, 16
        %v5237 = vrot.slane %v5235, 1
        %v5238 = vsel %vm509, %v5233, %v5237
        %v5239 = vshrl.u32 %v5144, 16
        %v5241 = vor.u32 %v5239, %v5237
        %v5243 = vshll.u32 %v5145, 16
        %v5245 = vrot.slane %v5243, 1
        %v5246 = vsel %vm509, %v5241, %v5245
        %v5247 = vshrl.u32 %v5145, 16
        %v5249 = vor.u32 %v5247, %v5245
        %v5251 = vshll.u32 %v5146, 16
        %v5253 = vrot.slane %v5251, 1
        %v5254 = vsel %vm509, %v5249, %v5253
        %v5255 = vshrl.u32 %v5146, 16
        %v5257 = vor.u32 %v5255, %v5253
        %v5259 = vshll.u32 %v5147, 16
        %v5261 = vrot.slane %v5259, 1
        %v5262 = vsel %vm509, %v5257, %v5261
        %v5263 = vshrl.u32 %v5147, 16
        %v5265 = vor.u32 %v5263, %v5261
        %v5267 = vshll.u32 %v5148, 16
        %v5269 = vrot.slane %v5267, 1
        %v5270 = vsel %vm509, %v5265, %v5269
        %v5271 = vshrl.u32 %v5148, 16
        %v5273 = vor.u32 %v5271, %v5269
        %v5275 = vshll.u32 %v5149, 16
        %v5277 = vrot.slane %v5275, 1
        %v5278 = vsel %vm509, %v5273, %v5277
        %v5279 = vshrl.u32 %v5149, 16
        %v5281 = vor.u32 %v5279, %v5277
        %v5283 = vshll.u32 %v5150, 16
        %v5285 = vrot.slane %v5283, 1
        %v5286 = vsel %vm509, %v5281, %v5285
        %v5287 = vshrl.u32 %v5150, 16
        %v5289 = vor.u32 %v5287, %v5285
        %v5291 = vshll.u32 %v5151, 16
        %v5293 = vrot.slane %v5291, 1
        %v5294 = vsel %vm509, %v5289, %v5293
        %v5295 = vshrl.u32 %v5151, 16
        %v5297 = vor.u32 %v5295, %v5293
        %v5299 = vshll.u32 %v5152, 16
        %v5301 = vrot.slane %v5299, 1
        %v5302 = vsel %vm509, %v5297, %v5301
        %v5303 = vshrl.u32 %v5152, 16
        %v5305 = vor.u32 %v5303, %v5301
        %v5307 = vshll.u32 %v5153, 16
        %v5309 = vrot.slane %v5307, 1
        %v5310 = vsel %vm509, %v5305, %v5309
        %v5311 = vshrl.u32 %v5153, 16
        %v5313 = vor.u32 %v5311, %v5309
        %v5315 = vshll.u32 %v5154, 16
        %v5317 = vrot.slane %v5315, 1
        %v5318 = vsel %vm509, %v5313, %v5317
        %v5319 = vshrl.u32 %v5154, 16
        %v5321 = vor.u32 %v5319, %v5317
        %v5323 = vshll.u32 %v5155, 16
        %v5325 = vrot.slane %v5323, 1
        %v5326 = vsel %vm509, %v5321, %v5325
        %v5327 = vshrl.u32 %v5155, 16
        %v5329 = vor.u32 %v5327, %v5325
        %v5331 = vshll.u32 %v5156, 16
        %v5333 = vrot.slane %v5331, 1
        %v5334 = vsel %vm509, %v5329, %v5333
        %v5335 = vshrl.u32 %v5156, 16
        %v5337 = vor.u32 %v5335, %v5333
        %v5339 = vshll.u32 %v5157, 16
        %v5341 = vrot.slane %v5339, 1
        %v5342 = vsel %vm509, %v5337, %v5341
        %v5343 = vshrl.u32 %v5157, 16
        %v5345 = vor.u32 %v5343, %v5341
        %v5347 = vshll.u32 %v5158, 16
        %v5349 = vrot.slane %v5347, 1
        %v5350 = vsel %vm509, %v5345, %v5349
        %v5351 = vshrl.u32 %v5158, 16
        %v5353 = vor.u32 %v5351, %v5349
        %v5355 = vshll.u32 %v5159, 16
        %v5357 = vrot.slane %v5355, 1
        %v5358 = vsel %vm509, %v5353, %v5357
        %v5359 = vshrl.u32 %v5159, 16
        %v5361 = vor.u32 %v5359, %v5357
        %v5363 = vshll.u32 %v5160, 16
        %v5365 = vrot.slane %v5363, 1
        %v5366 = vsel %vm509, %v5361, %v5365
        %v5367 = vshrl.u32 %v5160, 16
        %v5369 = vor.u32 %v5367, %v5365
        %v5371 = vshll.u32 %v5161, 16
        %v5373 = vrot.slane %v5371, 1
        %v5374 = vsel %vm509, %v5369, %v5373
        %v5375 = vshrl.u32 %v5161, 16
        %v5377 = vor.u32 %v5375, %v5373
        %v5379 = vshll.u32 %v5162, 16
        %v5381 = vrot.slane %v5379, 1
        %v5382 = vsel %vm509, %v5377, %v5381
        %v5442 = vunpack.c.l.b16 %v4993
        %v5443 = vunpack.c.h.b16 %v4993
        %v5444 = vunpack.c.l.b16 %v4994
        %v5445 = vunpack.c.l.b16 %v4995
        %v5446 = vunpack.c.h.b16 %v4995
        %v5447 = vunpack.c.l.b16 %v4996
        %v5448 = vunpack.c.l.b16 %v4997
        %v5449 = vunpack.c.h.b16 %v4997
        %v5450 = vunpack.c.l.b16 %v4998
        %v5451 = vunpack.c.l.b16 %v4999
        %v5452 = vunpack.c.h.b16 %v4999
        %v5453 = vunpack.c.l.b16 %v5000
        %v5454 = vunpack.c.l.b16 %v5001
        %v5455 = vunpack.c.h.b16 %v5001
        %v5456 = vunpack.c.l.b16 %v5002
        %v5457 = vunpack.c.l.b16 %v5003
        %v5458 = vunpack.c.h.b16 %v5003
        %v5459 = vunpack.c.l.b16 %v5004
        %v5460 = vunpack.c.l.b16 %v5005
        %v5461 = vunpack.c.h.b16 %v5005
        %v5462 = vunpack.c.l.b16 %v5006
        %v5463 = vunpack.c.l.b16 %v5007
        %v5464 = vunpack.c.h.b16 %v5007
        %v5465 = vunpack.c.l.b16 %v5008
        %v5466 = vunpack.c.l.b16 %v5009
        %v5467 = vunpack.c.h.b16 %v5009
        %v5468 = vunpack.c.l.b16 %v5010
        %v5469 = vunpack.c.l.b16 %v5011
        %v5470 = vunpack.c.h.b16 %v5011
        %v5471 = vunpack.c.l.b16 %v5012
        %v5472 = vunpack.c.l.b16 %v5013
        %v5473 = vunpack.c.h.b16 %v5013
        %v5474 = vunpack.c.l.b16 %v5014
        %v5475 = vunpack.c.l.b16 %v5015
        %v5476 = vunpack.c.h.b16 %v5015
        %v5477 = vunpack.c.l.b16 %v5016
        %v5478 = vunpack.c.l.b16 %v5017
        %v5479 = vunpack.c.h.b16 %v5017
        %v5480 = vunpack.c.l.b16 %v5018
        %v5481 = vunpack.c.l.b16 %v5019
        %v5482 = vunpack.c.h.b16 %v5019
        %v5483 = vunpack.c.l.b16 %v5020
        %v5484 = vunpack.c.l.b16 %v5021
        %v5485 = vunpack.c.h.b16 %v5021
        %v5486 = vunpack.c.l.b16 %v5022
        %v5487 = vunpack.c.l.b16 %v5023
        %v5488 = vunpack.c.h.b16 %v5023
        %v5489 = vunpack.c.l.b16 %v5024
        %v5490 = vpack.c.b16 %v5445, %v5442
        %v5491 = vpack.c.b16 %v5446, %v5443
        %v5492 = vpack.c.b16 %v5447, %v5444
        %v5493 = vpack.c.b16 %v5451, %v5448
        %v5494 = vpack.c.b16 %v5452, %v5449
        %v5495 = vpack.c.b16 %v5453, %v5450
        %v5496 = vpack.c.b16 %v5457, %v5454
        %v5497 = vpack.c.b16 %v5458, %v5455
        %v5498 = vpack.c.b16 %v5459, %v5456
        %v5499 = vpack.c.b16 %v5463, %v5460
        %v5500 = vpack.c.b16 %v5464, %v5461
        %v5501 = vpack.c.b16 %v5465, %v5462
        %v5502 = vpack.c.b16 %v5469, %v5466
        %v5503 = vpack.c.b16 %v5470, %v5467
        %v5504 = vpack.c.b16 %v5471, %v5468
        %v5505 = vpack.c.b16 %v5475, %v5472
        %v5506 = vpack.c.b16 %v5476, %v5473
        %v5507 = vpack.c.b16 %v5477, %v5474
        %v5508 = vpack.c.b16 %v5481, %v5478
        %v5509 = vpack.c.b16 %v5482, %v5479
        %v5510 = vpack.c.b16 %v5483, %v5480
        %v5511 = vpack.c.b16 %v5487, %v5484
        %v5512 = vpack.c.b16 %v5488, %v5485
        %v5513 = vpack.c.b16 %v5489, %v5486
        %5538 = vmatpush.bf16.msra.mxu0 %v5511
        %5539 = vmatpush.bf16.msra.mxu0 %v5508
        %5540 = vmatpush.bf16.msra.mxu0 %v5505
        %5541 = vmatpush.bf16.msra.mxu0 %v5502
        %5542 = vmatpush.bf16.msra.mxu0 %v5499
        %5543 = vmatpush.bf16.msra.mxu0 %v5496
        %5544 = vmatpush.bf16.msra.mxu0 %v5493
        %5545 = vmatpush.bf16.msra.mxu0 %v5490
        %5546 = vmatmul.bf16.gmra.mxu0 %v5174
        %v5547 = vpop.f32.mrf.mxu0
        %v5548 = vadd.f32 0.0, %v5547
        %v5549 = vpop.f32.mrf.mxu0
        %v5550 = vadd.f32 0.0, %v5549
        %5551 = vmatmul.bf16.gmra.mxu0 %v5182
        %v5552 = vpop.f32.mrf.mxu0
        %v5553 = vpop.f32.mrf.mxu0
        %v5554 = vadd.f32 0.0, %v5553
        %5555 = vmatmul.bf16.gmra.mxu0 %v5190
        %v5556 = vpop.f32.mrf.mxu0
        %v5557 = vadd.f32 0.0, %v5556
        %v5558 = vpop.f32.mrf.mxu0
        %5559 = vmatmul.bf16.gmra.mxu0 %v5198
        %v5560 = vpop.f32.mrf.mxu0
        %v5561 = vadd.f32 0.0, %v5560
        %v5562 = vpop.f32.mrf.mxu0
        %v5563 = vadd.f32 0.0, %v5562
        %5564 = vmatmul.bf16.gmra.mxu0 %v5206
        %v5565 = vpop.f32.mrf.mxu0
        %v5566 = vpop.f32.mrf.mxu0
        %v5567 = vadd.f32 0.0, %v5566
        %5568 = vmatmul.bf16.gmra.mxu0 %v5214
        %v5569 = vpop.f32.mrf.mxu0
        %v5570 = vadd.f32 0.0, %v5569
        %v5571 = vpop.f32.mrf.mxu0
        %5572 = vmatmul.bf16.gmra.mxu0 %v5222
        %v5573 = vpop.f32.mrf.mxu0
        %v5574 = vadd.f32 0.0, %v5573
        %v5575 = vpop.f32.mrf.mxu0
        %v5576 = vadd.f32 0.0, %v5575
        %5577 = vmatmul.bf16.gmra.mxu0 %v5230
        %v5578 = vpop.f32.mrf.mxu0
        %v5579 = vpop.f32.mrf.mxu0
        %v5580 = vadd.f32 0.0, %v5579
        %5581 = vmatmul.bf16.gmra.mxu0 %v5238
        %v5582 = vpop.f32.mrf.mxu0
        %v5583 = vadd.f32 0.0, %v5582
        %v5584 = vpop.f32.mrf.mxu0
        %5585 = vmatmul.bf16.gmra.mxu0 %v5246
        %v5586 = vpop.f32.mrf.mxu0
        %v5587 = vadd.f32 0.0, %v5586
        %v5588 = vpop.f32.mrf.mxu0
        %v5589 = vadd.f32 0.0, %v5588
        %5590 = vmatmul.bf16.gmra.mxu0 %v5254
        %v5591 = vpop.f32.mrf.mxu0
        %v5592 = vpop.f32.mrf.mxu0
        %v5593 = vadd.f32 0.0, %v5592
        %5594 = vmatmul.bf16.gmra.mxu0 %v5262
        %v5595 = vpop.f32.mrf.mxu0
        %v5596 = vadd.f32 0.0, %v5595
        %v5597 = vpop.f32.mrf.mxu0
        %5598 = vmatmul.bf16.gmra.mxu0 %v5270
        %v5599 = vpop.f32.mrf.mxu0
        %v5600 = vadd.f32 0.0, %v5599
        %v5601 = vpop.f32.mrf.mxu0
        %v5602 = vadd.f32 0.0, %v5601
        %5603 = vmatmul.bf16.gmra.mxu0 %v5278
        %v5604 = vpop.f32.mrf.mxu0
        %v5605 = vpop.f32.mrf.mxu0
        %v5606 = vadd.f32 0.0, %v5605
        %5607 = vmatmul.bf16.gmra.mxu0 %v5286
        %v5608 = vpop.f32.mrf.mxu0
        %v5609 = vadd.f32 0.0, %v5608
        %v5610 = vpop.f32.mrf.mxu0
        %5611 = vmatmul.bf16.gmra.mxu0 %v5294
        %v5612 = vpop.f32.mrf.mxu0
        %v5613 = vadd.f32 0.0, %v5612
        %v5614 = vpop.f32.mrf.mxu0
        %v5615 = vadd.f32 0.0, %v5614
        %5616 = vmatmul.bf16.gmra.mxu0 %v5302
        %v5617 = vpop.f32.mrf.mxu0
        %v5618 = vpop.f32.mrf.mxu0
        %v5619 = vadd.f32 0.0, %v5618
        %5620 = vmatmul.bf16.gmra.mxu0 %v5310
        %v5621 = vpop.f32.mrf.mxu0
        %v5622 = vadd.f32 0.0, %v5621
        %v5623 = vpop.f32.mrf.mxu0
        %5624 = vmatmul.bf16.gmra.mxu0 %v5318
        %v5625 = vpop.f32.mrf.mxu0
        %v5626 = vadd.f32 0.0, %v5625
        %v5627 = vpop.f32.mrf.mxu0
        %v5628 = vadd.f32 0.0, %v5627
        %5629 = vmatmul.bf16.gmra.mxu0 %v5326
        %v5630 = vpop.f32.mrf.mxu0
        %v5631 = vpop.f32.mrf.mxu0
        %v5632 = vadd.f32 0.0, %v5631
        %5633 = vmatmul.bf16.gmra.mxu0 %v5334
        %v5634 = vpop.f32.mrf.mxu0
        %v5635 = vadd.f32 0.0, %v5634
        %v5636 = vpop.f32.mrf.mxu0
        %5637 = vmatmul.bf16.gmra.mxu0 %v5342
        %v5638 = vpop.f32.mrf.mxu0
        %v5639 = vadd.f32 0.0, %v5638
        %v5640 = vpop.f32.mrf.mxu0
        %v5641 = vadd.f32 0.0, %v5640
        %5642 = vmatmul.bf16.gmra.mxu0 %v5350
        %v5643 = vpop.f32.mrf.mxu0
        %v5644 = vpop.f32.mrf.mxu0
        %v5645 = vadd.f32 0.0, %v5644
        %5646 = vmatmul.bf16.gmra.mxu0 %v5358
        %v5647 = vpop.f32.mrf.mxu0
        %v5648 = vadd.f32 0.0, %v5647
        %v5649 = vpop.f32.mrf.mxu0
        %5650 = vmatmul.bf16.gmra.mxu0 %v5366
        %v5651 = vpop.f32.mrf.mxu0
        %v5652 = vpop.f32.mrf.mxu0
        %5653 = vmatmul.bf16.gmra.mxu0 %v5374
        %v5654 = vpop.f32.mrf.mxu0
        %v5655 = vpop.f32.mrf.mxu0
        %5656 = vmatmul.bf16.gmra.mxu0 %v5382
        %v5657 = vpop.f32.mrf.mxu0
        %v5658 = vpop.f32.mrf.mxu0
        %5659 = vdwg.mxu0
        %5660 = vmatpush.bf16.msra.mxu0 %v5512
        %5661 = vmatpush.bf16.msra.mxu0 %v5509
        %5662 = vmatpush.bf16.msra.mxu0 %v5506
        %5663 = vmatpush.bf16.msra.mxu0 %v5503
        %5664 = vmatpush.bf16.msra.mxu0 %v5500
        %5665 = vmatpush.bf16.msra.mxu0 %v5497
        %5666 = vmatpush.bf16.msra.mxu0 %v5494
        %5667 = vmatpush.bf16.msra.mxu0 %v5491
        %5668 = vmatmul.bf16.gmra.mxu0 %v5174
        %v5669 = vpop.f32.mrf.mxu0
        %v5670 = vpop.f32.mrf.mxu0
        %5671 = vmatmul.bf16.gmra.mxu0 %v5182
        %v5672 = vpop.f32.mrf.mxu0
        %v5673 = vpop.f32.mrf.mxu0
        %v5674 = vadd.f32 0.0, %v5673
        %5675 = vmatmul.bf16.gmra.mxu0 %v5190
        %v5676 = vpop.f32.mrf.mxu0
        %v5677 = vadd.f32 0.0, %v5676
        %v5678 = vpop.f32.mrf.mxu0
        %5679 = vmatmul.bf16.gmra.mxu0 %v5198
        %v5680 = vpop.f32.mrf.mxu0
        %v5681 = vadd.f32 0.0, %v5680
        %v5682 = vpop.f32.mrf.mxu0
        %v5683 = vadd.f32 0.0, %v5682
        %5684 = vmatmul.bf16.gmra.mxu0 %v5206
        %v5685 = vpop.f32.mrf.mxu0
        %v5686 = vpop.f32.mrf.mxu0
        %v5687 = vadd.f32 0.0, %v5686
        %5688 = vmatmul.bf16.gmra.mxu0 %v5214
        %v5689 = vpop.f32.mrf.mxu0
        %v5690 = vadd.f32 0.0, %v5689
        %v5691 = vpop.f32.mrf.mxu0
        %5692 = vmatmul.bf16.gmra.mxu0 %v5222
        %v5693 = vpop.f32.mrf.mxu0
        %v5694 = vadd.f32 0.0, %v5693
        %v5695 = vpop.f32.mrf.mxu0
        %v5696 = vadd.f32 0.0, %v5695
        %5697 = vmatmul.bf16.gmra.mxu0 %v5230
        %v5698 = vpop.f32.mrf.mxu0
        %v5699 = vpop.f32.mrf.mxu0
        %v5700 = vadd.f32 0.0, %v5699
        %5701 = vmatmul.bf16.gmra.mxu0 %v5238
        %v5702 = vpop.f32.mrf.mxu0
        %v5703 = vadd.f32 0.0, %v5702
        %v5704 = vpop.f32.mrf.mxu0
        %5705 = vmatmul.bf16.gmra.mxu0 %v5246
        %v5706 = vpop.f32.mrf.mxu0
        %v5707 = vadd.f32 0.0, %v5706
        %v5708 = vpop.f32.mrf.mxu0
        %v5709 = vadd.f32 0.0, %v5708
        %5710 = vmatmul.bf16.gmra.mxu0 %v5254
        %v5711 = vpop.f32.mrf.mxu0
        %v5712 = vpop.f32.mrf.mxu0
        %v5713 = vadd.f32 0.0, %v5712
        %5714 = vmatmul.bf16.gmra.mxu0 %v5262
        %v5715 = vpop.f32.mrf.mxu0
        %v5716 = vadd.f32 0.0, %v5715
        %v5717 = vpop.f32.mrf.mxu0
        %5718 = vmatmul.bf16.gmra.mxu0 %v5270
        %v5719 = vpop.f32.mrf.mxu0
        %v5720 = vadd.f32 0.0, %v5719
        %v5721 = vpop.f32.mrf.mxu0
        %v5722 = vadd.f32 0.0, %v5721
        %5723 = vmatmul.bf16.gmra.mxu0 %v5278
        %v5724 = vpop.f32.mrf.mxu0
        %v5725 = vpop.f32.mrf.mxu0
        %v5726 = vadd.f32 0.0, %v5725
        %5727 = vmatmul.bf16.gmra.mxu0 %v5286
        %v5728 = vpop.f32.mrf.mxu0
        %v5729 = vadd.f32 0.0, %v5728
        %v5730 = vpop.f32.mrf.mxu0
        %5731 = vmatmul.bf16.gmra.mxu0 %v5294
        %v5732 = vpop.f32.mrf.mxu0
        %v5733 = vadd.f32 0.0, %v5732
        %v5734 = vpop.f32.mrf.mxu0
        %v5735 = vadd.f32 0.0, %v5734
        %5736 = vmatmul.bf16.gmra.mxu0 %v5302
        %v5737 = vpop.f32.mrf.mxu0
        %v5738 = vpop.f32.mrf.mxu0
        %v5739 = vadd.f32 0.0, %v5738
        %5740 = vmatmul.bf16.gmra.mxu0 %v5310
        %v5741 = vpop.f32.mrf.mxu0
        %v5742 = vadd.f32 0.0, %v5741
        %v5743 = vpop.f32.mrf.mxu0
        %5744 = vmatmul.bf16.gmra.mxu0 %v5318
        %v5745 = vpop.f32.mrf.mxu0
        %v5746 = vadd.f32 0.0, %v5745
        %v5747 = vpop.f32.mrf.mxu0
        %v5748 = vadd.f32 0.0, %v5747
        %5749 = vmatmul.bf16.gmra.mxu0 %v5326
        %v5750 = vpop.f32.mrf.mxu0
        %v5751 = vpop.f32.mrf.mxu0
        %v5752 = vadd.f32 0.0, %v5751
        %5753 = vmatmul.bf16.gmra.mxu0 %v5334
        %v5754 = vpop.f32.mrf.mxu0
        %v5755 = vadd.f32 0.0, %v5754
        %v5756 = vpop.f32.mrf.mxu0
        %5757 = vmatmul.bf16.gmra.mxu0 %v5342
        %v5758 = vpop.f32.mrf.mxu0
        %v5759 = vadd.f32 0.0, %v5758
        %v5760 = vpop.f32.mrf.mxu0
        %v5761 = vadd.f32 0.0, %v5760
        %5762 = vmatmul.bf16.gmra.mxu0 %v5350
        %v5763 = vpop.f32.mrf.mxu0
        %v5764 = vpop.f32.mrf.mxu0
        %v5765 = vadd.f32 0.0, %v5764
        %5766 = vmatmul.bf16.gmra.mxu0 %v5358
        %v5767 = vpop.f32.mrf.mxu0
        %v5768 = vadd.f32 0.0, %v5767
        %v5769 = vpop.f32.mrf.mxu0
        %5770 = vmatmul.bf16.gmra.mxu0 %v5366
        %v5771 = vpop.f32.mrf.mxu0
        %v5772 = vadd.f32 0.0, %v5771
        %v5773 = vpop.f32.mrf.mxu0
        %v5774 = vadd.f32 0.0, %v5773
        %5775 = vmatmul.bf16.gmra.mxu0 %v5374
        %v5776 = vpop.f32.mrf.mxu0
        %v5777 = vpop.f32.mrf.mxu0
        %5778 = vmatmul.bf16.gmra.mxu0 %v5382
        %v5779 = vpop.f32.mrf.mxu0
        %v5780 = vpop.f32.mrf.mxu0
        %5781 = vdwg.mxu0
        %5782 = vmatpush.bf16.msra.mxu0 %v5513
        %5783 = vmatpush.bf16.msra.mxu0 %v5510
        %5784 = vmatpush.bf16.msra.mxu0 %v5507
        %5785 = vmatpush.bf16.msra.mxu0 %v5504
        %5786 = vmatpush.bf16.msra.mxu0 %v5501
        %5787 = vmatpush.bf16.msra.mxu0 %v5498
        %5788 = vmatpush.bf16.msra.mxu0 %v5495
        %5789 = vmatpush.bf16.msra.mxu0 %v5492
        %5790 = vmatmul.bf16.gmra.mxu0 %v5174
        %v5791 = vpop.f32.mrf.mxu0
        %v5792 = vpop.f32.mrf.mxu0
        %5793 = vmatmul.bf16.gmra.mxu0 %v5182
        %v5794 = vpop.f32.mrf.mxu0
        %v5795 = vpop.f32.mrf.mxu0
        %5796 = vmatmul.bf16.gmra.mxu0 %v5190
        %v5797 = vpop.f32.mrf.mxu0
        %v5798 = vpop.f32.mrf.mxu0
        %5799 = vmatmul.bf16.gmra.mxu0 %v5198
        %v5800 = vpop.f32.mrf.mxu0
        %v5801 = vadd.f32 0.0, %v5800
        %v5802 = vpop.f32.mrf.mxu0
        %v5803 = vadd.f32 0.0, %v5802
        %5804 = vmatmul.bf16.gmra.mxu0 %v5206
        %v5805 = vpop.f32.mrf.mxu0
        %v5806 = vpop.f32.mrf.mxu0
        %v5807 = vadd.f32 0.0, %v5806
        %5808 = vmatmul.bf16.gmra.mxu0 %v5214
        %v5809 = vpop.f32.mrf.mxu0
        %v5810 = vadd.f32 0.0, %v5809
        %v5811 = vpop.f32.mrf.mxu0
        %5812 = vmatmul.bf16.gmra.mxu0 %v5222
        %v5813 = vpop.f32.mrf.mxu0
        %v5814 = vadd.f32 0.0, %v5813
        %v5815 = vpop.f32.mrf.mxu0
        %v5816 = vadd.f32 0.0, %v5815
        %5817 = vmatmul.bf16.gmra.mxu0 %v5230
        %v5818 = vpop.f32.mrf.mxu0
        %v5819 = vpop.f32.mrf.mxu0
        %v5820 = vadd.f32 0.0, %v5819
        %5821 = vmatmul.bf16.gmra.mxu0 %v5238
        %v5822 = vpop.f32.mrf.mxu0
        %v5823 = vadd.f32 0.0, %v5822
        %v5824 = vpop.f32.mrf.mxu0
        %5825 = vmatmul.bf16.gmra.mxu0 %v5246
        %v5826 = vpop.f32.mrf.mxu0
        %v5827 = vadd.f32 0.0, %v5826
        %v5828 = vpop.f32.mrf.mxu0
        %v5829 = vadd.f32 0.0, %v5828
        %5830 = vmatmul.bf16.gmra.mxu0 %v5254
        %v5831 = vpop.f32.mrf.mxu0
        %v5832 = vpop.f32.mrf.mxu0
        %v5833 = vadd.f32 0.0, %v5832
        %5834 = vmatmul.bf16.gmra.mxu0 %v5262
        %v5835 = vpop.f32.mrf.mxu0
        %v5836 = vadd.f32 0.0, %v5835
        %v5837 = vpop.f32.mrf.mxu0
        %5838 = vmatmul.bf16.gmra.mxu0 %v5270
        %v5839 = vpop.f32.mrf.mxu0
        %v5840 = vadd.f32 0.0, %v5839
        %v5841 = vpop.f32.mrf.mxu0
        %v5842 = vadd.f32 0.0, %v5841
        %5843 = vmatmul.bf16.gmra.mxu0 %v5278
        %v5844 = vpop.f32.mrf.mxu0
        %v5845 = vpop.f32.mrf.mxu0
        %v5846 = vadd.f32 0.0, %v5845
        %5847 = vmatmul.bf16.gmra.mxu0 %v5286
        %v5848 = vpop.f32.mrf.mxu0
        %v5849 = vadd.f32 0.0, %v5848
        %v5850 = vpop.f32.mrf.mxu0
        %5851 = vmatmul.bf16.gmra.mxu0 %v5294
        %v5852 = vpop.f32.mrf.mxu0
        %v5853 = vadd.f32 0.0, %v5852
        %v5854 = vpop.f32.mrf.mxu0
        %v5855 = vadd.f32 0.0, %v5854
        %5856 = vmatmul.bf16.gmra.mxu0 %v5302
        %v5857 = vpop.f32.mrf.mxu0
        %v5858 = vpop.f32.mrf.mxu0
        %v5859 = vadd.f32 0.0, %v5858
        %5860 = vmatmul.bf16.gmra.mxu0 %v5310
        %v5861 = vpop.f32.mrf.mxu0
        %v5862 = vadd.f32 0.0, %v5861
        %v5863 = vpop.f32.mrf.mxu0
        %5864 = vmatmul.bf16.gmra.mxu0 %v5318
        %v5865 = vpop.f32.mrf.mxu0
        %v5866 = vadd.f32 0.0, %v5865
        %v5867 = vpop.f32.mrf.mxu0
        %v5868 = vadd.f32 0.0, %v5867
        %5869 = vmatmul.bf16.gmra.mxu0 %v5326
        %v5870 = vpop.f32.mrf.mxu0
        %v5871 = vpop.f32.mrf.mxu0
        %v5872 = vadd.f32 0.0, %v5871
        %5873 = vmatmul.bf16.gmra.mxu0 %v5334
        %v5874 = vpop.f32.mrf.mxu0
        %v5875 = vadd.f32 0.0, %v5874
        %v5876 = vpop.f32.mrf.mxu0
        %5877 = vmatmul.bf16.gmra.mxu0 %v5342
        %v5878 = vpop.f32.mrf.mxu0
        %v5879 = vadd.f32 0.0, %v5878
        %v5880 = vpop.f32.mrf.mxu0
        %v5881 = vadd.f32 0.0, %v5880
        %5882 = vmatmul.bf16.gmra.mxu0 %v5350
        %v5883 = vpop.f32.mrf.mxu0
        %v5884 = vpop.f32.mrf.mxu0
        %v5885 = vadd.f32 0.0, %v5884
        %5886 = vmatmul.bf16.gmra.mxu0 %v5358
        %v5887 = vpop.f32.mrf.mxu0
        %v5888 = vadd.f32 0.0, %v5887
        %v5889 = vpop.f32.mrf.mxu0
        %5890 = vmatmul.bf16.gmra.mxu0 %v5366
        %v5891 = vpop.f32.mrf.mxu0
        %v5892 = vadd.f32 0.0, %v5891
        %v5893 = vpop.f32.mrf.mxu0
        %v5894 = vadd.f32 0.0, %v5893
        %5895 = vmatmul.bf16.gmra.mxu0 %v5374
        %v5896 = vpop.f32.mrf.mxu0
        %v5897 = vpop.f32.mrf.mxu0
        %v5898 = vadd.f32 0.0, %v5897
        %5899 = vmatmul.bf16.gmra.mxu0 %v5382
        %v5900 = vpop.f32.mrf.mxu0
        %v5901 = vadd.f32 0.0, %v5900
        %v5902 = vpop.f32.mrf.mxu0
        %5903 = vdwg.mxu0
        %v5904 = vadd.f32 %v4581, %v5548
        %v5905 = vadd.f32 %v4583, %v5550
        %v5906 = vadd.f32 %v4587, %v5554
        %v5907 = vadd.f32 %v4707, %v5674
        %v5908 = vadd.f32 %v4590, %v5557
        %v5909 = vadd.f32 %v4710, %v5677
        %v5910 = vadd.f32 %v4594, %v5561
        %v5911 = vadd.f32 %v4714, %v5681
        %v5912 = vadd.f32 %v4834, %v5801
        %v5913 = vadd.f32 %v4596, %v5563
        %v5914 = vadd.f32 %v4716, %v5683
        %v5915 = vadd.f32 %v4836, %v5803
        %v5916 = vadd.f32 %v4600, %v5567
        %v5917 = vadd.f32 %v4720, %v5687
        %v5918 = vadd.f32 %v4840, %v5807
        %v5919 = vadd.f32 %v4603, %v5570
        %v5920 = vadd.f32 %v4723, %v5690
        %v5921 = vadd.f32 %v4843, %v5810
        %v5922 = vadd.f32 %v4607, %v5574
        %v5923 = vadd.f32 %v4727, %v5694
        %v5924 = vadd.f32 %v4847, %v5814
        %v5925 = vadd.f32 %v4609, %v5576
        %v5926 = vadd.f32 %v4729, %v5696
        %v5927 = vadd.f32 %v4849, %v5816
        %v5928 = vadd.f32 %v4613, %v5580
        %v5929 = vadd.f32 %v4733, %v5700
        %v5930 = vadd.f32 %v4853, %v5820
        %v5931 = vadd.f32 %v4616, %v5583
        %v5932 = vadd.f32 %v4736, %v5703
        %v5933 = vadd.f32 %v4856, %v5823
        %v5934 = vadd.f32 %v4620, %v5587
        %v5935 = vadd.f32 %v4740, %v5707
        %v5936 = vadd.f32 %v4860, %v5827
        %v5937 = vadd.f32 %v4622, %v5589
        %v5938 = vadd.f32 %v4742, %v5709
        %v5939 = vadd.f32 %v4862, %v5829
        %v5940 = vadd.f32 %v4626, %v5593
        %v5941 = vadd.f32 %v4746, %v5713
        %v5942 = vadd.f32 %v4866, %v5833
        %v5943 = vadd.f32 %v4629, %v5596
        %v5944 = vadd.f32 %v4749, %v5716
        %v5945 = vadd.f32 %v4869, %v5836
        %v5946 = vadd.f32 %v4633, %v5600
        %v5947 = vadd.f32 %v4753, %v5720
        %v5948 = vadd.f32 %v4873, %v5840
        %v5949 = vadd.f32 %v4635, %v5602
        %v5950 = vadd.f32 %v4755, %v5722
        %v5951 = vadd.f32 %v4875, %v5842
        %v5952 = vadd.f32 %v4639, %v5606
        %v5953 = vadd.f32 %v4759, %v5726
        %v5954 = vadd.f32 %v4879, %v5846
        %v5955 = vadd.f32 %v4642, %v5609
        %v5956 = vadd.f32 %v4762, %v5729
        %v5957 = vadd.f32 %v4882, %v5849
        %v5958 = vadd.f32 %v4646, %v5613
        %v5959 = vadd.f32 %v4766, %v5733
        %v5960 = vadd.f32 %v4886, %v5853
        %v5961 = vadd.f32 %v4648, %v5615
        %v5962 = vadd.f32 %v4768, %v5735
        %v5963 = vadd.f32 %v4888, %v5855
        %v5964 = vadd.f32 %v4652, %v5619
        %v5965 = vadd.f32 %v4772, %v5739
        %v5966 = vadd.f32 %v4892, %v5859
        %v5967 = vadd.f32 %v4655, %v5622
        %v5968 = vadd.f32 %v4775, %v5742
        %v5969 = vadd.f32 %v4895, %v5862
        %v5970 = vadd.f32 %v4659, %v5626
        %v5971 = vadd.f32 %v4779, %v5746
        %v5972 = vadd.f32 %v4899, %v5866
        %v5973 = vadd.f32 %v4661, %v5628
        %v5974 = vadd.f32 %v4781, %v5748
        %v5975 = vadd.f32 %v4901, %v5868
        %v5976 = vadd.f32 %v4665, %v5632
        %v5977 = vadd.f32 %v4785, %v5752
        %v5978 = vadd.f32 %v4905, %v5872
        %v5979 = vadd.f32 %v4668, %v5635
        %v5980 = vadd.f32 %v4788, %v5755
        %v5981 = vadd.f32 %v4908, %v5875
        %v5982 = vadd.f32 %v4672, %v5639
        %v5983 = vadd.f32 %v4792, %v5759
        %v5984 = vadd.f32 %v4912, %v5879
        %v5985 = vadd.f32 %v4674, %v5641
        %v5986 = vadd.f32 %v4794, %v5761
        %v5987 = vadd.f32 %v4914, %v5881
        %v5988 = vadd.f32 %v4678, %v5645
        %v5989 = vadd.f32 %v4798, %v5765
        %v5990 = vadd.f32 %v4918, %v5885
        %v5991 = vadd.f32 %v4681, %v5648
        %v5992 = vadd.f32 %v4801, %v5768
        %v5993 = vadd.f32 %v4921, %v5888
        %v5994 = vadd.f32 %v4805, %v5772
        %v5995 = vadd.f32 %v4925, %v5892
        %v5996 = vadd.f32 %v4807, %v5774
        %v5997 = vadd.f32 %v4927, %v5894
        %v5998 = vadd.f32 %v4931, %v5898
        %v5999 = vadd.f32 %v4934, %v5901
        %v6000 = vadd.f32 %v5904, %v5907
        %v6001 = vadd.f32 %v5905, %v5909
        %v6002 = vadd.f32 %v5906, %v5911
        %v6003 = vadd.f32 %v5908, %v5914
        %v6004 = vadd.f32 %v5910, %v5917
        %v6005 = vadd.f32 %v5913, %v5920
        %v6006 = vadd.f32 %v5916, %v5923
        %v6007 = vadd.f32 %v5919, %v5926
        %v6008 = vadd.f32 %v5922, %v5929
        %v6009 = vadd.f32 %v5925, %v5932
        %v6010 = vadd.f32 %v5928, %v5935
        %v6011 = vadd.f32 %v5931, %v5938
        %v6012 = vadd.f32 %v5934, %v5941
        %v6013 = vadd.f32 %v5937, %v5944
        %v6014 = vadd.f32 %v5940, %v5947
        %v6015 = vadd.f32 %v5943, %v5950
        %v6016 = vadd.f32 %v5946, %v5953
        %v6017 = vadd.f32 %v5949, %v5956
        %v6018 = vadd.f32 %v5952, %v5959
        %v6019 = vadd.f32 %v5955, %v5962
        %v6020 = vadd.f32 %v5958, %v5965
        %v6021 = vadd.f32 %v5961, %v5968
        %v6022 = vadd.f32 %v5964, %v5971
        %v6023 = vadd.f32 %v5967, %v5974
        %v6024 = vadd.f32 %v5970, %v5977
        %v6025 = vadd.f32 %v5973, %v5980
        %v6026 = vadd.f32 %v5976, %v5983
        %v6027 = vadd.f32 %v5979, %v5986
        %v6028 = vadd.f32 %v5982, %v5989
        %v6029 = vadd.f32 %v5985, %v5992
        %v6030 = vadd.f32 %v5988, %v5994
        %v6031 = vadd.f32 %v5991, %v5996
        %v6032 = vadd.f32 %v6000, %v5912
        %v6033 = vadd.f32 %v6001, %v5915
        %v6034 = vadd.f32 %v6002, %v5918
        %v6035 = vadd.f32 %v6003, %v5921
        %v6036 = vadd.f32 %v6004, %v5924
        %v6037 = vadd.f32 %v6005, %v5927
        %v6038 = vadd.f32 %v6006, %v5930
        %v6039 = vadd.f32 %v6007, %v5933
        %v6040 = vadd.f32 %v6008, %v5936
        %v6041 = vadd.f32 %v6009, %v5939
        %v6042 = vadd.f32 %v6010, %v5942
        %v6043 = vadd.f32 %v6011, %v5945
        %v6044 = vadd.f32 %v6012, %v5948
        %v6045 = vadd.f32 %v6013, %v5951
        %v6046 = vadd.f32 %v6014, %v5954
        %v6047 = vadd.f32 %v6015, %v5957
        %v6048 = vadd.f32 %v6016, %v5960
        %v6049 = vadd.f32 %v6017, %v5963
        %v6050 = vadd.f32 %v6018, %v5966
        %v6051 = vadd.f32 %v6019, %v5969
        %v6052 = vadd.f32 %v6020, %v5972
        %v6053 = vadd.f32 %v6021, %v5975
        %v6054 = vadd.f32 %v6022, %v5978
        %v6055 = vadd.f32 %v6023, %v5981
        %v6056 = vadd.f32 %v6024, %v5984
        %v6057 = vadd.f32 %v6025, %v5987
        %v6058 = vadd.f32 %v6026, %v5990
        %v6059 = vadd.f32 %v6027, %v5993
        %v6060 = vadd.f32 %v6028, %v5995
        %v6061 = vadd.f32 %v6029, %v5997
        %v6062 = vadd.f32 %v6030, %v5998
        %v6063 = vadd.f32 %v6031, %v5999
        %v6064 = vld [vmem:[%s249 + $0xc] sm:$0xf]
        %v6065 = vld [vmem:[%s249 + $0x10] sm:$0xf]
        %v6066 = vld [vmem:[%s249 + $0x14] sm:$0xf]
        %v6067 = vld [vmem:[%s249 + $0x18] sm:$0xf]
        %v6068 = vld [vmem:[%s249 + $0x1c] sm:$0xf]
        %v6069 = vld [vmem:[%s249 + $0x20] sm:$0xf]
        %v6070 = vld [vmem:[%s249 + $0x24] sm:$0xf]
        %v6071 = vld [vmem:[%s249 + $0x28] sm:$0xf]
        %v6072 = vld [vmem:[%s249 + $0x2c] sm:$0xf]
        %v6073 = vld [vmem:[%s249 + $0x30] sm:$0xf]
        %v6074 = vld [vmem:[%s249 + $0x34] sm:$0xf]
        %v6075 = vld [vmem:[%s249 + $0x38] sm:$0xf]
        %v6076 = vld [vmem:[%s249 + $0x3c] sm:$0xf]
        %v6077 = vld [vmem:[%s249 + $0x40] sm:$0xf]
        %v6078 = vld [vmem:[%s249 + $0x44] sm:$0xf]
        %v6079 = vld [vmem:[%s249 + $0x48] sm:$0xf]
        %v6080 = vld [vmem:[%s249 + $0x4c] sm:$0xf]
        %v6081 = vld [vmem:[%s249 + $0x50] sm:$0xf]
        %v6082 = vld [vmem:[%s249 + $0x54] sm:$0xf]
        %v6083 = vld [vmem:[%s249 + $0x58] sm:$0xf]
        %v6084 = vld [vmem:[%s249 + $0x5c] sm:$0xf]
        %v6085 = vld [vmem:[%s249 + $0x60] sm:$0xf]
        %v6086 = vld [vmem:[%s249 + $0x64] sm:$0xf]
        %v6087 = vld [vmem:[%s249 + $0x68] sm:$0xf]
        %v6088 = vld [vmem:[%s249 + $0x6c] sm:$0xf]
        %v6089 = vld [vmem:[%s249 + $0x70] sm:$0xf]
        %v6090 = vld [vmem:[%s249 + $0x74] sm:$0xf]
        %v6091 = vld [vmem:[%s249 + $0x78] sm:$0xf]
        %v6092 = vld [vmem:[%s249 + $0x7c] sm:$0xf]
        %v6093 = vld [vmem:[%s249 + $0x80] sm:$0xf]
        %v6094 = vld [vmem:[%s249 + $0x84] sm:$0xf]
        %v6095 = vld [vmem:[%s249 + $0x88] sm:$0xf]
        %v6096 = vld [vmem:[%s249 + $0x8c] sm:$0xf]
        %v6097 = vld [vmem:[%s249 + $0x90] sm:$0xf]
        %v6098 = vld [vmem:[%s249 + $0x94] sm:$0xf]
        %v6099 = vld [vmem:[%s249 + $0x98] sm:$0xf]
        %v6100 = vld [vmem:[%s249 + $0x9c] sm:$0xf]
        %v6101 = vld [vmem:[%s249 + $0xa0] sm:$0xf]
        %v6102 = vld [vmem:[%s249 + $0xa4] sm:$0xf]
        %v6103 = vld [vmem:[%s249 + $0xa8] sm:$0xf]
        %v6104 = vld [vmem:[%s249 + $0xac] sm:$0xf]
        %v6105 = vld [vmem:[%s249 + $0xb0] sm:$0xf]
        %v6106 = vld [vmem:[%s249 + $0xb4] sm:$0xf]
        %v6107 = vld [vmem:[%s249 + $0xb8] sm:$0xf]
        %v6108 = vld [vmem:[%s249 + $0xbc] sm:$0xf]
        %v6109 = vld [vmem:[%s249 + $0xc0] sm:$0xf]
        %v6110 = vld [vmem:[%s249 + $0xc4] sm:$0xf]
        %v6111 = vld [vmem:[%s249 + $0xc8] sm:$0xf]
        %v6112 = vunpack.c.l.bf16 %v6064
        %v6113 = vunpack.c.l.bf16 %v6065
        %v6114 = vunpack.c.l.bf16 %v6066
        %v6115 = vunpack.c.l.bf16 %v6067
        %v6116 = vunpack.c.l.bf16 %v6068
        %v6117 = vunpack.c.l.bf16 %v6069
        %v6118 = vunpack.c.l.bf16 %v6070
        %v6119 = vunpack.c.l.bf16 %v6071
        %v6120 = vunpack.c.l.bf16 %v6072
        %v6121 = vunpack.c.l.bf16 %v6073
        %v6122 = vunpack.c.l.bf16 %v6074
        %v6123 = vunpack.c.l.bf16 %v6075
        %v6124 = vunpack.c.l.bf16 %v6076
        %v6125 = vunpack.c.l.bf16 %v6077
        %v6126 = vunpack.c.l.bf16 %v6078
        %v6127 = vunpack.c.l.bf16 %v6079
        %v6128 = vunpack.c.l.bf16 %v6080
        %v6129 = vunpack.c.l.bf16 %v6081
        %v6130 = vunpack.c.l.bf16 %v6082
        %v6131 = vunpack.c.l.bf16 %v6083
        %v6132 = vunpack.c.l.bf16 %v6084
        %v6133 = vunpack.c.l.bf16 %v6085
        %v6134 = vunpack.c.l.bf16 %v6086
        %v6135 = vunpack.c.l.bf16 %v6087
        %v6136 = vunpack.c.l.bf16 %v6088
        %v6137 = vunpack.c.l.bf16 %v6089
        %v6138 = vunpack.c.l.bf16 %v6090
        %v6139 = vunpack.c.l.bf16 %v6091
        %v6140 = vunpack.c.l.bf16 %v6092
        %v6141 = vunpack.c.l.bf16 %v6093
        %v6142 = vunpack.c.l.bf16 %v6094
        %v6143 = vunpack.c.l.bf16 %v6095
        %v6144 = vunpack.c.l.bf16 %v6096
        %v6145 = vunpack.c.l.bf16 %v6097
        %v6146 = vunpack.c.l.bf16 %v6098
        %v6147 = vunpack.c.l.bf16 %v6099
        %v6148 = vunpack.c.l.bf16 %v6100
        %v6149 = vunpack.c.l.bf16 %v6101
        %v6150 = vunpack.c.l.bf16 %v6102
        %v6151 = vunpack.c.l.bf16 %v6103
        %v6152 = vunpack.c.l.bf16 %v6104
        %v6153 = vunpack.c.l.bf16 %v6105
        %v6154 = vunpack.c.l.bf16 %v6106
        %v6155 = vunpack.c.l.bf16 %v6107
        %v6156 = vunpack.c.l.bf16 %v6108
        %v6157 = vunpack.c.l.bf16 %v6109
        %v6158 = vunpack.c.l.bf16 %v6110
        %v6159 = vunpack.c.l.bf16 %v6111
        %v6160 = vld [vmem:[%s4] sm:$0x1]
        %v6161 = vperm.slane %v6160, 0
        %v6162 = vmul.f32 %v6032, %v6161
        %v6163 = vmul.f32 %v6033, %v6161
        %v6164 = vmul.f32 %v6034, %v6161
        %v6165 = vmul.f32 %v6035, %v6161
        %v6166 = vmul.f32 %v6036, %v6161
        %v6167 = vmul.f32 %v6037, %v6161
        %v6168 = vmul.f32 %v6038, %v6161
        %v6169 = vmul.f32 %v6039, %v6161
        %v6170 = vmul.f32 %v6040, %v6161
        %v6171 = vmul.f32 %v6041, %v6161
        %v6172 = vmul.f32 %v6042, %v6161
        %v6173 = vmul.f32 %v6043, %v6161
        %v6174 = vmul.f32 %v6044, %v6161
        %v6175 = vmul.f32 %v6045, %v6161
        %v6176 = vmul.f32 %v6046, %v6161
        %v6177 = vmul.f32 %v6047, %v6161
        %v6178 = vmul.f32 %v6048, %v6161
        %v6179 = vmul.f32 %v6049, %v6161
        %v6180 = vmul.f32 %v6050, %v6161
        %v6181 = vmul.f32 %v6051, %v6161
        %v6182 = vmul.f32 %v6052, %v6161
        %v6183 = vmul.f32 %v6053, %v6161
        %v6184 = vmul.f32 %v6054, %v6161
        %v6185 = vmul.f32 %v6055, %v6161
        %v6186 = vmul.f32 %v6056, %v6161
        %v6187 = vmul.f32 %v6057, %v6161
        %v6188 = vmul.f32 %v6058, %v6161
        %v6189 = vmul.f32 %v6059, %v6161
        %v6190 = vmul.f32 %v6060, %v6161
        %v6191 = vmul.f32 %v6061, %v6161
        %v6192 = vmul.f32 %v6062, %v6161
        %v6193 = vmul.f32 %v6063, %v6161
        %v6194 = vld [vmem:[%s4 + $0x1] sm:$0x1]
        %v6195 = vperm.slane %v6194, 0
        %v6196 = vadd.f32 %v6162, %v6195
        %v6197 = vadd.f32 %v6163, %v6195
        %v6198 = vadd.f32 %v6164, %v6195
        %v6199 = vadd.f32 %v6165, %v6195
        %v6200 = vadd.f32 %v6166, %v6195
        %v6201 = vadd.f32 %v6167, %v6195
        %v6202 = vadd.f32 %v6168, %v6195
        %v6203 = vadd.f32 %v6169, %v6195
        %v6204 = vadd.f32 %v6170, %v6195
        %v6205 = vadd.f32 %v6171, %v6195
        %v6206 = vadd.f32 %v6172, %v6195
        %v6207 = vadd.f32 %v6173, %v6195
        %v6208 = vadd.f32 %v6174, %v6195
        %v6209 = vadd.f32 %v6175, %v6195
        %v6210 = vadd.f32 %v6176, %v6195
        %v6211 = vadd.f32 %v6177, %v6195
        %v6212 = vadd.f32 %v6178, %v6195
        %v6213 = vadd.f32 %v6179, %v6195
        %v6214 = vadd.f32 %v6180, %v6195
        %v6215 = vadd.f32 %v6181, %v6195
        %v6216 = vadd.f32 %v6182, %v6195
        %v6217 = vadd.f32 %v6183, %v6195
        %v6218 = vadd.f32 %v6184, %v6195
        %v6219 = vadd.f32 %v6185, %v6195
        %v6220 = vadd.f32 %v6186, %v6195
        %v6221 = vadd.f32 %v6187, %v6195
        %v6222 = vadd.f32 %v6188, %v6195
        %v6223 = vadd.f32 %v6189, %v6195
        %v6224 = vadd.f32 %v6190, %v6195
        %v6225 = vadd.f32 %v6191, %v6195
        %v6226 = vadd.f32 %v6192, %v6195
        %v6227 = vadd.f32 %v6193, %v6195
        %vm6276 = vcmask 1046528
        %v6277 = vrot.slane %v6112, 1
        %v6278 = vrot.slane %v6113, 1
        %v6279 = vsel %vm6276, %v6277, %v6278
        %v6280 = vrot.slane %v6114, 1
        %v6281 = vsel %vm6276, %v6278, %v6280
        %v6282 = vrot.slane %v6115, 1
        %v6283 = vrot.slane %v6116, 1
        %v6284 = vsel %vm6276, %v6282, %v6283
        %v6285 = vrot.slane %v6117, 1
        %v6286 = vsel %vm6276, %v6283, %v6285
        %v6287 = vrot.slane %v6118, 1
        %v6288 = vrot.slane %v6119, 1
        %v6289 = vsel %vm6276, %v6287, %v6288
        %v6290 = vrot.slane %v6120, 1
        %v6291 = vsel %vm6276, %v6288, %v6290
        %v6292 = vrot.slane %v6121, 1
        %v6293 = vrot.slane %v6122, 1
        %v6294 = vsel %vm6276, %v6292, %v6293
        %v6295 = vrot.slane %v6123, 1
        %v6296 = vsel %vm6276, %v6293, %v6295
        %v6297 = vrot.slane %v6124, 1
        %v6298 = vrot.slane %v6125, 1
        %v6299 = vsel %vm6276, %v6297, %v6298
        %v6300 = vrot.slane %v6126, 1
        %v6301 = vsel %vm6276, %v6298, %v6300
        %v6302 = vrot.slane %v6127, 1
        %v6303 = vrot.slane %v6128, 1
        %v6304 = vsel %vm6276, %v6302, %v6303
        %v6305 = vrot.slane %v6129, 1
        %v6306 = vsel %vm6276, %v6303, %v6305
        %v6307 = vrot.slane %v6130, 1
        %v6308 = vrot.slane %v6131, 1
        %v6309 = vsel %vm6276, %v6307, %v6308
        %v6310 = vrot.slane %v6132, 1
        %v6311 = vsel %vm6276, %v6308, %v6310
        %v6312 = vrot.slane %v6133, 1
        %v6313 = vrot.slane %v6134, 1
        %v6314 = vsel %vm6276, %v6312, %v6313
        %v6315 = vrot.slane %v6135, 1
        %v6316 = vsel %vm6276, %v6313, %v6315
        %v6317 = vrot.slane %v6136, 1
        %v6318 = vrot.slane %v6137, 1
        %v6319 = vsel %vm6276, %v6317, %v6318
        %v6320 = vrot.slane %v6138, 1
        %v6321 = vsel %vm6276, %v6318, %v6320
        %v6322 = vrot.slane %v6139, 1
        %v6323 = vrot.slane %v6140, 1
        %v6324 = vsel %vm6276, %v6322, %v6323
        %v6325 = vrot.slane %v6141, 1
        %v6326 = vsel %vm6276, %v6323, %v6325
        %v6327 = vrot.slane %v6142, 1
        %v6328 = vrot.slane %v6143, 1
        %v6329 = vsel %vm6276, %v6327, %v6328
        %v6330 = vrot.slane %v6144, 1
        %v6331 = vsel %vm6276, %v6328, %v6330
        %v6332 = vrot.slane %v6145, 1
        %v6333 = vrot.slane %v6146, 1
        %v6334 = vsel %vm6276, %v6332, %v6333
        %v6335 = vrot.slane %v6147, 1
        %v6336 = vsel %vm6276, %v6333, %v6335
        %v6337 = vrot.slane %v6148, 1
        %v6338 = vrot.slane %v6149, 1
        %v6339 = vsel %vm6276, %v6337, %v6338
        %v6340 = vrot.slane %v6150, 1
        %v6341 = vsel %vm6276, %v6338, %v6340
        %v6342 = vrot.slane %v6151, 1
        %v6343 = vrot.slane %v6152, 1
        %v6344 = vsel %vm6276, %v6342, %v6343
        %v6345 = vrot.slane %v6153, 1
        %v6346 = vsel %vm6276, %v6343, %v6345
        %v6347 = vrot.slane %v6154, 1
        %v6348 = vrot.slane %v6155, 1
        %v6349 = vsel %vm6276, %v6347, %v6348
        %v6350 = vrot.slane %v6156, 1
        %v6351 = vsel %vm6276, %v6348, %v6350
        %v6352 = vrot.slane %v6157, 1
        %v6353 = vrot.slane %v6158, 1
        %v6354 = vsel %vm6276, %v6352, %v6353
        %v6355 = vrot.slane %v6159, 1
        %v6356 = vsel %vm6276, %v6353, %v6355
        %v6389 = vadd.f32 %v6196, %v6279
        %v6390 = vadd.f32 %v6197, %v6281
        %v6391 = vadd.f32 %v6198, %v6284
        %v6392 = vadd.f32 %v6199, %v6286
        %v6393 = vadd.f32 %v6200, %v6289
        %v6394 = vadd.f32 %v6201, %v6291
        %v6395 = vadd.f32 %v6202, %v6294
        %v6396 = vadd.f32 %v6203, %v6296
        %v6397 = vadd.f32 %v6204, %v6299
        %v6398 = vadd.f32 %v6205, %v6301
        %v6399 = vadd.f32 %v6206, %v6304
        %v6400 = vadd.f32 %v6207, %v6306
        %v6401 = vadd.f32 %v6208, %v6309
        %v6402 = vadd.f32 %v6209, %v6311
        %v6403 = vadd.f32 %v6210, %v6314
        %v6404 = vadd.f32 %v6211, %v6316
        %v6405 = vadd.f32 %v6212, %v6319
        %v6406 = vadd.f32 %v6213, %v6321
        %v6407 = vadd.f32 %v6214, %v6324
        %v6408 = vadd.f32 %v6215, %v6326
        %v6409 = vadd.f32 %v6216, %v6329
        %v6410 = vadd.f32 %v6217, %v6331
        %v6411 = vadd.f32 %v6218, %v6334
        %v6412 = vadd.f32 %v6219, %v6336
        %v6413 = vadd.f32 %v6220, %v6339
        %v6414 = vadd.f32 %v6221, %v6341
        %v6415 = vadd.f32 %v6222, %v6344
        %v6416 = vadd.f32 %v6223, %v6346
        %v6417 = vadd.f32 %v6224, %v6349
        %v6418 = vadd.f32 %v6225, %v6351
        %v6419 = vadd.f32 %v6226, %v6354
        %v6420 = vadd.f32 %v6227, %v6356
        %v6421 = vmax.f32 %v6389, 0.0
        %v6422 = vmax.f32 %v6390, 0.0
        %v6423 = vmax.f32 %v6391, 0.0
        %v6424 = vmax.f32 %v6392, 0.0
        %v6425 = vmax.f32 %v6393, 0.0
        %v6426 = vmax.f32 %v6394, 0.0
        %v6427 = vmax.f32 %v6395, 0.0
        %v6428 = vmax.f32 %v6396, 0.0
        %v6429 = vmax.f32 %v6397, 0.0
        %v6430 = vmax.f32 %v6398, 0.0
        %v6431 = vmax.f32 %v6399, 0.0
        %v6432 = vmax.f32 %v6400, 0.0
        %v6433 = vmax.f32 %v6401, 0.0
        %v6434 = vmax.f32 %v6402, 0.0
        %v6435 = vmax.f32 %v6403, 0.0
        %v6436 = vmax.f32 %v6404, 0.0
        %v6437 = vmax.f32 %v6405, 0.0
        %v6438 = vmax.f32 %v6406, 0.0
        %v6439 = vmax.f32 %v6407, 0.0
        %v6440 = vmax.f32 %v6408, 0.0
        %v6441 = vmax.f32 %v6409, 0.0
        %v6442 = vmax.f32 %v6410, 0.0
        %v6443 = vmax.f32 %v6411, 0.0
        %v6444 = vmax.f32 %v6412, 0.0
        %v6445 = vmax.f32 %v6413, 0.0
        %v6446 = vmax.f32 %v6414, 0.0
        %v6447 = vmax.f32 %v6415, 0.0
        %v6448 = vmax.f32 %v6416, 0.0
        %v6449 = vmax.f32 %v6417, 0.0
        %v6450 = vmax.f32 %v6418, 0.0
        %v6451 = vmax.f32 %v6419, 0.0
        %v6452 = vmax.f32 %v6420, 0.0
        %v6453 = vpack.c.bf16 %v6421, %v6421
        %v6454 = vpack.c.bf16 %v6422, %v6422
        %v6455 = vpack.c.bf16 %v6423, %v6423
        %v6456 = vpack.c.bf16 %v6424, %v6424
        %v6457 = vpack.c.bf16 %v6425, %v6425
        %v6458 = vpack.c.bf16 %v6426, %v6426
        %v6459 = vpack.c.bf16 %v6427, %v6427
        %v6460 = vpack.c.bf16 %v6428, %v6428
        %v6461 = vpack.c.bf16 %v6429, %v6429
        %v6462 = vpack.c.bf16 %v6430, %v6430
        %v6463 = vpack.c.bf16 %v6431, %v6431
        %v6464 = vpack.c.bf16 %v6432, %v6432
        %v6465 = vpack.c.bf16 %v6433, %v6433
        %v6466 = vpack.c.bf16 %v6434, %v6434
        %v6467 = vpack.c.bf16 %v6435, %v6435
        %v6468 = vpack.c.bf16 %v6436, %v6436
        %v6469 = vpack.c.bf16 %v6437, %v6437
        %v6470 = vpack.c.bf16 %v6438, %v6438
        %v6471 = vpack.c.bf16 %v6439, %v6439
        %v6472 = vpack.c.bf16 %v6440, %v6440
        %v6473 = vpack.c.bf16 %v6441, %v6441
        %v6474 = vpack.c.bf16 %v6442, %v6442
        %v6475 = vpack.c.bf16 %v6443, %v6443
        %v6476 = vpack.c.bf16 %v6444, %v6444
        %v6477 = vpack.c.bf16 %v6445, %v6445
        %v6478 = vpack.c.bf16 %v6446, %v6446
        %v6479 = vpack.c.bf16 %v6447, %v6447
        %v6480 = vpack.c.bf16 %v6448, %v6448
        %v6481 = vpack.c.bf16 %v6449, %v6449
        %v6482 = vpack.c.bf16 %v6450, %v6450
        %v6483 = vpack.c.bf16 %v6451, %v6451
        %v6484 = vpack.c.bf16 %v6452, %v6452
        %6485 = vst [vmem:[%s244] sm:$0xf] %v6453
        %6486 = vst [vmem:[%s244 + $0x4] sm:$0xf] %v6454
        %6487 = vst [vmem:[%s244 + $0x8] sm:$0xf] %v6455
        %6488 = vst [vmem:[%s244 + $0xc] sm:$0xf] %v6456
        %6489 = vst [vmem:[%s244 + $0x10] sm:$0xf] %v6457
        %6490 = vst [vmem:[%s244 + $0x14] sm:$0xf] %v6458
        %6491 = vst [vmem:[%s244 + $0x18] sm:$0xf] %v6459
        %6492 = vst [vmem:[%s244 + $0x1c] sm:$0xf] %v6460
        %6493 = vst [vmem:[%s244 + $0x20] sm:$0xf] %v6461
        %6494 = vst [vmem:[%s244 + $0x24] sm:$0xf] %v6462
        %6495 = vst [vmem:[%s244 + $0x28] sm:$0xf] %v6463
        %6496 = vst [vmem:[%s244 + $0x2c] sm:$0xf] %v6464
        %6497 = vst [vmem:[%s244 + $0x30] sm:$0xf] %v6465
        %6498 = vst [vmem:[%s244 + $0x34] sm:$0xf] %v6466
        %6499 = vst [vmem:[%s244 + $0x38] sm:$0xf] %v6467
        %6500 = vst [vmem:[%s244 + $0x3c] sm:$0xf] %v6468
        %6501 = vst [vmem:[%s244 + $0x40] sm:$0xf] %v6469
        %6502 = vst [vmem:[%s244 + $0x44] sm:$0xf] %v6470
        %6503 = vst [vmem:[%s244 + $0x48] sm:$0xf] %v6471
        %6504 = vst [vmem:[%s244 + $0x4c] sm:$0xf] %v6472
        %6505 = vst [vmem:[%s244 + $0x50] sm:$0xf] %v6473
        %6506 = vst [vmem:[%s244 + $0x54] sm:$0xf] %v6474
        %6507 = vst [vmem:[%s244 + $0x58] sm:$0xf] %v6475
        %6508 = vst [vmem:[%s244 + $0x5c] sm:$0xf] %v6476
        %6509 = vst [vmem:[%s244 + $0x60] sm:$0xf] %v6477
        %6510 = vst [vmem:[%s244 + $0x64] sm:$0xf] %v6478
        %6511 = vst [vmem:[%s244 + $0x68] sm:$0xf] %v6479
        %6512 = vst [vmem:[%s244 + $0x6c] sm:$0xf] %v6480
        %6513 = vst [vmem:[%s244 + $0x70] sm:$0xf] %v6481
        %6514 = vst [vmem:[%s244 + $0x74] sm:$0xf] %v6482
        %6515 = vst [vmem:[%s244 + $0x78] sm:$0xf] %v6483
        %6516 = vst [vmem:[%s244 + $0x7c] sm:$0xf] %v6484
        %s6517 = sand.u32 %s159, 1
        %s6518 = scalar_lea.sflag [#allocation4], %s6517
        %s6519 = sand.u32 %s159, 1
        %s6520 = smul.addr %s6519, 128
        %s6521 = scalar_lea.vmem [#allocation3], %s6520
        // Predicated region
        $region45: #{basic_block.1} parent=43 // pred_check
          %p6522 = pneg %p169
        $region46: #{basic_block.1} parent=43 // pred_check_branch
          %6524 = sbr.rel (%p6522) target = $region48
        $region47: #{basic_block.1} parent=43 // pred_region
          %6526 = vsyncadd %s6518, 0
          %s6527 = smul.addr %s20, 32
          %s6528 = smul.addr %s6527, 4
          %s6529 = scalar_lea.hbm %s6, %s6528
          %s6530 = sshll.u32 %s6521, 4
          %s6531 = int_to_ptr.vmem [resolvable:$true] %s6530
          %s6532 = sshll.u32 %s6529, 4
          %s6533 = int_to_ptr.hbm [resolvable:$true] %s6532
          %6538 = dma.vmem_to_hbm [thread:$0]  %s6531, 2048, %s6533, %s6518, 64, 64, 4
        $region48: #{basic_block.1} parent=43 // pred_fallthru
          _
      $region44: #{basic_block.1} parent=5 // pred_fallthru
        _
      %p6539 = scmp.le.s32.totalorder 2, %s15
      // Predicated region
      $region49: #{basic_block.1} parent=5 // pred_check
        %p6540 = pneg %p6539
      $region50: #{basic_block.1} parent=5 // pred_check_branch
        %6542 = sbr.rel (%p6540) target = $region52
      $region51: #{basic_block.1} parent=5 // pred_region
        %s6543 = ssub.s32 %s15, 2
        // Predicated region
        $region53: #{basic_block.1} parent=51 // pred_check
          %p6544 = pneg %p175
        $region54: #{basic_block.1} parent=51 // pred_check_branch
          %6546 = sbr.rel (%p6544) target = $region56
        $region55: #{basic_block.1} parent=51 // pred_region
          %s6547 = sand.u32 %s160, 1
          %s6548 = scalar_lea.sflag [#allocation4], %s6547
          %s6549 = sand.u32 %s160, 1
          %s6550 = smul.addr %s6549, 128
          %s6551 = scalar_lea.vmem [#allocation3], %s6550
          %6553 = dma.done %s6548, 2048
        $region56: #{basic_block.1} parent=51 // pred_fallthru
          _
      $region52: #{basic_block.1} parent=5 // pred_fallthru
        _
    $region6: #{basic_block.1} parent=1 // loop_footer
      %s19 = sadd.s32 1, %s15
    $region7: #{basic_block.1} parent=1 // loop_footer_branch
      %14 = sbr.rel target = $region3
    $region8: #{basic_block.1} parent=1 // loop_exit
      _
    %6554 = vsyncpa [#allocation4], 1
    %s6555 = scalar_lea.sflag [#allocation4], 1
    %6556 = vsyncpa %s6555, 1

</llo_original>
